<compile_context>
chip_gen: v6e
topology: v6e:2x2x1
jax: 0.10.0
libtpu: 0.0.40
codegen_flags: <defaults>
</compile_context>

<pallas_src>
import math

import jax
import jax.numpy as jnp
from jax.experimental import pallas as pl
from jax.experimental.pallas import tpu as pltpu


# ---------------------------------------------------------------------------
# Kernel
# ---------------------------------------------------------------------------
def _layernorm(x, gamma, beta, eps=1e-12):
    mean = jnp.mean(x, axis=-1, keepdims=True)
    var = jnp.mean((x - mean) ** 2, axis=-1, keepdims=True)
    return (x - mean) * jax.lax.rsqrt(var + eps) * gamma + beta


def _bert_block_kernel(xw_ref, pe_ref,
                       wq_ref, bq_ref, wk_ref, bk_ref, wv_ref, bv_ref,
                       wo_ref, bo_ref, g1_ref, be1_ref,
                       w1_ref, b1_ref, w2_ref, b2_ref, g2_ref, be2_ref,
                       wp_ref, bp_ref, wc_ref, bc_ref,
                       out_ref):
    # One grid step == Km independent single-class BERT models.
    f32 = jnp.float32
    bf16 = jnp.bfloat16
    Km, B, S, H = xw_ref.shape
    inv_sqrt_h = 1.0 / math.sqrt(H)

    cols = []
    for km in range(Km):  # static unroll over the models in this block
        # token + position embedding (pos-add fused here, not in the wrapper)
        x = xw_ref[km].astype(f32) + pe_ref[km].astype(f32)[None, :, :]   # [B,S,H]
        xb = x.reshape(B * S, H).astype(bf16)                             # 2-D for MXU

        # K / V projections over the full sequence (bf16 matmul, f32 accum)
        k = (jnp.dot(xb, wk_ref[km], preferred_element_type=f32)
             + bk_ref[km]).reshape(B, S, H)
        v = (jnp.dot(xb, wv_ref[km], preferred_element_type=f32)
             + bv_ref[km]).reshape(B, S, H)

        # Q / attention only for the CLS query (everything downstream is
        # per-position, so this equals h2[:, 0, :] of the full computation).
        x_cls = x[:, 0, :]                                                # [B,H]
        q = jnp.dot(x_cls.astype(bf16), wq_ref[km],
                    preferred_element_type=f32) + bq_ref[km]              # [B,H]

        scores = jnp.sum(q[:, None, :] * k, axis=-1) * inv_sqrt_h         # [B,S]
        scores = scores - jnp.max(scores, axis=-1, keepdims=True)
        p = jnp.exp(scores)
        attn = p * pl.reciprocal(jnp.sum(p, axis=-1, keepdims=True), approx=True)
        ctx = jnp.sum(attn[:, :, None] * v, axis=1)                       # [B,H]

        attn_out = jnp.dot(ctx.astype(bf16), wo_ref[km],
                           preferred_element_type=f32) + bo_ref[km]
        h1 = _layernorm(x_cls + attn_out, g1_ref[km], be1_ref[km])        # [B,H]

        # feed-forward on the CLS row only
        ff = jnp.dot(h1.astype(bf16), w1_ref[km],
                     preferred_element_type=f32) + b1_ref[km]             # [B,F]
        # TODO(synk): PyTorch/BERT default GELU is exact erf; tanh approx kept here.
        ff = jax.nn.gelu(ff, approximate=True)
        ff = jnp.dot(ff.astype(bf16), w2_ref[km],
                     preferred_element_type=f32) + b2_ref[km]             # [B,H]
        h2 = _layernorm(h1 + ff, g2_ref[km], be2_ref[km])

        # CLS pooler + single-class head (head as VPU mul + lane reduce)
        pooled = jnp.tanh(jnp.dot(h2.astype(bf16), wp_ref[km],
                                  preferred_element_type=f32) + bp_ref[km])
        logit = jnp.sum(pooled * wc_ref[km], axis=-1, keepdims=True) + bc_ref[km]
        cols.append(logit)                                                # [B,1]

    out_ref[0] = jnp.concatenate(cols, axis=1)                            # [B,Km]


# ---------------------------------------------------------------------------
# Wrapper (glue: embedding gather, bf16 cast, spec plumbing, final reshape)
# ---------------------------------------------------------------------------
def many_single_class_bert_forward(ids, params, *, block_models=4):
    """ids: [B, S] int32 -> [B, M] float32 (== torch.concat(outputs, dim=1))."""
    f32, bf16 = jnp.float32, jnp.bfloat16
    M, V, H = params['word_emb'].shape
    B, S = ids.shape

    Km = max(1, min(block_models, M))   # models per grid step
    G = -(-M // Km)                     # grid steps
    Mp = G * Km                         # model count padded to multiple of Km

    def pad_m(a):
        if Mp == M:
            return a
        return jnp.pad(a, [(0, Mp - M)] + [(0, 0)] * (a.ndim - 1))

    # glue: per-model embedding gather, streamed as bf16; pos-add done in-kernel
    xw = jnp.take(params['word_emb'], ids, axis=1).astype(bf16)       # [M,B,S,H]
    pe = params['pos_emb'][:, :S, :].astype(bf16)                     # [M,S,H]
    wc_row = jnp.swapaxes(params['wc'], 1, 2)                         # [M,1,H]

    bfp = lambda n: pad_m(params[n].astype(bf16))   # big weights -> bf16
    fpp = lambda n: pad_m(params[n].astype(f32))    # biases / LN params -> f32

    in_arrays = [
        pad_m(xw), pad_m(pe),
        bfp('wq'), fpp('bq'), bfp('wk'), fpp('bk'), bfp('wv'), fpp('bv'),
        bfp('wo'), fpp('bo'), fpp('g1'), fpp('be1'),
        bfp('w1'), fpp('b1'), bfp('w2'), fpp('b2'), fpp('g2'), fpp('be2'),
        bfp('wp'), fpp('bp'), pad_m(wc_row.astype(f32)), fpp('bc'),
    ]

    def spec(a):
        nd = a.ndim
        return pl.BlockSpec((Km,) + tuple(a.shape[1:]),
                            lambda m, _nd=nd: (m,) + (0,) * (_nd - 1))

    block_bytes = sum(Km * math.prod(a.shape[1:]) * a.dtype.itemsize
                      for a in in_arrays) + B * Km * 4
    vmem_limit = int(min(max(2 * block_bytes + (4 << 20), 16 << 20), 64 << 20))

    out = pl.pallas_call(
        _bert_block_kernel,
        out_shape=jax.ShapeDtypeStruct((G, B, Km), f32),
        grid_spec=pltpu.PrefetchScalarGridSpec(
            num_scalar_prefetch=0,
            grid=(G,),
            in_specs=[spec(a) for a in in_arrays],
            out_specs=pl.BlockSpec((1, B, Km), lambda m: (m, 0, 0)),
        ),
        compiler_params=pltpu.CompilerParams(
            dimension_semantics=("parallel",),
            vmem_limit_bytes=vmem_limit),
    )(*in_arrays)

    # [G, B, Km] -> [B, G*Km] -> drop model padding -> [B, M]
    return jnp.transpose(out, (1, 0, 2)).reshape(B, Mp)[:, :M]


# ---------------------------------------------------------------------------
# Deterministic parameter initialization (synthetic, no checkpoint load)
# ---------------------------------------------------------------------------
def init_params(key, *, num_models, vocab, max_length, hidden, ffn):
    M, V, S, H, F = num_models, vocab, max_length, hidden, ffn
    names_shapes = {
        'word_emb': (M, V, H),
        'pos_emb':  (M, S, H),
        'wq': (M, H, H), 'bq': (M, 1, H),
        'wk': (M, H, H), 'bk': (M, 1, H),
        'wv': (M, H, H), 'bv': (M, 1, H),
        'wo': (M, H, H), 'bo': (M, 1, H),
        'w1': (M, H, F), 'b1': (M, 1, F),
        'w2': (M, F, H), 'b2': (M, 1, H),
        'wp': (M, H, H), 'bp': (M, 1, H),
        'wc': (M, H, 1), 'bc': (M, 1, 1),
    }
    params = {}
    keys = jax.random.split(key, len(names_shapes))
    for k, (name, shape) in zip(keys, names_shapes.items()):
        params[name] = (0.05 * jax.random.normal(k, shape)).astype(jnp.float32)
    # LayerNorm scales ~1, shifts ~0
    params['g1'] = jnp.ones((M, 1, H), jnp.float32)
    params['be1'] = jnp.zeros((M, 1, H), jnp.float32)
    params['g2'] = jnp.ones((M, 1, H), jnp.float32)
    params['be2'] = jnp.zeros((M, 1, H), jnp.float32)
    return params


# ---------------------------------------------------------------------------
# Pure-JAX reference (mirrors the kernel math incl. bf16 casts) for sanity
# ---------------------------------------------------------------------------
def reference_forward(ids, params):
    f32, bf16 = jnp.float32, jnp.bfloat16
    M, V, H = params['word_emb'].shape
    B, S = ids.shape
    xw_all = jnp.take(params['word_emb'], ids, axis=1).astype(bf16)   # [M,B,S,H]
    outs = []
    for m in range(M):
        g = lambda n: params[n][m].astype(f32)
        gb = lambda n: params[n][m].astype(bf16)
        x = (xw_all[m].astype(f32)
             + params['pos_emb'][m, :S, :].astype(bf16).astype(f32)[None])
        xb = x.reshape(B * S, H).astype(bf16)
        k = (jnp.dot(xb, gb('wk'), preferred_element_type=f32) + g('bk')).reshape(B, S, H)
        v = (jnp.dot(xb, gb('wv'), preferred_element_type=f32) + g('bv')).reshape(B, S, H)
        x_cls = x[:, 0, :]
        q = jnp.dot(x_cls.astype(bf16), gb('wq'), preferred_element_type=f32) + g('bq')
        s = jnp.sum(q[:, None, :] * k, axis=-1) / math.sqrt(H)
        a = jax.nn.softmax(s, axis=-1)
        ctx = jnp.sum(a[:, :, None] * v, axis=1)
        ao = jnp.dot(ctx.astype(bf16), gb('wo'), preferred_element_type=f32) + g('bo')
        h1 = _layernorm(x_cls + ao, g('g1'), g('be1'))
        ff = jax.nn.gelu(jnp.dot(h1.astype(bf16), gb('w1'),
                                 preferred_element_type=f32) + g('b1'),
                         approximate=True)
        ff = jnp.dot(ff.astype(bf16), gb('w2'), preferred_element_type=f32) + g('b2')
        h2 = _layernorm(h1 + ff, g('g2'), g('be2'))
        pooled = jnp.tanh(jnp.dot(h2.astype(bf16), gb('wp'),
                                  preferred_element_type=f32) + g('bp'))
        outs.append(jnp.dot(pooled, g('wc')) + g('bc'))               # [B,1]
    return jnp.concatenate(outs, axis=1)                              # [B,M]


if __name__ == "__main__":
    # Small shapes consistent with the module: M target columns, seq=max_length.
    B, S, H, F, M, V = 2, 8, 32, 64, 3, 64

    key = jax.random.PRNGKey(0)
    k_ids, k_params = jax.random.split(key)
    ids = jax.random.randint(k_ids, (B, S), 0, V, dtype=jnp.int32)
    params = init_params(k_params, num_models=M, vocab=V,
                         max_length=S, hidden=H, ffn=F)

    out = jax.block_until_ready(many_single_class_bert_forward(ids, params))
    ref = jax.block_until_ready(reference_forward(ids, params))

    assert out.shape == (B, M), out.shape
    assert jnp.allclose(out, ref, atol=2e-3, rtol=2e-2), (out, ref)

    print("KERNEL_OK")
</pallas_src>

<mosaic_0001>
module attributes {stable_mosaic.version = 11 : i64} {
  func.func @_bert_block_kernel(%arg0: i32, %arg1: memref<3x2x8x32xbf16, #tpu.memory_space<vmem>>, %arg2: memref<3x8x32xbf16, #tpu.memory_space<vmem>>, %arg3: memref<3x32x32xbf16, #tpu.memory_space<vmem>>, %arg4: memref<3x1x32xf32, #tpu.memory_space<vmem>>, %arg5: memref<3x32x32xbf16, #tpu.memory_space<vmem>>, %arg6: memref<3x1x32xf32, #tpu.memory_space<vmem>>, %arg7: memref<3x32x32xbf16, #tpu.memory_space<vmem>>, %arg8: memref<3x1x32xf32, #tpu.memory_space<vmem>>, %arg9: memref<3x32x32xbf16, #tpu.memory_space<vmem>>, %arg10: memref<3x1x32xf32, #tpu.memory_space<vmem>>, %arg11: memref<3x1x32xf32, #tpu.memory_space<vmem>>, %arg12: memref<3x1x32xf32, #tpu.memory_space<vmem>>, %arg13: memref<3x32x64xbf16, #tpu.memory_space<vmem>>, %arg14: memref<3x1x64xf32, #tpu.memory_space<vmem>>, %arg15: memref<3x64x32xbf16, #tpu.memory_space<vmem>>, %arg16: memref<3x1x32xf32, #tpu.memory_space<vmem>>, %arg17: memref<3x1x32xf32, #tpu.memory_space<vmem>>, %arg18: memref<3x1x32xf32, #tpu.memory_space<vmem>>, %arg19: memref<3x32x32xbf16, #tpu.memory_space<vmem>>, %arg20: memref<3x1x32xf32, #tpu.memory_space<vmem>>, %arg21: memref<3x1x32xf32, #tpu.memory_space<vmem>>, %arg22: memref<3x1x1xf32, #tpu.memory_space<vmem>>, %arg23: memref<1x2x3xf32, #tpu.memory_space<vmem>>) attributes {dimension_semantics = [#tpu.dimension_semantics<parallel>], iteration_bounds = array<i64: 1>, scalar_prefetch = 0 : i64, scratch_operands = 0 : i64, tpu.core_type = #tpu.core_type<tc>, window_params = [{transform_indices = @transform_0, window_bounds = array<i64: 3, 2, 8, 32>}, {transform_indices = @transform_1, window_bounds = array<i64: 3, 8, 32>}, {transform_indices = @transform_2, window_bounds = array<i64: 3, 32, 32>}, {transform_indices = @transform_3, window_bounds = array<i64: 3, 1, 32>}, {transform_indices = @transform_4, window_bounds = array<i64: 3, 32, 32>}, {transform_indices = @transform_5, window_bounds = array<i64: 3, 1, 32>}, {transform_indices = @transform_6, window_bounds = array<i64: 3, 32, 32>}, {transform_indices = @transform_7, window_bounds = array<i64: 3, 1, 32>}, {transform_indices = @transform_8, window_bounds = array<i64: 3, 32, 32>}, {transform_indices = @transform_9, window_bounds = array<i64: 3, 1, 32>}, {transform_indices = @transform_10, window_bounds = array<i64: 3, 1, 32>}, {transform_indices = @transform_11, window_bounds = array<i64: 3, 1, 32>}, {transform_indices = @transform_12, window_bounds = array<i64: 3, 32, 64>}, {transform_indices = @transform_13, window_bounds = array<i64: 3, 1, 64>}, {transform_indices = @transform_14, window_bounds = array<i64: 3, 64, 32>}, {transform_indices = @transform_15, window_bounds = array<i64: 3, 1, 32>}, {transform_indices = @transform_16, window_bounds = array<i64: 3, 1, 32>}, {transform_indices = @transform_17, window_bounds = array<i64: 3, 1, 32>}, {transform_indices = @transform_18, window_bounds = array<i64: 3, 32, 32>}, {transform_indices = @transform_19, window_bounds = array<i64: 3, 1, 32>}, {transform_indices = @transform_20, window_bounds = array<i64: 3, 1, 32>}, {transform_indices = @transform_21, window_bounds = array<i64: 3, 1, 1>}, {transform_indices = @transform_22, window_bounds = array<i64: 1, 2, 3>}]} {
    %c0 = arith.constant 0 : index
    %c0_0 = arith.constant 0 : index
    %c0_1 = arith.constant 0 : index
    %c0_2 = arith.constant 0 : index
    %0 = vector.load %arg1[%c0, %c0_0, %c0_1, %c0_2] : memref<3x2x8x32xbf16, #tpu.memory_space<vmem>>, vector<1x2x8x32xbf16>
    %1 = vector.shape_cast %0 : vector<1x2x8x32xbf16> to vector<2x8x32xbf16>
    %2 = arith.extf %1 : vector<2x8x32xbf16> to vector<2x8x32xf32>
    %c0_3 = arith.constant 0 : index
    %c0_4 = arith.constant 0 : index
    %c0_5 = arith.constant 0 : index
    %3 = vector.load %arg2[%c0_3, %c0_4, %c0_5] : memref<3x8x32xbf16, #tpu.memory_space<vmem>>, vector<1x8x32xbf16>
    %4 = vector.shape_cast %3 : vector<1x8x32xbf16> to vector<8x32xbf16>
    %5 = arith.extf %4 : vector<8x32xbf16> to vector<8x32xf32>
    %6 = vector.shape_cast %5 : vector<8x32xf32> to vector<1x8x32xf32>
    %7 = vector.broadcast %6 : vector<1x8x32xf32> to vector<2x8x32xf32>
    %8 = arith.addf %2, %7 : vector<2x8x32xf32>
    %9 = vector.shape_cast %8 : vector<2x8x32xf32> to vector<16x32xf32>
    %10 = arith.truncf %9 : vector<16x32xf32> to vector<16x32xbf16>
    %c0_6 = arith.constant 0 : index
    %c0_7 = arith.constant 0 : index
    %c0_8 = arith.constant 0 : index
    %11 = vector.load %arg5[%c0_6, %c0_7, %c0_8] : memref<3x32x32xbf16, #tpu.memory_space<vmem>>, vector<1x32x32xbf16>
    %12 = vector.shape_cast %11 : vector<1x32x32xbf16> to vector<32x32xbf16>
    %cst = arith.constant dense<0.000000e+00> : vector<16x32xf32>
    %13 = tpu.matmul %10, %12, %cst {dimension_numbers = #tpu.dot_dimension_numbers<[1], [0], [0], [1], [0, 0, 1, 1], [], []>} : vector<16x32xbf16>, vector<32x32xbf16>, vector<16x32xf32> -> vector<16x32xf32>
    %c0_9 = arith.constant 0 : index
    %c0_10 = arith.constant 0 : index
    %c0_11 = arith.constant 0 : index
    %14 = vector.load %arg6[%c0_9, %c0_10, %c0_11] : memref<3x1x32xf32, #tpu.memory_space<vmem>>, vector<1x1x32xf32>
    %15 = vector.shape_cast %14 : vector<1x1x32xf32> to vector<1x32xf32>
    %16 = vector.broadcast %15 : vector<1x32xf32> to vector<16x32xf32>
    %17 = arith.addf %13, %16 : vector<16x32xf32>
    %18 = vector.shape_cast %17 : vector<16x32xf32> to vector<2x8x32xf32>
    %c0_12 = arith.constant 0 : index
    %c0_13 = arith.constant 0 : index
    %c0_14 = arith.constant 0 : index
    %19 = vector.load %arg7[%c0_12, %c0_13, %c0_14] : memref<3x32x32xbf16, #tpu.memory_space<vmem>>, vector<1x32x32xbf16>
    %20 = vector.shape_cast %19 : vector<1x32x32xbf16> to vector<32x32xbf16>
    %cst_15 = arith.constant dense<0.000000e+00> : vector<16x32xf32>
    %21 = tpu.matmul %10, %20, %cst_15 {dimension_numbers = #tpu.dot_dimension_numbers<[1], [0], [0], [1], [0, 0, 1, 1], [], []>} : vector<16x32xbf16>, vector<32x32xbf16>, vector<16x32xf32> -> vector<16x32xf32>
    %c0_16 = arith.constant 0 : index
    %c0_17 = arith.constant 0 : index
    %c0_18 = arith.constant 0 : index
    %22 = vector.load %arg8[%c0_16, %c0_17, %c0_18] : memref<3x1x32xf32, #tpu.memory_space<vmem>>, vector<1x1x32xf32>
    %23 = vector.shape_cast %22 : vector<1x1x32xf32> to vector<1x32xf32>
    %24 = vector.broadcast %23 : vector<1x32xf32> to vector<16x32xf32>
    %25 = arith.addf %21, %24 : vector<16x32xf32>
    %26 = vector.shape_cast %25 : vector<16x32xf32> to vector<2x8x32xf32>
    %27 = vector.extract_strided_slice %8 {offsets = [0, 0, 0], sizes = [2, 1, 32], strides = [1, 1, 1]} : vector<2x8x32xf32> to vector<2x1x32xf32>
    %28 = vector.shape_cast %27 : vector<2x1x32xf32> to vector<2x32xf32>
    %29 = arith.truncf %28 : vector<2x32xf32> to vector<2x32xbf16>
    %c0_19 = arith.constant 0 : index
    %c0_20 = arith.constant 0 : index
    %c0_21 = arith.constant 0 : index
    %30 = vector.load %arg3[%c0_19, %c0_20, %c0_21] : memref<3x32x32xbf16, #tpu.memory_space<vmem>>, vector<1x32x32xbf16>
    %31 = vector.shape_cast %30 : vector<1x32x32xbf16> to vector<32x32xbf16>
    %cst_22 = arith.constant dense<0.000000e+00> : vector<2x32xf32>
    %32 = tpu.matmul %29, %31, %cst_22 {dimension_numbers = #tpu.dot_dimension_numbers<[1], [0], [0], [1], [0, 0, 1, 1], [], []>} : vector<2x32xbf16>, vector<32x32xbf16>, vector<2x32xf32> -> vector<2x32xf32>
    %c0_23 = arith.constant 0 : index
    %c0_24 = arith.constant 0 : index
    %c0_25 = arith.constant 0 : index
    %33 = vector.load %arg4[%c0_23, %c0_24, %c0_25] : memref<3x1x32xf32, #tpu.memory_space<vmem>>, vector<1x1x32xf32>
    %34 = vector.shape_cast %33 : vector<1x1x32xf32> to vector<1x32xf32>
    %35 = vector.broadcast %34 : vector<1x32xf32> to vector<2x32xf32>
    %36 = arith.addf %32, %35 : vector<2x32xf32>
    %37 = vector.shape_cast %36 : vector<2x32xf32> to vector<2x1x32xf32>
    %38 = vector.broadcast %37 : vector<2x1x32xf32> to vector<2x8x32xf32>
    %39 = arith.mulf %38, %18 : vector<2x8x32xf32>
    %cst_26 = arith.constant dense<0.000000e+00> : vector<2x8xf32>
    %40 = vector.multi_reduction <add>, %39, %cst_26 [2] : vector<2x8x32xf32> to vector<2x8xf32>
    %cst_27 = arith.constant 0.176776692 : f32
    %41 = vector.broadcast %cst_27 : f32 to vector<2x8xf32>
    %42 = arith.mulf %40, %41 : vector<2x8xf32>
    %cst_28 = arith.constant dense<0xFF800000> : vector<2xf32>
    %43 = vector.multi_reduction <maximumf>, %42, %cst_28 [1] : vector<2x8xf32> to vector<2xf32>
    %44 = vector.shape_cast %43 : vector<2xf32> to vector<2x1xf32>
    %45 = vector.broadcast %44 : vector<2x1xf32> to vector<2x8xf32>
    %46 = arith.subf %42, %45 : vector<2x8xf32>
    %47 = math.exp %46 : vector<2x8xf32>
    %cst_29 = arith.constant dense<0.000000e+00> : vector<2xf32>
    %48 = vector.multi_reduction <add>, %47, %cst_29 [1] : vector<2x8xf32> to vector<2xf32>
    %49 = vector.shape_cast %48 : vector<2xf32> to vector<2x1xf32>
    %50 = tpu.reciprocal %49 {approx = true} : vector<2x1xf32> -> vector<2x1xf32>
    %51 = vector.broadcast %50 : vector<2x1xf32> to vector<2x8xf32>
    %52 = arith.mulf %47, %51 : vector<2x8xf32>
    %53 = vector.shape_cast %52 : vector<2x8xf32> to vector<2x8x1xf32>
    %54 = vector.broadcast %53 : vector<2x8x1xf32> to vector<2x8x32xf32>
    %55 = arith.mulf %54, %26 : vector<2x8x32xf32>
    %cst_30 = arith.constant dense<0.000000e+00> : vector<2x32xf32>
    %56 = vector.multi_reduction <add>, %55, %cst_30 [1] : vector<2x8x32xf32> to vector<2x32xf32>
    %57 = arith.truncf %56 : vector<2x32xf32> to vector<2x32xbf16>
    %c0_31 = arith.constant 0 : index
    %c0_32 = arith.constant 0 : index
    %c0_33 = arith.constant 0 : index
    %58 = vector.load %arg9[%c0_31, %c0_32, %c0_33] : memref<3x32x32xbf16, #tpu.memory_space<vmem>>, vector<1x32x32xbf16>
    %59 = vector.shape_cast %58 : vector<1x32x32xbf16> to vector<32x32xbf16>
    %cst_34 = arith.constant dense<0.000000e+00> : vector<2x32xf32>
    %60 = tpu.matmul %57, %59, %cst_34 {dimension_numbers = #tpu.dot_dimension_numbers<[1], [0], [0], [1], [0, 0, 1, 1], [], []>} : vector<2x32xbf16>, vector<32x32xbf16>, vector<2x32xf32> -> vector<2x32xf32>
    %c0_35 = arith.constant 0 : index
    %c0_36 = arith.constant 0 : index
    %c0_37 = arith.constant 0 : index
    %61 = vector.load %arg10[%c0_35, %c0_36, %c0_37] : memref<3x1x32xf32, #tpu.memory_space<vmem>>, vector<1x1x32xf32>
    %62 = vector.shape_cast %61 : vector<1x1x32xf32> to vector<1x32xf32>
    %63 = vector.broadcast %62 : vector<1x32xf32> to vector<2x32xf32>
    %64 = arith.addf %60, %63 : vector<2x32xf32>
    %65 = arith.addf %28, %64 : vector<2x32xf32>
    %c0_38 = arith.constant 0 : index
    %c0_39 = arith.constant 0 : index
    %c0_40 = arith.constant 0 : index
    %66 = vector.load %arg11[%c0_38, %c0_39, %c0_40] : memref<3x1x32xf32, #tpu.memory_space<vmem>>, vector<1x1x32xf32>
    %67 = vector.shape_cast %66 : vector<1x1x32xf32> to vector<1x32xf32>
    %c0_41 = arith.constant 0 : index
    %c0_42 = arith.constant 0 : index
    %c0_43 = arith.constant 0 : index
    %68 = vector.load %arg12[%c0_41, %c0_42, %c0_43] : memref<3x1x32xf32, #tpu.memory_space<vmem>>, vector<1x1x32xf32>
    %69 = vector.shape_cast %68 : vector<1x1x32xf32> to vector<1x32xf32>
    %cst_44 = arith.constant dense<0.000000e+00> : vector<2xf32>
    %70 = vector.multi_reduction <add>, %65, %cst_44 [1] : vector<2x32xf32> to vector<2xf32>
    %71 = vector.shape_cast %70 : vector<2xf32> to vector<2x1xf32>
    %cst_45 = arith.constant 3.200000e+01 : f32
    %72 = vector.broadcast %cst_45 : f32 to vector<2x1xf32>
    %73 = arith.divf %71, %72 : vector<2x1xf32>
    %74 = vector.broadcast %73 : vector<2x1xf32> to vector<2x32xf32>
    %75 = arith.subf %65, %74 : vector<2x32xf32>
    %76 = arith.mulf %75, %75 : vector<2x32xf32>
    %cst_46 = arith.constant dense<0.000000e+00> : vector<2xf32>
    %77 = vector.multi_reduction <add>, %76, %cst_46 [1] : vector<2x32xf32> to vector<2xf32>
    %78 = vector.shape_cast %77 : vector<2xf32> to vector<2x1xf32>
    %cst_47 = arith.constant 3.200000e+01 : f32
    %79 = vector.broadcast %cst_47 : f32 to vector<2x1xf32>
    %80 = arith.divf %78, %79 : vector<2x1xf32>
    %81 = vector.broadcast %73 : vector<2x1xf32> to vector<2x32xf32>
    %82 = arith.subf %65, %81 : vector<2x32xf32>
    %cst_48 = arith.constant 9.99999996E-13 : f32
    %83 = vector.broadcast %cst_48 : f32 to vector<2x1xf32>
    %84 = arith.addf %80, %83 : vector<2x1xf32>
    %85 = math.rsqrt %84 : vector<2x1xf32>
    %86 = vector.broadcast %85 : vector<2x1xf32> to vector<2x32xf32>
    %87 = arith.mulf %82, %86 : vector<2x32xf32>
    %88 = vector.broadcast %67 : vector<1x32xf32> to vector<2x32xf32>
    %89 = arith.mulf %87, %88 : vector<2x32xf32>
    %90 = vector.broadcast %69 : vector<1x32xf32> to vector<2x32xf32>
    %91 = arith.addf %89, %90 : vector<2x32xf32>
    %92 = arith.truncf %91 : vector<2x32xf32> to vector<2x32xbf16>
    %c0_49 = arith.constant 0 : index
    %c0_50 = arith.constant 0 : index
    %c0_51 = arith.constant 0 : index
    %93 = vector.load %arg13[%c0_49, %c0_50, %c0_51] : memref<3x32x64xbf16, #tpu.memory_space<vmem>>, vector<1x32x64xbf16>
    %94 = vector.shape_cast %93 : vector<1x32x64xbf16> to vector<32x64xbf16>
    %cst_52 = arith.constant dense<0.000000e+00> : vector<2x64xf32>
    %95 = tpu.matmul %92, %94, %cst_52 {dimension_numbers = #tpu.dot_dimension_numbers<[1], [0], [0], [1], [0, 0, 1, 1], [], []>} : vector<2x32xbf16>, vector<32x64xbf16>, vector<2x64xf32> -> vector<2x64xf32>
    %c0_53 = arith.constant 0 : index
    %c0_54 = arith.constant 0 : index
    %c0_55 = arith.constant 0 : index
    %96 = vector.load %arg14[%c0_53, %c0_54, %c0_55] : memref<3x1x64xf32, #tpu.memory_space<vmem>>, vector<1x1x64xf32>
    %97 = vector.shape_cast %96 : vector<1x1x64xf32> to vector<1x64xf32>
    %98 = vector.broadcast %97 : vector<1x64xf32> to vector<2x64xf32>
    %99 = arith.addf %95, %98 : vector<2x64xf32>
    %100 = arith.mulf %99, %99 : vector<2x64xf32>
    %101 = arith.mulf %99, %100 : vector<2x64xf32>
    %cst_56 = arith.constant 4.471500e-02 : f32
    %102 = vector.broadcast %cst_56 : f32 to vector<2x64xf32>
    %103 = arith.mulf %102, %101 : vector<2x64xf32>
    %104 = arith.addf %99, %103 : vector<2x64xf32>
    %cst_57 = arith.constant 0.797884583 : f32
    %105 = vector.broadcast %cst_57 : f32 to vector<2x64xf32>
    %106 = arith.mulf %105, %104 : vector<2x64xf32>
    %107 = math.tanh %106 : vector<2x64xf32>
    %cst_58 = arith.constant 1.000000e+00 : f32
    %108 = vector.broadcast %cst_58 : f32 to vector<2x64xf32>
    %109 = arith.addf %108, %107 : vector<2x64xf32>
    %cst_59 = arith.constant 5.000000e-01 : f32
    %110 = vector.broadcast %cst_59 : f32 to vector<2x64xf32>
    %111 = arith.mulf %110, %109 : vector<2x64xf32>
    %112 = arith.mulf %99, %111 : vector<2x64xf32>
    %113 = arith.truncf %112 : vector<2x64xf32> to vector<2x64xbf16>
    %c0_60 = arith.constant 0 : index
    %c0_61 = arith.constant 0 : index
    %c0_62 = arith.constant 0 : index
    %114 = vector.load %arg15[%c0_60, %c0_61, %c0_62] : memref<3x64x32xbf16, #tpu.memory_space<vmem>>, vector<1x64x32xbf16>
    %115 = vector.shape_cast %114 : vector<1x64x32xbf16> to vector<64x32xbf16>
    %cst_63 = arith.constant dense<0.000000e+00> : vector<2x32xf32>
    %116 = tpu.matmul %113, %115, %cst_63 {dimension_numbers = #tpu.dot_dimension_numbers<[1], [0], [0], [1], [0, 0, 1, 1], [], []>} : vector<2x64xbf16>, vector<64x32xbf16>, vector<2x32xf32> -> vector<2x32xf32>
    %c0_64 = arith.constant 0 : index
    %c0_65 = arith.constant 0 : index
    %c0_66 = arith.constant 0 : index
    %117 = vector.load %arg16[%c0_64, %c0_65, %c0_66] : memref<3x1x32xf32, #tpu.memory_space<vmem>>, vector<1x1x32xf32>
    %118 = vector.shape_cast %117 : vector<1x1x32xf32> to vector<1x32xf32>
    %119 = vector.broadcast %118 : vector<1x32xf32> to vector<2x32xf32>
    %120 = arith.addf %116, %119 : vector<2x32xf32>
    %121 = arith.addf %91, %120 : vector<2x32xf32>
    %c0_67 = arith.constant 0 : index
    %c0_68 = arith.constant 0 : index
    %c0_69 = arith.constant 0 : index
    %122 = vector.load %arg17[%c0_67, %c0_68, %c0_69] : memref<3x1x32xf32, #tpu.memory_space<vmem>>, vector<1x1x32xf32>
    %123 = vector.shape_cast %122 : vector<1x1x32xf32> to vector<1x32xf32>
    %c0_70 = arith.constant 0 : index
    %c0_71 = arith.constant 0 : index
    %c0_72 = arith.constant 0 : index
    %124 = vector.load %arg18[%c0_70, %c0_71, %c0_72] : memref<3x1x32xf32, #tpu.memory_space<vmem>>, vector<1x1x32xf32>
    %125 = vector.shape_cast %124 : vector<1x1x32xf32> to vector<1x32xf32>
    %cst_73 = arith.constant dense<0.000000e+00> : vector<2xf32>
    %126 = vector.multi_reduction <add>, %121, %cst_73 [1] : vector<2x32xf32> to vector<2xf32>
    %127 = vector.shape_cast %126 : vector<2xf32> to vector<2x1xf32>
    %cst_74 = arith.constant 3.200000e+01 : f32
    %128 = vector.broadcast %cst_74 : f32 to vector<2x1xf32>
    %129 = arith.divf %127, %128 : vector<2x1xf32>
    %130 = vector.broadcast %129 : vector<2x1xf32> to vector<2x32xf32>
    %131 = arith.subf %121, %130 : vector<2x32xf32>
    %132 = arith.mulf %131, %131 : vector<2x32xf32>
    %cst_75 = arith.constant dense<0.000000e+00> : vector<2xf32>
    %133 = vector.multi_reduction <add>, %132, %cst_75 [1] : vector<2x32xf32> to vector<2xf32>
    %134 = vector.shape_cast %133 : vector<2xf32> to vector<2x1xf32>
    %cst_76 = arith.constant 3.200000e+01 : f32
    %135 = vector.broadcast %cst_76 : f32 to vector<2x1xf32>
    %136 = arith.divf %134, %135 : vector<2x1xf32>
    %137 = vector.broadcast %129 : vector<2x1xf32> to vector<2x32xf32>
    %138 = arith.subf %121, %137 : vector<2x32xf32>
    %cst_77 = arith.constant 9.99999996E-13 : f32
    %139 = vector.broadcast %cst_77 : f32 to vector<2x1xf32>
    %140 = arith.addf %136, %139 : vector<2x1xf32>
    %141 = math.rsqrt %140 : vector<2x1xf32>
    %142 = vector.broadcast %141 : vector<2x1xf32> to vector<2x32xf32>
    %143 = arith.mulf %138, %142 : vector<2x32xf32>
    %144 = vector.broadcast %123 : vector<1x32xf32> to vector<2x32xf32>
    %145 = arith.mulf %143, %144 : vector<2x32xf32>
    %146 = vector.broadcast %125 : vector<1x32xf32> to vector<2x32xf32>
    %147 = arith.addf %145, %146 : vector<2x32xf32>
    %148 = arith.truncf %147 : vector<2x32xf32> to vector<2x32xbf16>
    %c0_78 = arith.constant 0 : index
    %c0_79 = arith.constant 0 : index
    %c0_80 = arith.constant 0 : index
    %149 = vector.load %arg19[%c0_78, %c0_79, %c0_80] : memref<3x32x32xbf16, #tpu.memory_space<vmem>>, vector<1x32x32xbf16>
    %150 = vector.shape_cast %149 : vector<1x32x32xbf16> to vector<32x32xbf16>
    %cst_81 = arith.constant dense<0.000000e+00> : vector<2x32xf32>
    %151 = tpu.matmul %148, %150, %cst_81 {dimension_numbers = #tpu.dot_dimension_numbers<[1], [0], [0], [1], [0, 0, 1, 1], [], []>} : vector<2x32xbf16>, vector<32x32xbf16>, vector<2x32xf32> -> vector<2x32xf32>
    %c0_82 = arith.constant 0 : index
    %c0_83 = arith.constant 0 : index
    %c0_84 = arith.constant 0 : index
    %152 = vector.load %arg20[%c0_82, %c0_83, %c0_84] : memref<3x1x32xf32, #tpu.memory_space<vmem>>, vector<1x1x32xf32>
    %153 = vector.shape_cast %152 : vector<1x1x32xf32> to vector<1x32xf32>
    %154 = vector.broadcast %153 : vector<1x32xf32> to vector<2x32xf32>
    %155 = arith.addf %151, %154 : vector<2x32xf32>
    %156 = math.tanh %155 : vector<2x32xf32>
    %c0_85 = arith.constant 0 : index
    %c0_86 = arith.constant 0 : index
    %c0_87 = arith.constant 0 : index
    %157 = vector.load %arg21[%c0_85, %c0_86, %c0_87] : memref<3x1x32xf32, #tpu.memory_space<vmem>>, vector<1x1x32xf32>
    %158 = vector.shape_cast %157 : vector<1x1x32xf32> to vector<1x32xf32>
    %159 = vector.broadcast %158 : vector<1x32xf32> to vector<2x32xf32>
    %160 = arith.mulf %156, %159 : vector<2x32xf32>
    %cst_88 = arith.constant dense<0.000000e+00> : vector<2xf32>
    %161 = vector.multi_reduction <add>, %160, %cst_88 [1] : vector<2x32xf32> to vector<2xf32>
    %162 = vector.shape_cast %161 : vector<2xf32> to vector<2x1xf32>
    %c0_89 = arith.constant 0 : index
    %c0_90 = arith.constant 0 : index
    %c0_91 = arith.constant 0 : index
    %163 = vector.load %arg22[%c0_89, %c0_90, %c0_91] : memref<3x1x1xf32, #tpu.memory_space<vmem>>, vector<1x1x1xf32>
    %164 = vector.shape_cast %163 : vector<1x1x1xf32> to vector<1x1xf32>
    %165 = vector.broadcast %164 : vector<1x1xf32> to vector<2x1xf32>
    %166 = arith.addf %162, %165 : vector<2x1xf32>
    %c1 = arith.constant 1 : index
    %c0_92 = arith.constant 0 : index
    %c0_93 = arith.constant 0 : index
    %c0_94 = arith.constant 0 : index
    %167 = vector.load %arg1[%c1, %c0_92, %c0_93, %c0_94] : memref<3x2x8x32xbf16, #tpu.memory_space<vmem>>, vector<1x2x8x32xbf16>
    %168 = vector.shape_cast %167 : vector<1x2x8x32xbf16> to vector<2x8x32xbf16>
    %169 = arith.extf %168 : vector<2x8x32xbf16> to vector<2x8x32xf32>
    %c1_95 = arith.constant 1 : index
    %c0_96 = arith.constant 0 : index
    %c0_97 = arith.constant 0 : index
    %170 = vector.load %arg2[%c1_95, %c0_96, %c0_97] : memref<3x8x32xbf16, #tpu.memory_space<vmem>>, vector<1x8x32xbf16>
    %171 = vector.shape_cast %170 : vector<1x8x32xbf16> to vector<8x32xbf16>
    %172 = arith.extf %171 : vector<8x32xbf16> to vector<8x32xf32>
    %173 = vector.shape_cast %172 : vector<8x32xf32> to vector<1x8x32xf32>
    %174 = vector.broadcast %173 : vector<1x8x32xf32> to vector<2x8x32xf32>
    %175 = arith.addf %169, %174 : vector<2x8x32xf32>
    %176 = vector.shape_cast %175 : vector<2x8x32xf32> to vector<16x32xf32>
    %177 = arith.truncf %176 : vector<16x32xf32> to vector<16x32xbf16>
    %c1_98 = arith.constant 1 : index
    %c0_99 = arith.constant 0 : index
    %c0_100 = arith.constant 0 : index
    %178 = vector.load %arg5[%c1_98, %c0_99, %c0_100] : memref<3x32x32xbf16, #tpu.memory_space<vmem>>, vector<1x32x32xbf16>
    %179 = vector.shape_cast %178 : vector<1x32x32xbf16> to vector<32x32xbf16>
    %cst_101 = arith.constant dense<0.000000e+00> : vector<16x32xf32>
    %180 = tpu.matmul %177, %179, %cst_101 {dimension_numbers = #tpu.dot_dimension_numbers<[1], [0], [0], [1], [0, 0, 1, 1], [], []>} : vector<16x32xbf16>, vector<32x32xbf16>, vector<16x32xf32> -> vector<16x32xf32>
    %c1_102 = arith.constant 1 : index
    %c0_103 = arith.constant 0 : index
    %c0_104 = arith.constant 0 : index
    %181 = vector.load %arg6[%c1_102, %c0_103, %c0_104] : memref<3x1x32xf32, #tpu.memory_space<vmem>>, vector<1x1x32xf32>
    %182 = vector.shape_cast %181 : vector<1x1x32xf32> to vector<1x32xf32>
    %183 = vector.broadcast %182 : vector<1x32xf32> to vector<16x32xf32>
    %184 = arith.addf %180, %183 : vector<16x32xf32>
    %185 = vector.shape_cast %184 : vector<16x32xf32> to vector<2x8x32xf32>
    %c1_105 = arith.constant 1 : index
    %c0_106 = arith.constant 0 : index
    %c0_107 = arith.constant 0 : index
    %186 = vector.load %arg7[%c1_105, %c0_106, %c0_107] : memref<3x32x32xbf16, #tpu.memory_space<vmem>>, vector<1x32x32xbf16>
    %187 = vector.shape_cast %186 : vector<1x32x32xbf16> to vector<32x32xbf16>
    %cst_108 = arith.constant dense<0.000000e+00> : vector<16x32xf32>
    %188 = tpu.matmul %177, %187, %cst_108 {dimension_numbers = #tpu.dot_dimension_numbers<[1], [0], [0], [1], [0, 0, 1, 1], [], []>} : vector<16x32xbf16>, vector<32x32xbf16>, vector<16x32xf32> -> vector<16x32xf32>
    %c1_109 = arith.constant 1 : index
    %c0_110 = arith.constant 0 : index
    %c0_111 = arith.constant 0 : index
    %189 = vector.load %arg8[%c1_109, %c0_110, %c0_111] : memref<3x1x32xf32, #tpu.memory_space<vmem>>, vector<1x1x32xf32>
    %190 = vector.shape_cast %189 : vector<1x1x32xf32> to vector<1x32xf32>
    %191 = vector.broadcast %190 : vector<1x32xf32> to vector<16x32xf32>
    %192 = arith.addf %188, %191 : vector<16x32xf32>
    %193 = vector.shape_cast %192 : vector<16x32xf32> to vector<2x8x32xf32>
    %194 = vector.extract_strided_slice %175 {offsets = [0, 0, 0], sizes = [2, 1, 32], strides = [1, 1, 1]} : vector<2x8x32xf32> to vector<2x1x32xf32>
    %195 = vector.shape_cast %194 : vector<2x1x32xf32> to vector<2x32xf32>
    %196 = arith.truncf %195 : vector<2x32xf32> to vector<2x32xbf16>
    %c1_112 = arith.constant 1 : index
    %c0_113 = arith.constant 0 : index
    %c0_114 = arith.constant 0 : index
    %197 = vector.load %arg3[%c1_112, %c0_113, %c0_114] : memref<3x32x32xbf16, #tpu.memory_space<vmem>>, vector<1x32x32xbf16>
    %198 = vector.shape_cast %197 : vector<1x32x32xbf16> to vector<32x32xbf16>
    %cst_115 = arith.constant dense<0.000000e+00> : vector<2x32xf32>
    %199 = tpu.matmul %196, %198, %cst_115 {dimension_numbers = #tpu.dot_dimension_numbers<[1], [0], [0], [1], [0, 0, 1, 1], [], []>} : vector<2x32xbf16>, vector<32x32xbf16>, vector<2x32xf32> -> vector<2x32xf32>
    %c1_116 = arith.constant 1 : index
    %c0_117 = arith.constant 0 : index
    %c0_118 = arith.constant 0 : index
    %200 = vector.load %arg4[%c1_116, %c0_117, %c0_118] : memref<3x1x32xf32, #tpu.memory_space<vmem>>, vector<1x1x32xf32>
    %201 = vector.shape_cast %200 : vector<1x1x32xf32> to vector<1x32xf32>
    %202 = vector.broadcast %201 : vector<1x32xf32> to vector<2x32xf32>
    %203 = arith.addf %199, %202 : vector<2x32xf32>
    %204 = vector.shape_cast %203 : vector<2x32xf32> to vector<2x1x32xf32>
    %205 = vector.broadcast %204 : vector<2x1x32xf32> to vector<2x8x32xf32>
    %206 = arith.mulf %205, %185 : vector<2x8x32xf32>
    %cst_119 = arith.constant dense<0.000000e+00> : vector<2x8xf32>
    %207 = vector.multi_reduction <add>, %206, %cst_119 [2] : vector<2x8x32xf32> to vector<2x8xf32>
    %cst_120 = arith.constant 0.176776692 : f32
    %208 = vector.broadcast %cst_120 : f32 to vector<2x8xf32>
    %209 = arith.mulf %207, %208 : vector<2x8xf32>
    %cst_121 = arith.constant dense<0xFF800000> : vector<2xf32>
    %210 = vector.multi_reduction <maximumf>, %209, %cst_121 [1] : vector<2x8xf32> to vector<2xf32>
    %211 = vector.shape_cast %210 : vector<2xf32> to vector<2x1xf32>
    %212 = vector.broadcast %211 : vector<2x1xf32> to vector<2x8xf32>
    %213 = arith.subf %209, %212 : vector<2x8xf32>
    %214 = math.exp %213 : vector<2x8xf32>
    %cst_122 = arith.constant dense<0.000000e+00> : vector<2xf32>
    %215 = vector.multi_reduction <add>, %214, %cst_122 [1] : vector<2x8xf32> to vector<2xf32>
    %216 = vector.shape_cast %215 : vector<2xf32> to vector<2x1xf32>
    %217 = tpu.reciprocal %216 {approx = true} : vector<2x1xf32> -> vector<2x1xf32>
    %218 = vector.broadcast %217 : vector<2x1xf32> to vector<2x8xf32>
    %219 = arith.mulf %214, %218 : vector<2x8xf32>
    %220 = vector.shape_cast %219 : vector<2x8xf32> to vector<2x8x1xf32>
    %221 = vector.broadcast %220 : vector<2x8x1xf32> to vector<2x8x32xf32>
    %222 = arith.mulf %221, %193 : vector<2x8x32xf32>
    %cst_123 = arith.constant dense<0.000000e+00> : vector<2x32xf32>
    %223 = vector.multi_reduction <add>, %222, %cst_123 [1] : vector<2x8x32xf32> to vector<2x32xf32>
    %224 = arith.truncf %223 : vector<2x32xf32> to vector<2x32xbf16>
    %c1_124 = arith.constant 1 : index
    %c0_125 = arith.constant 0 : index
    %c0_126 = arith.constant 0 : index
    %225 = vector.load %arg9[%c1_124, %c0_125, %c0_126] : memref<3x32x32xbf16, #tpu.memory_space<vmem>>, vector<1x32x32xbf16>
    %226 = vector.shape_cast %225 : vector<1x32x32xbf16> to vector<32x32xbf16>
    %cst_127 = arith.constant dense<0.000000e+00> : vector<2x32xf32>
    %227 = tpu.matmul %224, %226, %cst_127 {dimension_numbers = #tpu.dot_dimension_numbers<[1], [0], [0], [1], [0, 0, 1, 1], [], []>} : vector<2x32xbf16>, vector<32x32xbf16>, vector<2x32xf32> -> vector<2x32xf32>
    %c1_128 = arith.constant 1 : index
    %c0_129 = arith.constant 0 : index
    %c0_130 = arith.constant 0 : index
    %228 = vector.load %arg10[%c1_128, %c0_129, %c0_130] : memref<3x1x32xf32, #tpu.memory_space<vmem>>, vector<1x1x32xf32>
    %229 = vector.shape_cast %228 : vector<1x1x32xf32> to vector<1x32xf32>
    %230 = vector.broadcast %229 : vector<1x32xf32> to vector<2x32xf32>
    %231 = arith.addf %227, %230 : vector<2x32xf32>
    %232 = arith.addf %195, %231 : vector<2x32xf32>
    %c1_131 = arith.constant 1 : index
    %c0_132 = arith.constant 0 : index
    %c0_133 = arith.constant 0 : index
    %233 = vector.load %arg11[%c1_131, %c0_132, %c0_133] : memref<3x1x32xf32, #tpu.memory_space<vmem>>, vector<1x1x32xf32>
    %234 = vector.shape_cast %233 : vector<1x1x32xf32> to vector<1x32xf32>
    %c1_134 = arith.constant 1 : index
    %c0_135 = arith.constant 0 : index
    %c0_136 = arith.constant 0 : index
    %235 = vector.load %arg12[%c1_134, %c0_135, %c0_136] : memref<3x1x32xf32, #tpu.memory_space<vmem>>, vector<1x1x32xf32>
    %236 = vector.shape_cast %235 : vector<1x1x32xf32> to vector<1x32xf32>
    %cst_137 = arith.constant dense<0.000000e+00> : vector<2xf32>
    %237 = vector.multi_reduction <add>, %232, %cst_137 [1] : vector<2x32xf32> to vector<2xf32>
    %238 = vector.shape_cast %237 : vector<2xf32> to vector<2x1xf32>
    %cst_138 = arith.constant 3.200000e+01 : f32
    %239 = vector.broadcast %cst_138 : f32 to vector<2x1xf32>
    %240 = arith.divf %238, %239 : vector<2x1xf32>
    %241 = vector.broadcast %240 : vector<2x1xf32> to vector<2x32xf32>
    %242 = arith.subf %232, %241 : vector<2x32xf32>
    %243 = arith.mulf %242, %242 : vector<2x32xf32>
    %cst_139 = arith.constant dense<0.000000e+00> : vector<2xf32>
    %244 = vector.multi_reduction <add>, %243, %cst_139 [1] : vector<2x32xf32> to vector<2xf32>
    %245 = vector.shape_cast %244 : vector<2xf32> to vector<2x1xf32>
    %cst_140 = arith.constant 3.200000e+01 : f32
    %246 = vector.broadcast %cst_140 : f32 to vector<2x1xf32>
    %247 = arith.divf %245, %246 : vector<2x1xf32>
    %248 = vector.broadcast %240 : vector<2x1xf32> to vector<2x32xf32>
    %249 = arith.subf %232, %248 : vector<2x32xf32>
    %cst_141 = arith.constant 9.99999996E-13 : f32
    %250 = vector.broadcast %cst_141 : f32 to vector<2x1xf32>
    %251 = arith.addf %247, %250 : vector<2x1xf32>
    %252 = math.rsqrt %251 : vector<2x1xf32>
    %253 = vector.broadcast %252 : vector<2x1xf32> to vector<2x32xf32>
    %254 = arith.mulf %249, %253 : vector<2x32xf32>
    %255 = vector.broadcast %234 : vector<1x32xf32> to vector<2x32xf32>
    %256 = arith.mulf %254, %255 : vector<2x32xf32>
    %257 = vector.broadcast %236 : vector<1x32xf32> to vector<2x32xf32>
    %258 = arith.addf %256, %257 : vector<2x32xf32>
    %259 = arith.truncf %258 : vector<2x32xf32> to vector<2x32xbf16>
    %c1_142 = arith.constant 1 : index
    %c0_143 = arith.constant 0 : index
    %c0_144 = arith.constant 0 : index
    %260 = vector.load %arg13[%c1_142, %c0_143, %c0_144] : memref<3x32x64xbf16, #tpu.memory_space<vmem>>, vector<1x32x64xbf16>
    %261 = vector.shape_cast %260 : vector<1x32x64xbf16> to vector<32x64xbf16>
    %cst_145 = arith.constant dense<0.000000e+00> : vector<2x64xf32>
    %262 = tpu.matmul %259, %261, %cst_145 {dimension_numbers = #tpu.dot_dimension_numbers<[1], [0], [0], [1], [0, 0, 1, 1], [], []>} : vector<2x32xbf16>, vector<32x64xbf16>, vector<2x64xf32> -> vector<2x64xf32>
    %c1_146 = arith.constant 1 : index
    %c0_147 = arith.constant 0 : index
    %c0_148 = arith.constant 0 : index
    %263 = vector.load %arg14[%c1_146, %c0_147, %c0_148] : memref<3x1x64xf32, #tpu.memory_space<vmem>>, vector<1x1x64xf32>
    %264 = vector.shape_cast %263 : vector<1x1x64xf32> to vector<1x64xf32>
    %265 = vector.broadcast %264 : vector<1x64xf32> to vector<2x64xf32>
    %266 = arith.addf %262, %265 : vector<2x64xf32>
    %267 = arith.mulf %266, %266 : vector<2x64xf32>
    %268 = arith.mulf %266, %267 : vector<2x64xf32>
    %cst_149 = arith.constant 4.471500e-02 : f32
    %269 = vector.broadcast %cst_149 : f32 to vector<2x64xf32>
    %270 = arith.mulf %269, %268 : vector<2x64xf32>
    %271 = arith.addf %266, %270 : vector<2x64xf32>
    %cst_150 = arith.constant 0.797884583 : f32
    %272 = vector.broadcast %cst_150 : f32 to vector<2x64xf32>
    %273 = arith.mulf %272, %271 : vector<2x64xf32>
    %274 = math.tanh %273 : vector<2x64xf32>
    %cst_151 = arith.constant 1.000000e+00 : f32
    %275 = vector.broadcast %cst_151 : f32 to vector<2x64xf32>
    %276 = arith.addf %275, %274 : vector<2x64xf32>
    %cst_152 = arith.constant 5.000000e-01 : f32
    %277 = vector.broadcast %cst_152 : f32 to vector<2x64xf32>
    %278 = arith.mulf %277, %276 : vector<2x64xf32>
    %279 = arith.mulf %266, %278 : vector<2x64xf32>
    %280 = arith.truncf %279 : vector<2x64xf32> to vector<2x64xbf16>
    %c1_153 = arith.constant 1 : index
    %c0_154 = arith.constant 0 : index
    %c0_155 = arith.constant 0 : index
    %281 = vector.load %arg15[%c1_153, %c0_154, %c0_155] : memref<3x64x32xbf16, #tpu.memory_space<vmem>>, vector<1x64x32xbf16>
    %282 = vector.shape_cast %281 : vector<1x64x32xbf16> to vector<64x32xbf16>
    %cst_156 = arith.constant dense<0.000000e+00> : vector<2x32xf32>
    %283 = tpu.matmul %280, %282, %cst_156 {dimension_numbers = #tpu.dot_dimension_numbers<[1], [0], [0], [1], [0, 0, 1, 1], [], []>} : vector<2x64xbf16>, vector<64x32xbf16>, vector<2x32xf32> -> vector<2x32xf32>
    %c1_157 = arith.constant 1 : index
    %c0_158 = arith.constant 0 : index
    %c0_159 = arith.constant 0 : index
    %284 = vector.load %arg16[%c1_157, %c0_158, %c0_159] : memref<3x1x32xf32, #tpu.memory_space<vmem>>, vector<1x1x32xf32>
    %285 = vector.shape_cast %284 : vector<1x1x32xf32> to vector<1x32xf32>
    %286 = vector.broadcast %285 : vector<1x32xf32> to vector<2x32xf32>
    %287 = arith.addf %283, %286 : vector<2x32xf32>
    %288 = arith.addf %258, %287 : vector<2x32xf32>
    %c1_160 = arith.constant 1 : index
    %c0_161 = arith.constant 0 : index
    %c0_162 = arith.constant 0 : index
    %289 = vector.load %arg17[%c1_160, %c0_161, %c0_162] : memref<3x1x32xf32, #tpu.memory_space<vmem>>, vector<1x1x32xf32>
    %290 = vector.shape_cast %289 : vector<1x1x32xf32> to vector<1x32xf32>
    %c1_163 = arith.constant 1 : index
    %c0_164 = arith.constant 0 : index
    %c0_165 = arith.constant 0 : index
    %291 = vector.load %arg18[%c1_163, %c0_164, %c0_165] : memref<3x1x32xf32, #tpu.memory_space<vmem>>, vector<1x1x32xf32>
    %292 = vector.shape_cast %291 : vector<1x1x32xf32> to vector<1x32xf32>
    %cst_166 = arith.constant dense<0.000000e+00> : vector<2xf32>
    %293 = vector.multi_reduction <add>, %288, %cst_166 [1] : vector<2x32xf32> to vector<2xf32>
    %294 = vector.shape_cast %293 : vector<2xf32> to vector<2x1xf32>
    %cst_167 = arith.constant 3.200000e+01 : f32
    %295 = vector.broadcast %cst_167 : f32 to vector<2x1xf32>
    %296 = arith.divf %294, %295 : vector<2x1xf32>
    %297 = vector.broadcast %296 : vector<2x1xf32> to vector<2x32xf32>
    %298 = arith.subf %288, %297 : vector<2x32xf32>
    %299 = arith.mulf %298, %298 : vector<2x32xf32>
    %cst_168 = arith.constant dense<0.000000e+00> : vector<2xf32>
    %300 = vector.multi_reduction <add>, %299, %cst_168 [1] : vector<2x32xf32> to vector<2xf32>
    %301 = vector.shape_cast %300 : vector<2xf32> to vector<2x1xf32>
    %cst_169 = arith.constant 3.200000e+01 : f32
    %302 = vector.broadcast %cst_169 : f32 to vector<2x1xf32>
    %303 = arith.divf %301, %302 : vector<2x1xf32>
    %304 = vector.broadcast %296 : vector<2x1xf32> to vector<2x32xf32>
    %305 = arith.subf %288, %304 : vector<2x32xf32>
    %cst_170 = arith.constant 9.99999996E-13 : f32
    %306 = vector.broadcast %cst_170 : f32 to vector<2x1xf32>
    %307 = arith.addf %303, %306 : vector<2x1xf32>
    %308 = math.rsqrt %307 : vector<2x1xf32>
    %309 = vector.broadcast %308 : vector<2x1xf32> to vector<2x32xf32>
    %310 = arith.mulf %305, %309 : vector<2x32xf32>
    %311 = vector.broadcast %290 : vector<1x32xf32> to vector<2x32xf32>
    %312 = arith.mulf %310, %311 : vector<2x32xf32>
    %313 = vector.broadcast %292 : vector<1x32xf32> to vector<2x32xf32>
    %314 = arith.addf %312, %313 : vector<2x32xf32>
    %315 = arith.truncf %314 : vector<2x32xf32> to vector<2x32xbf16>
    %c1_171 = arith.constant 1 : index
    %c0_172 = arith.constant 0 : index
    %c0_173 = arith.constant 0 : index
    %316 = vector.load %arg19[%c1_171, %c0_172, %c0_173] : memref<3x32x32xbf16, #tpu.memory_space<vmem>>, vector<1x32x32xbf16>
    %317 = vector.shape_cast %316 : vector<1x32x32xbf16> to vector<32x32xbf16>
    %cst_174 = arith.constant dense<0.000000e+00> : vector<2x32xf32>
    %318 = tpu.matmul %315, %317, %cst_174 {dimension_numbers = #tpu.dot_dimension_numbers<[1], [0], [0], [1], [0, 0, 1, 1], [], []>} : vector<2x32xbf16>, vector<32x32xbf16>, vector<2x32xf32> -> vector<2x32xf32>
    %c1_175 = arith.constant 1 : index
    %c0_176 = arith.constant 0 : index
    %c0_177 = arith.constant 0 : index
    %319 = vector.load %arg20[%c1_175, %c0_176, %c0_177] : memref<3x1x32xf32, #tpu.memory_space<vmem>>, vector<1x1x32xf32>
    %320 = vector.shape_cast %319 : vector<1x1x32xf32> to vector<1x32xf32>
    %321 = vector.broadcast %320 : vector<1x32xf32> to vector<2x32xf32>
    %322 = arith.addf %318, %321 : vector<2x32xf32>
    %323 = math.tanh %322 : vector<2x32xf32>
    %c1_178 = arith.constant 1 : index
    %c0_179 = arith.constant 0 : index
    %c0_180 = arith.constant 0 : index
    %324 = vector.load %arg21[%c1_178, %c0_179, %c0_180] : memref<3x1x32xf32, #tpu.memory_space<vmem>>, vector<1x1x32xf32>
    %325 = vector.shape_cast %324 : vector<1x1x32xf32> to vector<1x32xf32>
    %326 = vector.broadcast %325 : vector<1x32xf32> to vector<2x32xf32>
    %327 = arith.mulf %323, %326 : vector<2x32xf32>
    %cst_181 = arith.constant dense<0.000000e+00> : vector<2xf32>
    %328 = vector.multi_reduction <add>, %327, %cst_181 [1] : vector<2x32xf32> to vector<2xf32>
    %329 = vector.shape_cast %328 : vector<2xf32> to vector<2x1xf32>
    %c1_182 = arith.constant 1 : index
    %c0_183 = arith.constant 0 : index
    %c0_184 = arith.constant 0 : index
    %330 = vector.load %arg22[%c1_182, %c0_183, %c0_184] : memref<3x1x1xf32, #tpu.memory_space<vmem>>, vector<1x1x1xf32>
    %331 = vector.shape_cast %330 : vector<1x1x1xf32> to vector<1x1xf32>
    %332 = vector.broadcast %331 : vector<1x1xf32> to vector<2x1xf32>
    %333 = arith.addf %329, %332 : vector<2x1xf32>
    %c2 = arith.constant 2 : index
    %c0_185 = arith.constant 0 : index
    %c0_186 = arith.constant 0 : index
    %c0_187 = arith.constant 0 : index
    %334 = vector.load %arg1[%c2, %c0_185, %c0_186, %c0_187] : memref<3x2x8x32xbf16, #tpu.memory_space<vmem>>, vector<1x2x8x32xbf16>
    %335 = vector.shape_cast %334 : vector<1x2x8x32xbf16> to vector<2x8x32xbf16>
    %336 = arith.extf %335 : vector<2x8x32xbf16> to vector<2x8x32xf32>
    %c2_188 = arith.constant 2 : index
    %c0_189 = arith.constant 0 : index
    %c0_190 = arith.constant 0 : index
    %337 = vector.load %arg2[%c2_188, %c0_189, %c0_190] : memref<3x8x32xbf16, #tpu.memory_space<vmem>>, vector<1x8x32xbf16>
    %338 = vector.shape_cast %337 : vector<1x8x32xbf16> to vector<8x32xbf16>
    %339 = arith.extf %338 : vector<8x32xbf16> to vector<8x32xf32>
    %340 = vector.shape_cast %339 : vector<8x32xf32> to vector<1x8x32xf32>
    %341 = vector.broadcast %340 : vector<1x8x32xf32> to vector<2x8x32xf32>
    %342 = arith.addf %336, %341 : vector<2x8x32xf32>
    %343 = vector.shape_cast %342 : vector<2x8x32xf32> to vector<16x32xf32>
    %344 = arith.truncf %343 : vector<16x32xf32> to vector<16x32xbf16>
    %c2_191 = arith.constant 2 : index
    %c0_192 = arith.constant 0 : index
    %c0_193 = arith.constant 0 : index
    %345 = vector.load %arg5[%c2_191, %c0_192, %c0_193] : memref<3x32x32xbf16, #tpu.memory_space<vmem>>, vector<1x32x32xbf16>
    %346 = vector.shape_cast %345 : vector<1x32x32xbf16> to vector<32x32xbf16>
    %cst_194 = arith.constant dense<0.000000e+00> : vector<16x32xf32>
    %347 = tpu.matmul %344, %346, %cst_194 {dimension_numbers = #tpu.dot_dimension_numbers<[1], [0], [0], [1], [0, 0, 1, 1], [], []>} : vector<16x32xbf16>, vector<32x32xbf16>, vector<16x32xf32> -> vector<16x32xf32>
    %c2_195 = arith.constant 2 : index
    %c0_196 = arith.constant 0 : index
    %c0_197 = arith.constant 0 : index
    %348 = vector.load %arg6[%c2_195, %c0_196, %c0_197] : memref<3x1x32xf32, #tpu.memory_space<vmem>>, vector<1x1x32xf32>
    %349 = vector.shape_cast %348 : vector<1x1x32xf32> to vector<1x32xf32>
    %350 = vector.broadcast %349 : vector<1x32xf32> to vector<16x32xf32>
    %351 = arith.addf %347, %350 : vector<16x32xf32>
    %352 = vector.shape_cast %351 : vector<16x32xf32> to vector<2x8x32xf32>
    %c2_198 = arith.constant 2 : index
    %c0_199 = arith.constant 0 : index
    %c0_200 = arith.constant 0 : index
    %353 = vector.load %arg7[%c2_198, %c0_199, %c0_200] : memref<3x32x32xbf16, #tpu.memory_space<vmem>>, vector<1x32x32xbf16>
    %354 = vector.shape_cast %353 : vector<1x32x32xbf16> to vector<32x32xbf16>
    %cst_201 = arith.constant dense<0.000000e+00> : vector<16x32xf32>
    %355 = tpu.matmul %344, %354, %cst_201 {dimension_numbers = #tpu.dot_dimension_numbers<[1], [0], [0], [1], [0, 0, 1, 1], [], []>} : vector<16x32xbf16>, vector<32x32xbf16>, vector<16x32xf32> -> vector<16x32xf32>
    %c2_202 = arith.constant 2 : index
    %c0_203 = arith.constant 0 : index
    %c0_204 = arith.constant 0 : index
    %356 = vector.load %arg8[%c2_202, %c0_203, %c0_204] : memref<3x1x32xf32, #tpu.memory_space<vmem>>, vector<1x1x32xf32>
    %357 = vector.shape_cast %356 : vector<1x1x32xf32> to vector<1x32xf32>
    %358 = vector.broadcast %357 : vector<1x32xf32> to vector<16x32xf32>
    %359 = arith.addf %355, %358 : vector<16x32xf32>
    %360 = vector.shape_cast %359 : vector<16x32xf32> to vector<2x8x32xf32>
    %361 = vector.extract_strided_slice %342 {offsets = [0, 0, 0], sizes = [2, 1, 32], strides = [1, 1, 1]} : vector<2x8x32xf32> to vector<2x1x32xf32>
    %362 = vector.shape_cast %361 : vector<2x1x32xf32> to vector<2x32xf32>
    %363 = arith.truncf %362 : vector<2x32xf32> to vector<2x32xbf16>
    %c2_205 = arith.constant 2 : index
    %c0_206 = arith.constant 0 : index
    %c0_207 = arith.constant 0 : index
    %364 = vector.load %arg3[%c2_205, %c0_206, %c0_207] : memref<3x32x32xbf16, #tpu.memory_space<vmem>>, vector<1x32x32xbf16>
    %365 = vector.shape_cast %364 : vector<1x32x32xbf16> to vector<32x32xbf16>
    %cst_208 = arith.constant dense<0.000000e+00> : vector<2x32xf32>
    %366 = tpu.matmul %363, %365, %cst_208 {dimension_numbers = #tpu.dot_dimension_numbers<[1], [0], [0], [1], [0, 0, 1, 1], [], []>} : vector<2x32xbf16>, vector<32x32xbf16>, vector<2x32xf32> -> vector<2x32xf32>
    %c2_209 = arith.constant 2 : index
    %c0_210 = arith.constant 0 : index
    %c0_211 = arith.constant 0 : index
    %367 = vector.load %arg4[%c2_209, %c0_210, %c0_211] : memref<3x1x32xf32, #tpu.memory_space<vmem>>, vector<1x1x32xf32>
    %368 = vector.shape_cast %367 : vector<1x1x32xf32> to vector<1x32xf32>
    %369 = vector.broadcast %368 : vector<1x32xf32> to vector<2x32xf32>
    %370 = arith.addf %366, %369 : vector<2x32xf32>
    %371 = vector.shape_cast %370 : vector<2x32xf32> to vector<2x1x32xf32>
    %372 = vector.broadcast %371 : vector<2x1x32xf32> to vector<2x8x32xf32>
    %373 = arith.mulf %372, %352 : vector<2x8x32xf32>
    %cst_212 = arith.constant dense<0.000000e+00> : vector<2x8xf32>
    %374 = vector.multi_reduction <add>, %373, %cst_212 [2] : vector<2x8x32xf32> to vector<2x8xf32>
    %cst_213 = arith.constant 0.176776692 : f32
    %375 = vector.broadcast %cst_213 : f32 to vector<2x8xf32>
    %376 = arith.mulf %374, %375 : vector<2x8xf32>
    %cst_214 = arith.constant dense<0xFF800000> : vector<2xf32>
    %377 = vector.multi_reduction <maximumf>, %376, %cst_214 [1] : vector<2x8xf32> to vector<2xf32>
    %378 = vector.shape_cast %377 : vector<2xf32> to vector<2x1xf32>
    %379 = vector.broadcast %378 : vector<2x1xf32> to vector<2x8xf32>
    %380 = arith.subf %376, %379 : vector<2x8xf32>
    %381 = math.exp %380 : vector<2x8xf32>
    %cst_215 = arith.constant dense<0.000000e+00> : vector<2xf32>
    %382 = vector.multi_reduction <add>, %381, %cst_215 [1] : vector<2x8xf32> to vector<2xf32>
    %383 = vector.shape_cast %382 : vector<2xf32> to vector<2x1xf32>
    %384 = tpu.reciprocal %383 {approx = true} : vector<2x1xf32> -> vector<2x1xf32>
    %385 = vector.broadcast %384 : vector<2x1xf32> to vector<2x8xf32>
    %386 = arith.mulf %381, %385 : vector<2x8xf32>
    %387 = vector.shape_cast %386 : vector<2x8xf32> to vector<2x8x1xf32>
    %388 = vector.broadcast %387 : vector<2x8x1xf32> to vector<2x8x32xf32>
    %389 = arith.mulf %388, %360 : vector<2x8x32xf32>
    %cst_216 = arith.constant dense<0.000000e+00> : vector<2x32xf32>
    %390 = vector.multi_reduction <add>, %389, %cst_216 [1] : vector<2x8x32xf32> to vector<2x32xf32>
    %391 = arith.truncf %390 : vector<2x32xf32> to vector<2x32xbf16>
    %c2_217 = arith.constant 2 : index
    %c0_218 = arith.constant 0 : index
    %c0_219 = arith.constant 0 : index
    %392 = vector.load %arg9[%c2_217, %c0_218, %c0_219] : memref<3x32x32xbf16, #tpu.memory_space<vmem>>, vector<1x32x32xbf16>
    %393 = vector.shape_cast %392 : vector<1x32x32xbf16> to vector<32x32xbf16>
    %cst_220 = arith.constant dense<0.000000e+00> : vector<2x32xf32>
    %394 = tpu.matmul %391, %393, %cst_220 {dimension_numbers = #tpu.dot_dimension_numbers<[1], [0], [0], [1], [0, 0, 1, 1], [], []>} : vector<2x32xbf16>, vector<32x32xbf16>, vector<2x32xf32> -> vector<2x32xf32>
    %c2_221 = arith.constant 2 : index
    %c0_222 = arith.constant 0 : index
    %c0_223 = arith.constant 0 : index
    %395 = vector.load %arg10[%c2_221, %c0_222, %c0_223] : memref<3x1x32xf32, #tpu.memory_space<vmem>>, vector<1x1x32xf32>
    %396 = vector.shape_cast %395 : vector<1x1x32xf32> to vector<1x32xf32>
    %397 = vector.broadcast %396 : vector<1x32xf32> to vector<2x32xf32>
    %398 = arith.addf %394, %397 : vector<2x32xf32>
    %399 = arith.addf %362, %398 : vector<2x32xf32>
    %c2_224 = arith.constant 2 : index
    %c0_225 = arith.constant 0 : index
    %c0_226 = arith.constant 0 : index
    %400 = vector.load %arg11[%c2_224, %c0_225, %c0_226] : memref<3x1x32xf32, #tpu.memory_space<vmem>>, vector<1x1x32xf32>
    %401 = vector.shape_cast %400 : vector<1x1x32xf32> to vector<1x32xf32>
    %c2_227 = arith.constant 2 : index
    %c0_228 = arith.constant 0 : index
    %c0_229 = arith.constant 0 : index
    %402 = vector.load %arg12[%c2_227, %c0_228, %c0_229] : memref<3x1x32xf32, #tpu.memory_space<vmem>>, vector<1x1x32xf32>
    %403 = vector.shape_cast %402 : vector<1x1x32xf32> to vector<1x32xf32>
    %cst_230 = arith.constant dense<0.000000e+00> : vector<2xf32>
    %404 = vector.multi_reduction <add>, %399, %cst_230 [1] : vector<2x32xf32> to vector<2xf32>
    %405 = vector.shape_cast %404 : vector<2xf32> to vector<2x1xf32>
    %cst_231 = arith.constant 3.200000e+01 : f32
    %406 = vector.broadcast %cst_231 : f32 to vector<2x1xf32>
    %407 = arith.divf %405, %406 : vector<2x1xf32>
    %408 = vector.broadcast %407 : vector<2x1xf32> to vector<2x32xf32>
    %409 = arith.subf %399, %408 : vector<2x32xf32>
    %410 = arith.mulf %409, %409 : vector<2x32xf32>
    %cst_232 = arith.constant dense<0.000000e+00> : vector<2xf32>
    %411 = vector.multi_reduction <add>, %410, %cst_232 [1] : vector<2x32xf32> to vector<2xf32>
    %412 = vector.shape_cast %411 : vector<2xf32> to vector<2x1xf32>
    %cst_233 = arith.constant 3.200000e+01 : f32
    %413 = vector.broadcast %cst_233 : f32 to vector<2x1xf32>
    %414 = arith.divf %412, %413 : vector<2x1xf32>
    %415 = vector.broadcast %407 : vector<2x1xf32> to vector<2x32xf32>
    %416 = arith.subf %399, %415 : vector<2x32xf32>
    %cst_234 = arith.constant 9.99999996E-13 : f32
    %417 = vector.broadcast %cst_234 : f32 to vector<2x1xf32>
    %418 = arith.addf %414, %417 : vector<2x1xf32>
    %419 = math.rsqrt %418 : vector<2x1xf32>
    %420 = vector.broadcast %419 : vector<2x1xf32> to vector<2x32xf32>
    %421 = arith.mulf %416, %420 : vector<2x32xf32>
    %422 = vector.broadcast %401 : vector<1x32xf32> to vector<2x32xf32>
    %423 = arith.mulf %421, %422 : vector<2x32xf32>
    %424 = vector.broadcast %403 : vector<1x32xf32> to vector<2x32xf32>
    %425 = arith.addf %423, %424 : vector<2x32xf32>
    %426 = arith.truncf %425 : vector<2x32xf32> to vector<2x32xbf16>
    %c2_235 = arith.constant 2 : index
    %c0_236 = arith.constant 0 : index
    %c0_237 = arith.constant 0 : index
    %427 = vector.load %arg13[%c2_235, %c0_236, %c0_237] : memref<3x32x64xbf16, #tpu.memory_space<vmem>>, vector<1x32x64xbf16>
    %428 = vector.shape_cast %427 : vector<1x32x64xbf16> to vector<32x64xbf16>
    %cst_238 = arith.constant dense<0.000000e+00> : vector<2x64xf32>
    %429 = tpu.matmul %426, %428, %cst_238 {dimension_numbers = #tpu.dot_dimension_numbers<[1], [0], [0], [1], [0, 0, 1, 1], [], []>} : vector<2x32xbf16>, vector<32x64xbf16>, vector<2x64xf32> -> vector<2x64xf32>
    %c2_239 = arith.constant 2 : index
    %c0_240 = arith.constant 0 : index
    %c0_241 = arith.constant 0 : index
    %430 = vector.load %arg14[%c2_239, %c0_240, %c0_241] : memref<3x1x64xf32, #tpu.memory_space<vmem>>, vector<1x1x64xf32>
    %431 = vector.shape_cast %430 : vector<1x1x64xf32> to vector<1x64xf32>
    %432 = vector.broadcast %431 : vector<1x64xf32> to vector<2x64xf32>
    %433 = arith.addf %429, %432 : vector<2x64xf32>
    %434 = arith.mulf %433, %433 : vector<2x64xf32>
    %435 = arith.mulf %433, %434 : vector<2x64xf32>
    %cst_242 = arith.constant 4.471500e-02 : f32
    %436 = vector.broadcast %cst_242 : f32 to vector<2x64xf32>
    %437 = arith.mulf %436, %435 : vector<2x64xf32>
    %438 = arith.addf %433, %437 : vector<2x64xf32>
    %cst_243 = arith.constant 0.797884583 : f32
    %439 = vector.broadcast %cst_243 : f32 to vector<2x64xf32>
    %440 = arith.mulf %439, %438 : vector<2x64xf32>
    %441 = math.tanh %440 : vector<2x64xf32>
    %cst_244 = arith.constant 1.000000e+00 : f32
    %442 = vector.broadcast %cst_244 : f32 to vector<2x64xf32>
    %443 = arith.addf %442, %441 : vector<2x64xf32>
    %cst_245 = arith.constant 5.000000e-01 : f32
    %444 = vector.broadcast %cst_245 : f32 to vector<2x64xf32>
    %445 = arith.mulf %444, %443 : vector<2x64xf32>
    %446 = arith.mulf %433, %445 : vector<2x64xf32>
    %447 = arith.truncf %446 : vector<2x64xf32> to vector<2x64xbf16>
    %c2_246 = arith.constant 2 : index
    %c0_247 = arith.constant 0 : index
    %c0_248 = arith.constant 0 : index
    %448 = vector.load %arg15[%c2_246, %c0_247, %c0_248] : memref<3x64x32xbf16, #tpu.memory_space<vmem>>, vector<1x64x32xbf16>
    %449 = vector.shape_cast %448 : vector<1x64x32xbf16> to vector<64x32xbf16>
    %cst_249 = arith.constant dense<0.000000e+00> : vector<2x32xf32>
    %450 = tpu.matmul %447, %449, %cst_249 {dimension_numbers = #tpu.dot_dimension_numbers<[1], [0], [0], [1], [0, 0, 1, 1], [], []>} : vector<2x64xbf16>, vector<64x32xbf16>, vector<2x32xf32> -> vector<2x32xf32>
    %c2_250 = arith.constant 2 : index
    %c0_251 = arith.constant 0 : index
    %c0_252 = arith.constant 0 : index
    %451 = vector.load %arg16[%c2_250, %c0_251, %c0_252] : memref<3x1x32xf32, #tpu.memory_space<vmem>>, vector<1x1x32xf32>
    %452 = vector.shape_cast %451 : vector<1x1x32xf32> to vector<1x32xf32>
    %453 = vector.broadcast %452 : vector<1x32xf32> to vector<2x32xf32>
    %454 = arith.addf %450, %453 : vector<2x32xf32>
    %455 = arith.addf %425, %454 : vector<2x32xf32>
    %c2_253 = arith.constant 2 : index
    %c0_254 = arith.constant 0 : index
    %c0_255 = arith.constant 0 : index
    %456 = vector.load %arg17[%c2_253, %c0_254, %c0_255] : memref<3x1x32xf32, #tpu.memory_space<vmem>>, vector<1x1x32xf32>
    %457 = vector.shape_cast %456 : vector<1x1x32xf32> to vector<1x32xf32>
    %c2_256 = arith.constant 2 : index
    %c0_257 = arith.constant 0 : index
    %c0_258 = arith.constant 0 : index
    %458 = vector.load %arg18[%c2_256, %c0_257, %c0_258] : memref<3x1x32xf32, #tpu.memory_space<vmem>>, vector<1x1x32xf32>
    %459 = vector.shape_cast %458 : vector<1x1x32xf32> to vector<1x32xf32>
    %cst_259 = arith.constant dense<0.000000e+00> : vector<2xf32>
    %460 = vector.multi_reduction <add>, %455, %cst_259 [1] : vector<2x32xf32> to vector<2xf32>
    %461 = vector.shape_cast %460 : vector<2xf32> to vector<2x1xf32>
    %cst_260 = arith.constant 3.200000e+01 : f32
    %462 = vector.broadcast %cst_260 : f32 to vector<2x1xf32>
    %463 = arith.divf %461, %462 : vector<2x1xf32>
    %464 = vector.broadcast %463 : vector<2x1xf32> to vector<2x32xf32>
    %465 = arith.subf %455, %464 : vector<2x32xf32>
    %466 = arith.mulf %465, %465 : vector<2x32xf32>
    %cst_261 = arith.constant dense<0.000000e+00> : vector<2xf32>
    %467 = vector.multi_reduction <add>, %466, %cst_261 [1] : vector<2x32xf32> to vector<2xf32>
    %468 = vector.shape_cast %467 : vector<2xf32> to vector<2x1xf32>
    %cst_262 = arith.constant 3.200000e+01 : f32
    %469 = vector.broadcast %cst_262 : f32 to vector<2x1xf32>
    %470 = arith.divf %468, %469 : vector<2x1xf32>
    %471 = vector.broadcast %463 : vector<2x1xf32> to vector<2x32xf32>
    %472 = arith.subf %455, %471 : vector<2x32xf32>
    %cst_263 = arith.constant 9.99999996E-13 : f32
    %473 = vector.broadcast %cst_263 : f32 to vector<2x1xf32>
    %474 = arith.addf %470, %473 : vector<2x1xf32>
    %475 = math.rsqrt %474 : vector<2x1xf32>
    %476 = vector.broadcast %475 : vector<2x1xf32> to vector<2x32xf32>
    %477 = arith.mulf %472, %476 : vector<2x32xf32>
    %478 = vector.broadcast %457 : vector<1x32xf32> to vector<2x32xf32>
    %479 = arith.mulf %477, %478 : vector<2x32xf32>
    %480 = vector.broadcast %459 : vector<1x32xf32> to vector<2x32xf32>
    %481 = arith.addf %479, %480 : vector<2x32xf32>
    %482 = arith.truncf %481 : vector<2x32xf32> to vector<2x32xbf16>
    %c2_264 = arith.constant 2 : index
    %c0_265 = arith.constant 0 : index
    %c0_266 = arith.constant 0 : index
    %483 = vector.load %arg19[%c2_264, %c0_265, %c0_266] : memref<3x32x32xbf16, #tpu.memory_space<vmem>>, vector<1x32x32xbf16>
    %484 = vector.shape_cast %483 : vector<1x32x32xbf16> to vector<32x32xbf16>
    %cst_267 = arith.constant dense<0.000000e+00> : vector<2x32xf32>
    %485 = tpu.matmul %482, %484, %cst_267 {dimension_numbers = #tpu.dot_dimension_numbers<[1], [0], [0], [1], [0, 0, 1, 1], [], []>} : vector<2x32xbf16>, vector<32x32xbf16>, vector<2x32xf32> -> vector<2x32xf32>
    %c2_268 = arith.constant 2 : index
    %c0_269 = arith.constant 0 : index
    %c0_270 = arith.constant 0 : index
    %486 = vector.load %arg20[%c2_268, %c0_269, %c0_270] : memref<3x1x32xf32, #tpu.memory_space<vmem>>, vector<1x1x32xf32>
    %487 = vector.shape_cast %486 : vector<1x1x32xf32> to vector<1x32xf32>
    %488 = vector.broadcast %487 : vector<1x32xf32> to vector<2x32xf32>
    %489 = arith.addf %485, %488 : vector<2x32xf32>
    %490 = math.tanh %489 : vector<2x32xf32>
    %c2_271 = arith.constant 2 : index
    %c0_272 = arith.constant 0 : index
    %c0_273 = arith.constant 0 : index
    %491 = vector.load %arg21[%c2_271, %c0_272, %c0_273] : memref<3x1x32xf32, #tpu.memory_space<vmem>>, vector<1x1x32xf32>
    %492 = vector.shape_cast %491 : vector<1x1x32xf32> to vector<1x32xf32>
    %493 = vector.broadcast %492 : vector<1x32xf32> to vector<2x32xf32>
    %494 = arith.mulf %490, %493 : vector<2x32xf32>
    %cst_274 = arith.constant dense<0.000000e+00> : vector<2xf32>
    %495 = vector.multi_reduction <add>, %494, %cst_274 [1] : vector<2x32xf32> to vector<2xf32>
    %496 = vector.shape_cast %495 : vector<2xf32> to vector<2x1xf32>
    %c2_275 = arith.constant 2 : index
    %c0_276 = arith.constant 0 : index
    %c0_277 = arith.constant 0 : index
    %497 = vector.load %arg22[%c2_275, %c0_276, %c0_277] : memref<3x1x1xf32, #tpu.memory_space<vmem>>, vector<1x1x1xf32>
    %498 = vector.shape_cast %497 : vector<1x1x1xf32> to vector<1x1xf32>
    %499 = vector.broadcast %498 : vector<1x1xf32> to vector<2x1xf32>
    %500 = arith.addf %496, %499 : vector<2x1xf32>
    %501 = tpu.concatenate %166, %333, %500 in 1 : vector<2x1xf32>, vector<2x1xf32>, vector<2x1xf32> -> vector<2x3xf32>
    %c0_278 = arith.constant 0 : index
    %c0_279 = arith.constant 0 : index
    %c0_280 = arith.constant 0 : index
    %502 = vector.load %arg23[%c0_278, %c0_279, %c0_280] : memref<1x2x3xf32, #tpu.memory_space<vmem>>, vector<1x2x3xf32>
    %503 = vector.shape_cast %502 : vector<1x2x3xf32> to vector<2x3xf32>
    %504 = vector.shape_cast %501 : vector<2x3xf32> to vector<1x2x3xf32>
    tpu.vector_store %arg23[%c0_278, %c0_279, %c0_280], %504 {strides = array<i32>} : memref<1x2x3xf32, #tpu.memory_space<vmem>>, vector<1x2x3xf32>,
    return
  }
  func.func @transform_0(%arg0: i32) -> (i32, i32, i32, i32) {
    %c0_i32 = arith.constant 0 : i32
    %c0_i32_0 = arith.constant 0 : i32
    %c0_i32_1 = arith.constant 0 : i32
    %c0_i32_2 = arith.constant 0 : i32
    return %arg0, %c0_i32, %c0_i32_0, %c0_i32_1 : i32, i32, i32, i32
  }
  func.func @transform_1(%arg0: i32) -> (i32, i32, i32) {
    %c0_i32 = arith.constant 0 : i32
    %c0_i32_0 = arith.constant 0 : i32
    %c0_i32_1 = arith.constant 0 : i32
    return %arg0, %c0_i32, %c0_i32_0 : i32, i32, i32
  }
  func.func @transform_2(%arg0: i32) -> (i32, i32, i32) {
    %c0_i32 = arith.constant 0 : i32
    %c0_i32_0 = arith.constant 0 : i32
    %c0_i32_1 = arith.constant 0 : i32
    return %arg0, %c0_i32, %c0_i32_0 : i32, i32, i32
  }
  func.func @transform_3(%arg0: i32) -> (i32, i32, i32) {
    %c0_i32 = arith.constant 0 : i32
    %c0_i32_0 = arith.constant 0 : i32
    %c0_i32_1 = arith.constant 0 : i32
    return %arg0, %c0_i32, %c0_i32_0 : i32, i32, i32
  }
  func.func @transform_4(%arg0: i32) -> (i32, i32, i32) {
    %c0_i32 = arith.constant 0 : i32
    %c0_i32_0 = arith.constant 0 : i32
    %c0_i32_1 = arith.constant 0 : i32
    return %arg0, %c0_i32, %c0_i32_0 : i32, i32, i32
  }
  func.func @transform_5(%arg0: i32) -> (i32, i32, i32) {
    %c0_i32 = arith.constant 0 : i32
    %c0_i32_0 = arith.constant 0 : i32
    %c0_i32_1 = arith.constant 0 : i32
    return %arg0, %c0_i32, %c0_i32_0 : i32, i32, i32
  }
  func.func @transform_6(%arg0: i32) -> (i32, i32, i32) {
    %c0_i32 = arith.constant 0 : i32
    %c0_i32_0 = arith.constant 0 : i32
    %c0_i32_1 = arith.constant 0 : i32
    return %arg0, %c0_i32, %c0_i32_0 : i32, i32, i32
  }
  func.func @transform_7(%arg0: i32) -> (i32, i32, i32) {
    %c0_i32 = arith.constant 0 : i32
    %c0_i32_0 = arith.constant 0 : i32
    %c0_i32_1 = arith.constant 0 : i32
    return %arg0, %c0_i32, %c0_i32_0 : i32, i32, i32
  }
  func.func @transform_8(%arg0: i32) -> (i32, i32, i32) {
    %c0_i32 = arith.constant 0 : i32
    %c0_i32_0 = arith.constant 0 : i32
    %c0_i32_1 = arith.constant 0 : i32
    return %arg0, %c0_i32, %c0_i32_0 : i32, i32, i32
  }
  func.func @transform_9(%arg0: i32) -> (i32, i32, i32) {
    %c0_i32 = arith.constant 0 : i32
    %c0_i32_0 = arith.constant 0 : i32
    %c0_i32_1 = arith.constant 0 : i32
    return %arg0, %c0_i32, %c0_i32_0 : i32, i32, i32
  }
  func.func @transform_10(%arg0: i32) -> (i32, i32, i32) {
    %c0_i32 = arith.constant 0 : i32
    %c0_i32_0 = arith.constant 0 : i32
    %c0_i32_1 = arith.constant 0 : i32
    return %arg0, %c0_i32, %c0_i32_0 : i32, i32, i32
  }
  func.func @transform_11(%arg0: i32) -> (i32, i32, i32) {
    %c0_i32 = arith.constant 0 : i32
    %c0_i32_0 = arith.constant 0 : i32
    %c0_i32_1 = arith.constant 0 : i32
    return %arg0, %c0_i32, %c0_i32_0 : i32, i32, i32
  }
  func.func @transform_12(%arg0: i32) -> (i32, i32, i32) {
    %c0_i32 = arith.constant 0 : i32
    %c0_i32_0 = arith.constant 0 : i32
    %c0_i32_1 = arith.constant 0 : i32
    return %arg0, %c0_i32, %c0_i32_0 : i32, i32, i32
  }
  func.func @transform_13(%arg0: i32) -> (i32, i32, i32) {
    %c0_i32 = arith.constant 0 : i32
    %c0_i32_0 = arith.constant 0 : i32
    %c0_i32_1 = arith.constant 0 : i32
    return %arg0, %c0_i32, %c0_i32_0 : i32, i32, i32
  }
  func.func @transform_14(%arg0: i32) -> (i32, i32, i32) {
    %c0_i32 = arith.constant 0 : i32
    %c0_i32_0 = arith.constant 0 : i32
    %c0_i32_1 = arith.constant 0 : i32
    return %arg0, %c0_i32, %c0_i32_0 : i32, i32, i32
  }
  func.func @transform_15(%arg0: i32) -> (i32, i32, i32) {
    %c0_i32 = arith.constant 0 : i32
    %c0_i32_0 = arith.constant 0 : i32
    %c0_i32_1 = arith.constant 0 : i32
    return %arg0, %c0_i32, %c0_i32_0 : i32, i32, i32
  }
  func.func @transform_16(%arg0: i32) -> (i32, i32, i32) {
    %c0_i32 = arith.constant 0 : i32
    %c0_i32_0 = arith.constant 0 : i32
    %c0_i32_1 = arith.constant 0 : i32
    return %arg0, %c0_i32, %c0_i32_0 : i32, i32, i32
  }
  func.func @transform_17(%arg0: i32) -> (i32, i32, i32) {
    %c0_i32 = arith.constant 0 : i32
    %c0_i32_0 = arith.constant 0 : i32
    %c0_i32_1 = arith.constant 0 : i32
    return %arg0, %c0_i32, %c0_i32_0 : i32, i32, i32
  }
  func.func @transform_18(%arg0: i32) -> (i32, i32, i32) {
    %c0_i32 = arith.constant 0 : i32
    %c0_i32_0 = arith.constant 0 : i32
    %c0_i32_1 = arith.constant 0 : i32
    return %arg0, %c0_i32, %c0_i32_0 : i32, i32, i32
  }
  func.func @transform_19(%arg0: i32) -> (i32, i32, i32) {
    %c0_i32 = arith.constant 0 : i32
    %c0_i32_0 = arith.constant 0 : i32
    %c0_i32_1 = arith.constant 0 : i32
    return %arg0, %c0_i32, %c0_i32_0 : i32, i32, i32
  }
  func.func @transform_20(%arg0: i32) -> (i32, i32, i32) {
    %c0_i32 = arith.constant 0 : i32
    %c0_i32_0 = arith.constant 0 : i32
    %c0_i32_1 = arith.constant 0 : i32
    return %arg0, %c0_i32, %c0_i32_0 : i32, i32, i32
  }
  func.func @transform_21(%arg0: i32) -> (i32, i32, i32) {
    %c0_i32 = arith.constant 0 : i32
    %c0_i32_0 = arith.constant 0 : i32
    %c0_i32_1 = arith.constant 0 : i32
    return %arg0, %c0_i32, %c0_i32_0 : i32, i32, i32
  }
  func.func @transform_22(%arg0: i32) -> (i32, i32, i32) {
    %c0_i32 = arith.constant 0 : i32
    %c0_i32_0 = arith.constant 0 : i32
    %c0_i32_1 = arith.constant 0 : i32
    return %arg0, %c0_i32, %c0_i32_0 : i32, i32, i32
  }
}

</mosaic_0001>

<llo_original>
// kernel: tpu_custom_call.1
$region0: #{tpu_custom_call.1}
  #allocation0 [shape = 'u32[]', space=smem, size = 0x4, offset = 0x4, fixed_abs, tag = 'smem constant byte address 0x4 - core index']
  #allocation1 [shape = 'u32[144,128]{1,0:T(1,128)}', space=vmem, size = 0x12000, scoped, tag = 'internal scratch']
  %s0 = inlined_call_operand.hbm [shape: bf16[3,2,8,32], index: 0, kind: input, shape index: {}]
  %s1 = inlined_call_operand.hbm [shape: bf16[3,8,32], index: 1, kind: input, shape index: {}]
  %s2 = inlined_call_operand.vmem [shape: bf16[3,32,32], index: 2, kind: input, shape index: {}]
  %s3 = inlined_call_operand.vmem [shape: f32[3,1,32], index: 3, kind: input, shape index: {}]
  %s4 = inlined_call_operand.vmem [shape: bf16[3,32,32], index: 4, kind: input, shape index: {}]
  %s5 = inlined_call_operand.vmem [shape: f32[3,1,32], index: 5, kind: input, shape index: {}]
  %s6 = inlined_call_operand.vmem [shape: bf16[3,32,32], index: 6, kind: input, shape index: {}]
  %s7 = inlined_call_operand.vmem [shape: f32[3,1,32], index: 7, kind: input, shape index: {}]
  %s8 = inlined_call_operand.hbm [shape: bf16[3,32,32], index: 8, kind: input, shape index: {}]
  %s9 = inlined_call_operand.vmem [shape: f32[3,1,32], index: 9, kind: input, shape index: {}]
  %s10 = inlined_call_operand.vmem [shape: f32[3,1,32], index: 10, kind: input, shape index: {}]
  %s11 = inlined_call_operand.vmem [shape: f32[3,1,32], index: 11, kind: input, shape index: {}]
  %s12 = inlined_call_operand.hbm [shape: bf16[3,32,64], index: 12, kind: input, shape index: {}]
  %s13 = inlined_call_operand.vmem [shape: f32[3,1,64], index: 13, kind: input, shape index: {}]
  %s14 = inlined_call_operand.vmem [shape: bf16[3,64,32], index: 14, kind: input, shape index: {}]
  %s15 = inlined_call_operand.vmem [shape: f32[3,1,32], index: 15, kind: input, shape index: {}]
  %s16 = inlined_call_operand.vmem [shape: f32[3,1,32], index: 16, kind: input, shape index: {}]
  %s17 = inlined_call_operand.vmem [shape: f32[3,1,32], index: 17, kind: input, shape index: {}]
  %s18 = inlined_call_operand.hbm [shape: bf16[3,32,32], index: 18, kind: input, shape index: {}]
  %s19 = inlined_call_operand.vmem [shape: f32[3,1,32], index: 19, kind: input, shape index: {}]
  %s20 = inlined_call_operand.vmem [shape: f32[3,1,32], index: 20, kind: input, shape index: {}]
  %s21 = inlined_call_operand.vmem [shape: f32[3,1,1], index: 21, kind: input, shape index: {}]
  %s22 = inlined_call_operand.hbm [shape: f32[1,2,3], index: 22, kind: output, shape index: {}]
  %s23 = sld [smem:[#allocation0]]
  $region118: #{tpu_custom_call.1} parent=0
    _
  %s25 = ssub.s32 1, %s23
  %s26 = scalar_select 0, %s25, %s23
  $region1: #{tpu_custom_call.1} parent=0
    #allocation2 [shape = 'u8[12288]{0}', space=vmem, size = 0x3000, scoped, tag = 'input window, operand 0, single buffered']
    #allocation3 [shape = 's32[1]{0}', space=sflag, size = 0x4, scoped, tag = 'scoped memory for tpu_custom_call.1']
    #allocation4 [shape = 's32[1]{0}', space=sflag, size = 0x4, scoped, tag = 'scoped memory for tpu_custom_call.1']
    #allocation5 [shape = 'u8[6144]{0}', space=vmem, size = 0x1800, scoped, tag = 'input window, operand 1, single buffered']
    #allocation6 [shape = 's32[1]{0}', space=sflag, size = 0x4, scoped, tag = 'scoped memory for tpu_custom_call.1']
    #allocation7 [shape = 'u8[24576]{0}', space=vmem, size = 0x6000, scoped, tag = 'input window, operand 8, single buffered']
    #allocation8 [shape = 'u8[24576]{0}', space=vmem, size = 0x6000, scoped, tag = 'input window, operand 12, single buffered']
    #allocation9 [shape = 's32[1]{0}', space=sflag, size = 0x4, scoped, tag = 'scoped memory for tpu_custom_call.1']
    #allocation10 [shape = 'u8[24576]{0}', space=vmem, size = 0x6000, scoped, tag = 'input window, operand 18, single buffered']
    #allocation11 [shape = 'u8[1024]{0}', space=vmem, size = 0x400, scoped, tag = 'output window, operand 0, single buffered']
    %27 = vsyncpa [#allocation3], 0
    %28 = vsyncpa [#allocation6], 0
    %29 = vsyncpa [#allocation9], 0
    %30 = vsyncpa [#allocation4], 0
    // Predicated region
    $region2: #{tpu_custom_call.1} parent=1 // pred_check
      _
    $region3: #{tpu_custom_call.1} parent=1 // pred_check_branch
      %32 = sbr.rel (0) target = $region5
    $region4: #{tpu_custom_call.1} parent=1 // pred_region
      %s34 = ssub.s32 384, 384
      %35 = vsyncadd [#allocation3], %s34
      %s36 = sshll.u32 [#allocation2], 4
      %s37 = int_to_ptr.vmem [resolvable:$true] %s36
      %42 = dma.hbm_to_vmem [thread:$0]  %s0, 384, %s37, [#allocation3], 64, 64, 4
    $region5: #{tpu_custom_call.1} parent=1 // pred_fallthru
      _
    // Predicated region
    $region6: #{tpu_custom_call.1} parent=1 // pred_check
      _
    $region7: #{tpu_custom_call.1} parent=1 // pred_check_branch
      %44 = sbr.rel (0) target = $region9
    $region8: #{tpu_custom_call.1} parent=1 // pred_region
      %s46 = ssub.s32 192, 192
      %47 = vsyncadd [#allocation6], %s46
      %s48 = sshll.u32 [#allocation5], 4
      %s49 = int_to_ptr.vmem [resolvable:$true] %s48
      %54 = dma.hbm_to_vmem [thread:$0]  %s1, 192, %s49, [#allocation6], 64, 64, 4
    $region9: #{tpu_custom_call.1} parent=1 // pred_fallthru
      _
    // Predicated region
    $region10: #{tpu_custom_call.1} parent=1 // pred_check
      _
    $region11: #{tpu_custom_call.1} parent=1 // pred_check_branch
      %56 = sbr.rel (0) target = $region13
    $region12: #{tpu_custom_call.1} parent=1 // pred_region
      _
    $region13: #{tpu_custom_call.1} parent=1 // pred_fallthru
      _
    // Predicated region
    $region14: #{tpu_custom_call.1} parent=1 // pred_check
      _
    $region15: #{tpu_custom_call.1} parent=1 // pred_check_branch
      %58 = sbr.rel (0) target = $region17
    $region16: #{tpu_custom_call.1} parent=1 // pred_region
      _
    $region17: #{tpu_custom_call.1} parent=1 // pred_fallthru
      _
    // Predicated region
    $region18: #{tpu_custom_call.1} parent=1 // pred_check
      _
    $region19: #{tpu_custom_call.1} parent=1 // pred_check_branch
      %60 = sbr.rel (0) target = $region21
    $region20: #{tpu_custom_call.1} parent=1 // pred_region
      _
    $region21: #{tpu_custom_call.1} parent=1 // pred_fallthru
      _
    // Predicated region
    $region22: #{tpu_custom_call.1} parent=1 // pred_check
      _
    $region23: #{tpu_custom_call.1} parent=1 // pred_check_branch
      %62 = sbr.rel (0) target = $region25
    $region24: #{tpu_custom_call.1} parent=1 // pred_region
      _
    $region25: #{tpu_custom_call.1} parent=1 // pred_fallthru
      _
    // Predicated region
    $region26: #{tpu_custom_call.1} parent=1 // pred_check
      _
    $region27: #{tpu_custom_call.1} parent=1 // pred_check_branch
      %64 = sbr.rel (0) target = $region29
    $region28: #{tpu_custom_call.1} parent=1 // pred_region
      _
    $region29: #{tpu_custom_call.1} parent=1 // pred_fallthru
      _
    // Predicated region
    $region30: #{tpu_custom_call.1} parent=1 // pred_check
      _
    $region31: #{tpu_custom_call.1} parent=1 // pred_check_branch
      %66 = sbr.rel (0) target = $region33
    $region32: #{tpu_custom_call.1} parent=1 // pred_region
      _
    $region33: #{tpu_custom_call.1} parent=1 // pred_fallthru
      _
    // Predicated region
    $region34: #{tpu_custom_call.1} parent=1 // pred_check
      _
    $region35: #{tpu_custom_call.1} parent=1 // pred_check_branch
      %68 = sbr.rel (0) target = $region37
    $region36: #{tpu_custom_call.1} parent=1 // pred_region
      %s70 = ssub.s32 768, 768
      %71 = vsyncadd [#allocation6], %s70
      %s72 = sshll.u32 [#allocation7], 4
      %s73 = int_to_ptr.vmem [resolvable:$true] %s72
      %78 = dma.hbm_to_vmem [thread:$0]  %s8, 768, %s73, [#allocation6], 64, 64, 4
    $region37: #{tpu_custom_call.1} parent=1 // pred_fallthru
      _
    // Predicated region
    $region38: #{tpu_custom_call.1} parent=1 // pred_check
      _
    $region39: #{tpu_custom_call.1} parent=1 // pred_check_branch
      %80 = sbr.rel (0) target = $region41
    $region40: #{tpu_custom_call.1} parent=1 // pred_region
      _
    $region41: #{tpu_custom_call.1} parent=1 // pred_fallthru
      _
    // Predicated region
    $region42: #{tpu_custom_call.1} parent=1 // pred_check
      _
    $region43: #{tpu_custom_call.1} parent=1 // pred_check_branch
      %82 = sbr.rel (0) target = $region45
    $region44: #{tpu_custom_call.1} parent=1 // pred_region
      _
    $region45: #{tpu_custom_call.1} parent=1 // pred_fallthru
      _
    // Predicated region
    $region46: #{tpu_custom_call.1} parent=1 // pred_check
      _
    $region47: #{tpu_custom_call.1} parent=1 // pred_check_branch
      %84 = sbr.rel (0) target = $region49
    $region48: #{tpu_custom_call.1} parent=1 // pred_region
      _
    $region49: #{tpu_custom_call.1} parent=1 // pred_fallthru
      _
    // Predicated region
    $region50: #{tpu_custom_call.1} parent=1 // pred_check
      _
    $region51: #{tpu_custom_call.1} parent=1 // pred_check_branch
      %86 = sbr.rel (0) target = $region53
    $region52: #{tpu_custom_call.1} parent=1 // pred_region
      %s88 = ssub.s32 768, 768
      %89 = vsyncadd [#allocation9], %s88
      %s90 = sshll.u32 [#allocation8], 4
      %s91 = int_to_ptr.vmem [resolvable:$true] %s90
      %96 = dma.hbm_to_vmem [thread:$0]  %s12, 768, %s91, [#allocation9], 64, 64, 4
    $region53: #{tpu_custom_call.1} parent=1 // pred_fallthru
      _
    // Predicated region
    $region54: #{tpu_custom_call.1} parent=1 // pred_check
      _
    $region55: #{tpu_custom_call.1} parent=1 // pred_check_branch
      %98 = sbr.rel (0) target = $region57
    $region56: #{tpu_custom_call.1} parent=1 // pred_region
      _
    $region57: #{tpu_custom_call.1} parent=1 // pred_fallthru
      _
    // Predicated region
    $region58: #{tpu_custom_call.1} parent=1 // pred_check
      _
    $region59: #{tpu_custom_call.1} parent=1 // pred_check_branch
      %100 = sbr.rel (0) target = $region61
    $region60: #{tpu_custom_call.1} parent=1 // pred_region
      _
    $region61: #{tpu_custom_call.1} parent=1 // pred_fallthru
      _
    // Predicated region
    $region62: #{tpu_custom_call.1} parent=1 // pred_check
      _
    $region63: #{tpu_custom_call.1} parent=1 // pred_check_branch
      %102 = sbr.rel (0) target = $region65
    $region64: #{tpu_custom_call.1} parent=1 // pred_region
      _
    $region65: #{tpu_custom_call.1} parent=1 // pred_fallthru
      _
    // Predicated region
    $region66: #{tpu_custom_call.1} parent=1 // pred_check
      _
    $region67: #{tpu_custom_call.1} parent=1 // pred_check_branch
      %104 = sbr.rel (0) target = $region69
    $region68: #{tpu_custom_call.1} parent=1 // pred_region
      _
    $region69: #{tpu_custom_call.1} parent=1 // pred_fallthru
      _
    // Predicated region
    $region70: #{tpu_custom_call.1} parent=1 // pred_check
      _
    $region71: #{tpu_custom_call.1} parent=1 // pred_check_branch
      %106 = sbr.rel (0) target = $region73
    $region72: #{tpu_custom_call.1} parent=1 // pred_region
      _
    $region73: #{tpu_custom_call.1} parent=1 // pred_fallthru
      _
    // Predicated region
    $region74: #{tpu_custom_call.1} parent=1 // pred_check
      _
    $region75: #{tpu_custom_call.1} parent=1 // pred_check_branch
      %108 = sbr.rel (0) target = $region77
    $region76: #{tpu_custom_call.1} parent=1 // pred_region
      %s110 = ssub.s32 768, 768
      %111 = vsyncadd [#allocation9], %s110
      %s112 = sshll.u32 [#allocation10], 4
      %s113 = int_to_ptr.vmem [resolvable:$true] %s112
      %118 = dma.hbm_to_vmem [thread:$0]  %s18, 768, %s113, [#allocation9], 64, 64, 4
    $region77: #{tpu_custom_call.1} parent=1 // pred_fallthru
      _
    // Predicated region
    $region78: #{tpu_custom_call.1} parent=1 // pred_check
      _
    $region79: #{tpu_custom_call.1} parent=1 // pred_check_branch
      %120 = sbr.rel (0) target = $region81
    $region80: #{tpu_custom_call.1} parent=1 // pred_region
      _
    $region81: #{tpu_custom_call.1} parent=1 // pred_fallthru
      _
    // Predicated region
    $region82: #{tpu_custom_call.1} parent=1 // pred_check
      _
    $region83: #{tpu_custom_call.1} parent=1 // pred_check_branch
      %122 = sbr.rel (0) target = $region85
    $region84: #{tpu_custom_call.1} parent=1 // pred_region
      _
    $region85: #{tpu_custom_call.1} parent=1 // pred_fallthru
      _
    // Predicated region
    $region86: #{tpu_custom_call.1} parent=1 // pred_check
      _
    $region87: #{tpu_custom_call.1} parent=1 // pred_check_branch
      %124 = sbr.rel (0) target = $region89
    $region88: #{tpu_custom_call.1} parent=1 // pred_region
      _
    $region89: #{tpu_custom_call.1} parent=1 // pred_fallthru
      _
    // Predicated region
    $region90: #{tpu_custom_call.1} parent=1 // pred_check
      _
    $region91: #{tpu_custom_call.1} parent=1 // pred_check_branch
      %126 = sbr.rel (0) target = $region93
    $region92: #{tpu_custom_call.1} parent=1 // pred_region
      %127 = dma.done [#allocation3], 384
    $region93: #{tpu_custom_call.1} parent=1 // pred_fallthru
      _
    // Predicated region
    $region94: #{tpu_custom_call.1} parent=1 // pred_check
      _
    $region95: #{tpu_custom_call.1} parent=1 // pred_check_branch
      %129 = sbr.rel (0) target = $region97
    $region96: #{tpu_custom_call.1} parent=1 // pred_region
      %130 = dma.done [#allocation6], 192
    $region97: #{tpu_custom_call.1} parent=1 // pred_fallthru
      _
    // Predicated region
    $region98: #{tpu_custom_call.1} parent=1 // pred_check
      _
    $region99: #{tpu_custom_call.1} parent=1 // pred_check_branch
      %132 = sbr.rel (0) target = $region101
    $region100: #{tpu_custom_call.1} parent=1 // pred_region
      %133 = dma.done [#allocation6], 768
    $region101: #{tpu_custom_call.1} parent=1 // pred_fallthru
      _
    // Predicated region
    $region102: #{tpu_custom_call.1} parent=1 // pred_check
      _
    $region103: #{tpu_custom_call.1} parent=1 // pred_check_branch
      %135 = sbr.rel (0) target = $region105
    $region104: #{tpu_custom_call.1} parent=1 // pred_region
      %136 = dma.done [#allocation9], 768
    $region105: #{tpu_custom_call.1} parent=1 // pred_fallthru
      _
    // Predicated region
    $region106: #{tpu_custom_call.1} parent=1 // pred_check
      _
    $region107: #{tpu_custom_call.1} parent=1 // pred_check_branch
      %138 = sbr.rel (0) target = $region109
    $region108: #{tpu_custom_call.1} parent=1 // pred_region
      %139 = dma.done [#allocation9], 768
    $region109: #{tpu_custom_call.1} parent=1 // pred_fallthru
      _
    %v141 = vld [vmem:[#allocation2] sm:$0xf]
    %v142 = vld [vmem:[#allocation2 + $0x4] sm:$0xf]
    %v143 = vunpack.c.l.bf16 %v141
    %v144 = vunpack.c.l.bf16 %v142
    %v145 = vld [vmem:[#allocation5] sm:$0xf]
    %v146 = vunpack.c.l.bf16 %v145
    %v147 = vadd.f32 %v143, %v146
    %v148 = vadd.f32 %v144, %v146
    %v149 = vpack.c.bf16 %v148, %v147
    %v150 = vld [vmem:[%s4] sm:$0xf]
    %v151 = vld [vmem:[%s4 + $0x4] sm:$0xf]
    %v152 = vld [vmem:[%s4 + $0x8] sm:$0xf]
    %v153 = vld [vmem:[%s4 + $0xc] sm:$0xf]
    %v154 = vld [vmem:[%s5] sm:$0x1]
    %v156 = vlaneseq
    %v157 = vshrl.u32 %v156, 7
    %v158 = vsub.s32 0, %v157
    %v159 = vrot.slane %v154, %v158
    %v165 = vunpack.c.l.b16 %v150
    %v166 = vunpack.c.l.b16 %v151
    %v167 = vunpack.c.l.b16 %v152
    %v168 = vunpack.c.l.b16 %v153
    %v169 = vpack.c.b16 %v166, %v165
    %v170 = vpack.c.b16 %v168, %v167
    %vm173 = vcmask 261120
    %v175 = vsel %vm173, %v149, 0
    %177 = vmatprep.subr.bf16.mxu0 0
    %178 = vmatpush1.bf16.msra.mxu0 0
    %179 = vmatprep.subr.bf16.mxu0 0
    %180 = vmatpush1.bf16.msra.mxu0 0
    %181 = vmatprep.subr.bf16.mxu0 0
    %182 = vmatpush1.bf16.msra.mxu0 0
    %183 = vmatprep.subr.bf16.mxu0 0
    %184 = vmatpush1.bf16.msra.mxu0 0
    %185 = vmatprep.subr.bf16.mxu0 0
    %186 = vmatpush1.bf16.msra.mxu0 0
    %187 = vmatprep.subr.bf16.mxu0 0
    %188 = vmatpush1.bf16.msra.mxu0 0
    %189 = vmatprep.subr.bf16.mxu0 0
    %190 = vmatpush1.bf16.msra.mxu0 %v170
    %191 = vmatprep.subr.bf16.mxu0 0
    %192 = vmatpush1.bf16.msra.mxu0 %v169
    %193 = vmatprep.subr.bf16.mxu0 0
    %194 = vmatpush2.bf16.msra.mxu0 0
    %195 = vmatprep.subr.bf16.mxu0 0
    %196 = vmatpush2.bf16.msra.mxu0 0
    %197 = vmatprep.subr.bf16.mxu0 0
    %198 = vmatpush2.bf16.msra.mxu0 0
    %199 = vmatprep.subr.bf16.mxu0 0
    %200 = vmatpush2.bf16.msra.mxu0 0
    %201 = vmatprep.subr.bf16.mxu0 0
    %202 = vmatpush2.bf16.msra.mxu0 0
    %203 = vmatprep.subr.bf16.mxu0 0
    %204 = vmatpush2.bf16.msra.mxu0 0
    %205 = vmatprep.subr.bf16.mxu0 0
    %206 = vmatpush2.bf16.msra.mxu0 0
    %207 = vmatprep.subr.bf16.mxu0 0
    %208 = vmatpush2.bf16.msra.mxu0 0
    %209 = vmatprep.mubr.bf16.mxu0 0
    %210 = vmatmul.mubr.bf16.gmra.mxu0 %v175
    %v211 = vpop.f32.mrf.mxu0
    %v212 = vadd.f32 %v159, %v211
    %v213 = vpop.f32.mrf.mxu0
    %v214 = vpop.f32.mrf.mxu0
    %v215 = vadd.f32 %v159, %v214
    %v216 = vpop.f32.mrf.mxu0
    %217 = vdwg.mxu0
    %v218 = vld [vmem:[%s6] sm:$0xf]
    %v219 = vld [vmem:[%s6 + $0x4] sm:$0xf]
    %v220 = vld [vmem:[%s6 + $0x8] sm:$0xf]
    %v221 = vld [vmem:[%s6 + $0xc] sm:$0xf]
    %v222 = vld [vmem:[%s7] sm:$0x1]
    %v224 = vlaneseq
    %v225 = vshrl.u32 %v224, 7
    %v226 = vsub.s32 0, %v225
    %v227 = vrot.slane %v222, %v226
    %v233 = vunpack.c.l.b16 %v218
    %v234 = vunpack.c.l.b16 %v219
    %v235 = vunpack.c.l.b16 %v220
    %v236 = vunpack.c.l.b16 %v221
    %v237 = vpack.c.b16 %v234, %v233
    %v238 = vpack.c.b16 %v236, %v235
    %241 = vmatprep.subr.bf16.mxu0 0
    %242 = vmatpush1.bf16.msra.mxu0 0
    %243 = vmatprep.subr.bf16.mxu0 0
    %244 = vmatpush1.bf16.msra.mxu0 0
    %245 = vmatprep.subr.bf16.mxu0 0
    %246 = vmatpush1.bf16.msra.mxu0 0
    %247 = vmatprep.subr.bf16.mxu0 0
    %248 = vmatpush1.bf16.msra.mxu0 0
    %249 = vmatprep.subr.bf16.mxu0 0
    %250 = vmatpush1.bf16.msra.mxu0 0
    %251 = vmatprep.subr.bf16.mxu0 0
    %252 = vmatpush1.bf16.msra.mxu0 0
    %253 = vmatprep.subr.bf16.mxu0 0
    %254 = vmatpush1.bf16.msra.mxu0 %v238
    %255 = vmatprep.subr.bf16.mxu0 0
    %256 = vmatpush1.bf16.msra.mxu0 %v237
    %257 = vmatprep.subr.bf16.mxu0 0
    %258 = vmatpush2.bf16.msra.mxu0 0
    %259 = vmatprep.subr.bf16.mxu0 0
    %260 = vmatpush2.bf16.msra.mxu0 0
    %261 = vmatprep.subr.bf16.mxu0 0
    %262 = vmatpush2.bf16.msra.mxu0 0
    %263 = vmatprep.subr.bf16.mxu0 0
    %264 = vmatpush2.bf16.msra.mxu0 0
    %265 = vmatprep.subr.bf16.mxu0 0
    %266 = vmatpush2.bf16.msra.mxu0 0
    %267 = vmatprep.subr.bf16.mxu0 0
    %268 = vmatpush2.bf16.msra.mxu0 0
    %269 = vmatprep.subr.bf16.mxu0 0
    %270 = vmatpush2.bf16.msra.mxu0 0
    %271 = vmatprep.subr.bf16.mxu0 0
    %272 = vmatpush2.bf16.msra.mxu0 0
    %273 = vmatprep.mubr.bf16.mxu0 0
    %274 = vmatmul.mubr.bf16.gmra.mxu0 %v175
    %v275 = vpop.f32.mrf.mxu0
    %v276 = vadd.f32 %v227, %v275
    %v277 = vpop.f32.mrf.mxu0
    %v278 = vpop.f32.mrf.mxu0
    %v279 = vadd.f32 %v227, %v278
    %v280 = vpop.f32.mrf.mxu0
    %281 = vdwg.mxu0
    %v282 = vpack.c.bf16 %v147, %v147
    %v283 = vpack.c.bf16 %v148, %v148
    %v284 = vld [vmem:[%s2] sm:$0xf]
    %v285 = vld [vmem:[%s2 + $0x4] sm:$0xf]
    %v286 = vld [vmem:[%s2 + $0x8] sm:$0xf]
    %v287 = vld [vmem:[%s2 + $0xc] sm:$0xf]
    %v288 = vld [vmem:[%s3] sm:$0x1]
    %v290 = vlaneseq
    %v291 = vshrl.u32 %v290, 7
    %v292 = vsub.s32 0, %v291
    %v293 = vrot.slane %v288, %v292
    %v297 = vunpack.c.l.b16 %v282
    %v298 = vunpack.c.l.b16 %v283
    %v299 = vrot.slane %v298, 7
    %vm300 = vcmask 1041409
    %v301 = vsel %vm300, %v299, %v297
    %v302 = vpack.c.b16 %v301, %v301
    %v307 = vunpack.c.l.b16 %v284
    %v308 = vunpack.c.l.b16 %v285
    %v309 = vunpack.c.l.b16 %v286
    %v310 = vunpack.c.l.b16 %v287
    %v311 = vpack.c.b16 %v308, %v307
    %v312 = vpack.c.b16 %v310, %v309
    %v316 = vsel %vm173, %v302, 0
    %318 = vmatprep.subr.bf16.mxu0 0
    %319 = vmatpush1.bf16.msra.mxu0 0
    %320 = vmatprep.subr.bf16.mxu0 0
    %321 = vmatpush1.bf16.msra.mxu0 0
    %322 = vmatprep.subr.bf16.mxu0 0
    %323 = vmatpush1.bf16.msra.mxu0 0
    %324 = vmatprep.subr.bf16.mxu0 0
    %325 = vmatpush1.bf16.msra.mxu0 0
    %326 = vmatprep.subr.bf16.mxu0 0
    %327 = vmatpush1.bf16.msra.mxu0 0
    %328 = vmatprep.subr.bf16.mxu0 0
    %329 = vmatpush1.bf16.msra.mxu0 0
    %330 = vmatprep.subr.bf16.mxu0 0
    %331 = vmatpush1.bf16.msra.mxu0 %v312
    %332 = vmatprep.subr.bf16.mxu0 0
    %333 = vmatpush1.bf16.msra.mxu0 %v311
    %334 = vmatprep.subr.bf16.mxu0 0
    %335 = vmatpush2.bf16.msra.mxu0 0
    %336 = vmatprep.subr.bf16.mxu0 0
    %337 = vmatpush2.bf16.msra.mxu0 0
    %338 = vmatprep.subr.bf16.mxu0 0
    %339 = vmatpush2.bf16.msra.mxu0 0
    %340 = vmatprep.subr.bf16.mxu0 0
    %341 = vmatpush2.bf16.msra.mxu0 0
    %342 = vmatprep.subr.bf16.mxu0 0
    %343 = vmatpush2.bf16.msra.mxu0 0
    %344 = vmatprep.subr.bf16.mxu0 0
    %345 = vmatpush2.bf16.msra.mxu0 0
    %346 = vmatprep.subr.bf16.mxu0 0
    %347 = vmatpush2.bf16.msra.mxu0 0
    %348 = vmatprep.subr.bf16.mxu0 0
    %349 = vmatpush2.bf16.msra.mxu0 0
    %350 = vmatprep.mubr.bf16.mxu0 0
    %351 = vmatmul.mubr.bf16.gmra.mxu0 %v316
    %v352 = vpop.f32.mrf.mxu0
    %v353 = vadd.f32 %v293, %v352
    %v354 = vpop.f32.mrf.mxu0
    %v355 = vpop.f32.mrf.mxu0
    %v356 = vpop.f32.mrf.mxu0
    %357 = vdwg.mxu0
    %v360 = vunpack.c.l.s4 1966171168
    %v361 = vunpack.c.0.s8 %v360
    %v362 = vlaneseq
    %v363 = vshrl.u32 %v362, 7
    %v364 = vsub.s32 %v361, %v363
    %v365 = vrot.slane %v353, %v364
    %v366 = vcombine.high %v365, %v365
    %v368 = vunpack.c.l.s4 1966171168
    %v369 = vunpack.c.0.s8 %v368
    %v370 = vlaneseq
    %v371 = vshrl.u32 %v370, 7
    %v372 = vsub.s32 %v369, %v371
    %v373 = vrot.slane %v365, %v372
    %v375 = vunpack.c.l.s4 1966171168
    %v376 = vunpack.c.0.s8 %v375
    %v377 = vlaneseq
    %v378 = vshrl.u32 %v377, 7
    %v379 = vsub.s32 %v376, %v378
    %v380 = vrot.slane %v366, %v379
    %v381 = vlaneseq
    %v382 = vshrl.u32 %v381, 7
    %v383 = vsub.s32 0, %v382
    %v384 = vrot.slane %v373, %v383
    %v385 = vlaneseq
    %v386 = vshrl.u32 %v385, 7
    %v387 = vsub.s32 0, %v386
    %v388 = vrot.slane %v380, %v387
    %v391 = vmul.f32 %v384, %v212
    %v392 = vmul.f32 %v388, %v215
    %v393 = vsel %vm173, %v391, 0.0
    %394 = vadd.xlane.f32.xlu0 %v393
    %v395 = vpop.xlane.xlu0 %394
    %v396 = vsel %vm173, %v392, 0.0
    %397 = vadd.xlane.f32.xlu0 %v396
    %v398 = vpop.xlane.xlu0 %397
    %v399 = vmul.f32 %v395, 0.17677669
    %v400 = vmul.f32 %v398, 0.17677669
    %v403 = vlaneseq
    %v404 = vand.u32 %v403, 127
    %v405 = vlaneseq
    %v406 = vshrl.u32 %v405, 7
    %v407 = vsub.s32 %v404, %v406
    %v408 = vrot.slane %v399, %v407
    %v409 = vlaneseq
    %v410 = vshrl.u32 %v409, 7
    %v411 = vsub.s32 %v404, %v410
    %v412 = vrot.slane %v400, %v411
    %v413 = vsel %vm300, %v412, %v408
    %vm415 = vcmask 58368
    %v416 = vsel %vm415, %v413, -inf
    %417 = vmax.xlane.f32.xlu0 %v416
    %v418 = vpop.xlane.xlu0 %417
    %v420 = vlaneseq
    %v421 = vshrl.u32 %v420, 7
    %v422 = vsub.s32 0, %v421
    %v423 = vrot.slane %v418, %v422
    %v424 = vlaneseq
    %v425 = vshrl.u32 %v424, 7
    %v426 = vsub.s32 1, %v425
    %v427 = vrot.slane %v418, %v426
    %v430 = vsub.f32 %v399, %v423
    %v431 = vsub.f32 %v400, %v427
    %v432 = vmul.f32 %v430, 1.442695
    %v433 = vpow.pop %v432
    %v434 = vmul.f32 %v431, 1.442695
    %v435 = vpow.pop %v434
    %438 = vset.pattern.permute.xlu0 0
    %439 = vperm.xlu0 %438, %v433
    %v440 = vpop.permute.xlu0 %439
    %441 = vset.pattern.permute.xlu0 0
    %442 = vperm.xlu0 %441, %v435
    %v443 = vpop.permute.xlu0 %442
    %v444 = vlaneseq
    %v445 = vshrl.u32 %v444, 7
    %v446 = vsub.s32 %v404, %v445
    %v447 = vrot.slane %v440, %v446
    %v448 = vlaneseq
    %v449 = vshrl.u32 %v448, 7
    %v450 = vsub.s32 %v404, %v449
    %v451 = vrot.slane %v443, %v450
    %v452 = vsel %vm300, %v451, %v447
    %v454 = vsel %vm415, %v452, 0.0
    %455 = vadd.xlane.f32.xlu0 %v454
    %v456 = vpop.xlane.xlu0 %455
    %v457 = vrcp.pop %v456
    %v459 = vlaneseq
    %v460 = vshrl.u32 %v459, 7
    %v461 = vsub.s32 0, %v460
    %v462 = vrot.slane %v457, %v461
    %v463 = vlaneseq
    %v464 = vshrl.u32 %v463, 7
    %v465 = vsub.s32 1, %v464
    %v466 = vrot.slane %v457, %v465
    %v469 = vmul.f32 %v433, %v462
    %v470 = vmul.f32 %v435, %v466
    %472 = vset.pattern.permute.xlu0 0
    %473 = vperm.xlu0 %472, %v469
    %v474 = vpop.permute.xlu0 %473
    %477 = vset.pattern.permute.xlu0 0
    %478 = vperm.xlu0 %477, %v470
    %v479 = vpop.permute.xlu0 %478
    %v481 = vmul.f32 %v474, %v276
    %v482 = vmul.f32 %v479, %v279
    %v483 = vsel %vm173, %v481, 0.0
    %v484 = vrot.slane %v483, 4
    %v485 = vadd.f32 %v483, %v484
    %v486 = vrot.slane %v485, 2
    %v487 = vadd.f32 %v485, %v486
    %v488 = vrot.slane %v487, 1
    %v489 = vadd.f32 %v487, %v488
    %v490 = vsel %vm173, %v482, 0.0
    %v491 = vrot.slane %v490, 4
    %v492 = vadd.f32 %v490, %v491
    %v493 = vrot.slane %v492, 2
    %v494 = vadd.f32 %v492, %v493
    %v495 = vrot.slane %v494, 1
    %v496 = vadd.f32 %v494, %v495
    %v497 = vpack.c.bf16 %v489, %v489
    %v498 = vpack.c.bf16 %v496, %v496
    %v499 = vld [vmem:[#allocation7] sm:$0xf]
    %v500 = vld [vmem:[#allocation7 + $0x4] sm:$0xf]
    %v501 = vld [vmem:[#allocation7 + $0x8] sm:$0xf]
    %v502 = vld [vmem:[#allocation7 + $0xc] sm:$0xf]
    %v503 = vld [vmem:[%s9] sm:$0x1]
    %v505 = vlaneseq
    %v506 = vshrl.u32 %v505, 7
    %v507 = vsub.s32 0, %v506
    %v508 = vrot.slane %v503, %v507
    %v512 = vunpack.c.l.b16 %v497
    %v513 = vunpack.c.l.b16 %v498
    %v514 = vsel %vm300, %v513, %v512
    %v515 = vpack.c.b16 %v514, %v514
    %v520 = vunpack.c.l.b16 %v499
    %v521 = vunpack.c.l.b16 %v500
    %v522 = vunpack.c.l.b16 %v501
    %v523 = vunpack.c.l.b16 %v502
    %v524 = vpack.c.b16 %v521, %v520
    %v525 = vpack.c.b16 %v523, %v522
    %v529 = vsel %vm173, %v515, 0
    %531 = vmatprep.subr.bf16.mxu0 0
    %532 = vmatpush1.bf16.msra.mxu0 0
    %533 = vmatprep.subr.bf16.mxu0 0
    %534 = vmatpush1.bf16.msra.mxu0 0
    %535 = vmatprep.subr.bf16.mxu0 0
    %536 = vmatpush1.bf16.msra.mxu0 0
    %537 = vmatprep.subr.bf16.mxu0 0
    %538 = vmatpush1.bf16.msra.mxu0 0
    %539 = vmatprep.subr.bf16.mxu0 0
    %540 = vmatpush1.bf16.msra.mxu0 0
    %541 = vmatprep.subr.bf16.mxu0 0
    %542 = vmatpush1.bf16.msra.mxu0 0
    %543 = vmatprep.subr.bf16.mxu0 0
    %544 = vmatpush1.bf16.msra.mxu0 %v525
    %545 = vmatprep.subr.bf16.mxu0 0
    %546 = vmatpush1.bf16.msra.mxu0 %v524
    %547 = vmatprep.subr.bf16.mxu0 0
    %548 = vmatpush2.bf16.msra.mxu0 0
    %549 = vmatprep.subr.bf16.mxu0 0
    %550 = vmatpush2.bf16.msra.mxu0 0
    %551 = vmatprep.subr.bf16.mxu0 0
    %552 = vmatpush2.bf16.msra.mxu0 0
    %553 = vmatprep.subr.bf16.mxu0 0
    %554 = vmatpush2.bf16.msra.mxu0 0
    %555 = vmatprep.subr.bf16.mxu0 0
    %556 = vmatpush2.bf16.msra.mxu0 0
    %557 = vmatprep.subr.bf16.mxu0 0
    %558 = vmatpush2.bf16.msra.mxu0 0
    %559 = vmatprep.subr.bf16.mxu0 0
    %560 = vmatpush2.bf16.msra.mxu0 0
    %561 = vmatprep.subr.bf16.mxu0 0
    %562 = vmatpush2.bf16.msra.mxu0 0
    %563 = vmatprep.mubr.bf16.mxu0 0
    %564 = vmatmul.mubr.bf16.gmra.mxu0 %v529
    %v565 = vpop.f32.mrf.mxu0
    %v566 = vadd.f32 %v508, %v565
    %v567 = vpop.f32.mrf.mxu0
    %v568 = vpop.f32.mrf.mxu0
    %v569 = vpop.f32.mrf.mxu0
    %570 = vdwg.mxu0
    %v572 = vrot.slane %v566, 1
    %v575 = vadd.f32 %v147, %v566
    %v576 = vadd.f32 %v148, %v572
    %v577 = vld [vmem:[%s10] sm:$0x1]
    %v578 = vld [vmem:[%s11] sm:$0x1]
    %v581 = vrot.slane %v576, 7
    %v582 = vsel %vm300, %v581, %v575
    %vm584 = vcmask 254976
    %v585 = vsel %vm584, %v582, 0.0
    %586 = vadd.xlane.f32.xlu0 %v585
    %v587 = vpop.xlane.xlu0 %586
    %v588 = vrcp.pop 32.0
    %v589 = vmul.f32 %v587, %v588
    %v591 = vrot.slane %v589, 1
    %v594 = vsub.f32 %v575, %v589
    %v595 = vsub.f32 %v576, %v591
    %v596 = vmul.f32 %v594, %v594
    %v597 = vmul.f32 %v595, %v595
    %v600 = vrot.slane %v597, 7
    %v601 = vsel %vm300, %v600, %v596
    %v603 = vsel %vm584, %v601, 0.0
    %604 = vadd.xlane.f32.xlu0 %v603
    %v605 = vpop.xlane.xlu0 %604
    %v606 = vmul.f32 %v605, %v588
    %v607 = vadd.f32 %v606, 1e-12
    %v608 = vrsqrt.pop %v607
    %v610 = vrot.slane %v608, 1
    %v613 = vmul.f32 %v594, %v608
    %v614 = vmul.f32 %v595, %v610
    %v616 = vlaneseq
    %v617 = vshrl.u32 %v616, 7
    %v618 = vsub.s32 0, %v617
    %v619 = vrot.slane %v577, %v618
    %v621 = vmul.f32 %v613, %v619
    %v622 = vmul.f32 %v614, %v619
    %v624 = vlaneseq
    %v625 = vshrl.u32 %v624, 7
    %v626 = vsub.s32 0, %v625
    %v627 = vrot.slane %v578, %v626
    %v629 = vadd.f32 %v621, %v627
    %v630 = vadd.f32 %v622, %v627
    %v631 = vpack.c.bf16 %v629, %v629
    %v632 = vpack.c.bf16 %v630, %v630
    %v633 = vld [vmem:[#allocation8] sm:$0xf]
    %v634 = vld [vmem:[#allocation8 + $0x4] sm:$0xf]
    %v635 = vld [vmem:[#allocation8 + $0x8] sm:$0xf]
    %v636 = vld [vmem:[#allocation8 + $0xc] sm:$0xf]
    %v637 = vld [vmem:[%s13] sm:$0x1]
    %v639 = vlaneseq
    %v640 = vshrl.u32 %v639, 7
    %v641 = vsub.s32 0, %v640
    %v642 = vrot.slane %v637, %v641
    %v646 = vunpack.c.l.b16 %v631
    %v647 = vunpack.c.l.b16 %v632
    %v648 = vrot.slane %v647, 7
    %v649 = vsel %vm300, %v648, %v646
    %v650 = vpack.c.b16 %v649, %v649
    %v655 = vunpack.c.l.b16 %v633
    %v656 = vunpack.c.l.b16 %v634
    %v657 = vunpack.c.l.b16 %v635
    %v658 = vunpack.c.l.b16 %v636
    %v659 = vpack.c.b16 %v656, %v655
    %v660 = vpack.c.b16 %v658, %v657
    %v664 = vsel %vm173, %v650, 0
    %666 = vmatprep.subr.bf16.mxu0 0
    %667 = vmatpush1.bf16.msra.mxu0 0
    %668 = vmatprep.subr.bf16.mxu0 0
    %669 = vmatpush1.bf16.msra.mxu0 0
    %670 = vmatprep.subr.bf16.mxu0 0
    %671 = vmatpush1.bf16.msra.mxu0 0
    %672 = vmatprep.subr.bf16.mxu0 0
    %673 = vmatpush1.bf16.msra.mxu0 0
    %674 = vmatprep.subr.bf16.mxu0 0
    %675 = vmatpush1.bf16.msra.mxu0 0
    %676 = vmatprep.subr.bf16.mxu0 0
    %677 = vmatpush1.bf16.msra.mxu0 0
    %678 = vmatprep.subr.bf16.mxu0 0
    %679 = vmatpush1.bf16.msra.mxu0 %v660
    %680 = vmatprep.subr.bf16.mxu0 0
    %681 = vmatpush1.bf16.msra.mxu0 %v659
    %682 = vmatprep.subr.bf16.mxu0 0
    %683 = vmatpush2.bf16.msra.mxu0 0
    %684 = vmatprep.subr.bf16.mxu0 0
    %685 = vmatpush2.bf16.msra.mxu0 0
    %686 = vmatprep.subr.bf16.mxu0 0
    %687 = vmatpush2.bf16.msra.mxu0 0
    %688 = vmatprep.subr.bf16.mxu0 0
    %689 = vmatpush2.bf16.msra.mxu0 0
    %690 = vmatprep.subr.bf16.mxu0 0
    %691 = vmatpush2.bf16.msra.mxu0 0
    %692 = vmatprep.subr.bf16.mxu0 0
    %693 = vmatpush2.bf16.msra.mxu0 0
    %694 = vmatprep.subr.bf16.mxu0 0
    %695 = vmatpush2.bf16.msra.mxu0 0
    %696 = vmatprep.subr.bf16.mxu0 0
    %697 = vmatpush2.bf16.msra.mxu0 0
    %698 = vmatprep.mubr.bf16.mxu0 0
    %699 = vmatmul.mubr.bf16.gmra.mxu0 %v664
    %v700 = vpop.f32.mrf.mxu0
    %v701 = vadd.f32 %v642, %v700
    %v702 = vpop.f32.mrf.mxu0
    %v703 = vpop.f32.mrf.mxu0
    %v704 = vpop.f32.mrf.mxu0
    %705 = vdwg.mxu0
    %v706 = vmul.f32 %v701, %v701
    %v707 = vmul.f32 %v701, %v706
    %v708 = vmul.f32 %v707, 0.044715
    %v709 = vadd.f32 %v701, %v708
    %v710 = vmul.f32 %v709, 0.7978846
    %v711 = vtanh.pop %v710
    %v712 = vadd.f32 %v711, 1.0
    %v713 = vmul.f32 %v712, 0.5
    %v714 = vmul.f32 %v701, %v713
    %v715 = vpack.c.bf16 %v714, %v714
    %v716 = vld [vmem:[%s14] sm:$0xf]
    %v717 = vld [vmem:[%s14 + $0x4] sm:$0xf]
    %v718 = vld [vmem:[%s14 + $0x8] sm:$0xf]
    %v719 = vld [vmem:[%s14 + $0xc] sm:$0xf]
    %v720 = vld [vmem:[%s14 + $0x10] sm:$0xf]
    %v721 = vld [vmem:[%s14 + $0x14] sm:$0xf]
    %v722 = vld [vmem:[%s14 + $0x18] sm:$0xf]
    %v723 = vld [vmem:[%s14 + $0x1c] sm:$0xf]
    %v724 = vld [vmem:[%s15] sm:$0x1]
    %v726 = vlaneseq
    %v727 = vshrl.u32 %v726, 7
    %v728 = vsub.s32 0, %v727
    %v729 = vrot.slane %v724, %v728
    %v739 = vunpack.c.l.b16 %v716
    %v740 = vunpack.c.l.b16 %v717
    %v741 = vunpack.c.l.b16 %v718
    %v742 = vunpack.c.l.b16 %v719
    %v743 = vunpack.c.l.b16 %v720
    %v744 = vunpack.c.l.b16 %v721
    %v745 = vunpack.c.l.b16 %v722
    %v746 = vunpack.c.l.b16 %v723
    %v747 = vpack.c.b16 %v740, %v739
    %v748 = vpack.c.b16 %v742, %v741
    %v749 = vpack.c.b16 %v744, %v743
    %v750 = vpack.c.b16 %v746, %v745
    %vm755 = vcmask 523264
    %v757 = vsel %vm755, %v715, 0
    %759 = vmatprep.subr.bf16.mxu0 0
    %760 = vmatpush1.bf16.msra.mxu0 0
    %761 = vmatprep.subr.bf16.mxu0 0
    %762 = vmatpush1.bf16.msra.mxu0 0
    %763 = vmatprep.subr.bf16.mxu0 0
    %764 = vmatpush1.bf16.msra.mxu0 0
    %765 = vmatprep.subr.bf16.mxu0 0
    %766 = vmatpush1.bf16.msra.mxu0 0
    %767 = vmatprep.subr.bf16.mxu0 0
    %768 = vmatpush1.bf16.msra.mxu0 %v750
    %769 = vmatprep.subr.bf16.mxu0 0
    %770 = vmatpush1.bf16.msra.mxu0 %v749
    %771 = vmatprep.subr.bf16.mxu0 0
    %772 = vmatpush1.bf16.msra.mxu0 %v748
    %773 = vmatprep.subr.bf16.mxu0 0
    %774 = vmatpush1.bf16.msra.mxu0 %v747
    %775 = vmatprep.subr.bf16.mxu0 0
    %776 = vmatpush2.bf16.msra.mxu0 0
    %777 = vmatprep.subr.bf16.mxu0 0
    %778 = vmatpush2.bf16.msra.mxu0 0
    %779 = vmatprep.subr.bf16.mxu0 0
    %780 = vmatpush2.bf16.msra.mxu0 0
    %781 = vmatprep.subr.bf16.mxu0 0
    %782 = vmatpush2.bf16.msra.mxu0 0
    %783 = vmatprep.subr.bf16.mxu0 0
    %784 = vmatpush2.bf16.msra.mxu0 0
    %785 = vmatprep.subr.bf16.mxu0 0
    %786 = vmatpush2.bf16.msra.mxu0 0
    %787 = vmatprep.subr.bf16.mxu0 0
    %788 = vmatpush2.bf16.msra.mxu0 0
    %789 = vmatprep.subr.bf16.mxu0 0
    %790 = vmatpush2.bf16.msra.mxu0 0
    %791 = vmatprep.mubr.bf16.mxu0 0
    %792 = vmatmul.mubr.bf16.gmra.mxu0 %v757
    %v793 = vpop.f32.mrf.mxu0
    %v794 = vadd.f32 %v729, %v793
    %v795 = vpop.f32.mrf.mxu0
    %v796 = vpop.f32.mrf.mxu0
    %v797 = vpop.f32.mrf.mxu0
    %798 = vdwg.mxu0
    %v800 = vrot.slane %v794, 1
    %v803 = vadd.f32 %v629, %v794
    %v804 = vadd.f32 %v630, %v800
    %v805 = vld [vmem:[%s16] sm:$0x1]
    %v806 = vld [vmem:[%s17] sm:$0x1]
    %v809 = vrot.slane %v804, 7
    %v810 = vsel %vm300, %v809, %v803
    %v812 = vsel %vm584, %v810, 0.0
    %813 = vadd.xlane.f32.xlu0 %v812
    %v814 = vpop.xlane.xlu0 %813
    %v815 = vmul.f32 %v814, %v588
    %v817 = vrot.slane %v815, 1
    %v820 = vsub.f32 %v803, %v815
    %v821 = vsub.f32 %v804, %v817
    %v822 = vmul.f32 %v820, %v820
    %v823 = vmul.f32 %v821, %v821
    %v826 = vrot.slane %v823, 7
    %v827 = vsel %vm300, %v826, %v822
    %v829 = vsel %vm584, %v827, 0.0
    %830 = vadd.xlane.f32.xlu0 %v829
    %v831 = vpop.xlane.xlu0 %830
    %v832 = vmul.f32 %v831, %v588
    %v833 = vadd.f32 %v832, 1e-12
    %v834 = vrsqrt.pop %v833
    %v836 = vrot.slane %v834, 1
    %v839 = vmul.f32 %v820, %v834
    %v840 = vmul.f32 %v821, %v836
    %v842 = vlaneseq
    %v843 = vshrl.u32 %v842, 7
    %v844 = vsub.s32 0, %v843
    %v845 = vrot.slane %v805, %v844
    %v847 = vmul.f32 %v839, %v845
    %v848 = vmul.f32 %v840, %v845
    %v850 = vlaneseq
    %v851 = vshrl.u32 %v850, 7
    %v852 = vsub.s32 0, %v851
    %v853 = vrot.slane %v806, %v852
    %v855 = vadd.f32 %v847, %v853
    %v856 = vadd.f32 %v848, %v853
    %v857 = vpack.c.bf16 %v855, %v855
    %v858 = vpack.c.bf16 %v856, %v856
    %v859 = vld [vmem:[#allocation10] sm:$0xf]
    %v860 = vld [vmem:[#allocation10 + $0x4] sm:$0xf]
    %v861 = vld [vmem:[#allocation10 + $0x8] sm:$0xf]
    %v862 = vld [vmem:[#allocation10 + $0xc] sm:$0xf]
    %v863 = vld [vmem:[%s19] sm:$0x1]
    %v865 = vlaneseq
    %v866 = vshrl.u32 %v865, 7
    %v867 = vsub.s32 0, %v866
    %v868 = vrot.slane %v863, %v867
    %v872 = vunpack.c.l.b16 %v857
    %v873 = vunpack.c.l.b16 %v858
    %v874 = vrot.slane %v873, 7
    %v875 = vsel %vm300, %v874, %v872
    %v876 = vpack.c.b16 %v875, %v875
    %v881 = vunpack.c.l.b16 %v859
    %v882 = vunpack.c.l.b16 %v860
    %v883 = vunpack.c.l.b16 %v861
    %v884 = vunpack.c.l.b16 %v862
    %v885 = vpack.c.b16 %v882, %v881
    %v886 = vpack.c.b16 %v884, %v883
    %v890 = vsel %vm173, %v876, 0
    %892 = vmatprep.subr.bf16.mxu0 0
    %893 = vmatpush1.bf16.msra.mxu0 0
    %894 = vmatprep.subr.bf16.mxu0 0
    %895 = vmatpush1.bf16.msra.mxu0 0
    %896 = vmatprep.subr.bf16.mxu0 0
    %897 = vmatpush1.bf16.msra.mxu0 0
    %898 = vmatprep.subr.bf16.mxu0 0
    %899 = vmatpush1.bf16.msra.mxu0 0
    %900 = vmatprep.subr.bf16.mxu0 0
    %901 = vmatpush1.bf16.msra.mxu0 0
    %902 = vmatprep.subr.bf16.mxu0 0
    %903 = vmatpush1.bf16.msra.mxu0 0
    %904 = vmatprep.subr.bf16.mxu0 0
    %905 = vmatpush1.bf16.msra.mxu0 %v886
    %906 = vmatprep.subr.bf16.mxu0 0
    %907 = vmatpush1.bf16.msra.mxu0 %v885
    %908 = vmatprep.subr.bf16.mxu0 0
    %909 = vmatpush2.bf16.msra.mxu0 0
    %910 = vmatprep.subr.bf16.mxu0 0
    %911 = vmatpush2.bf16.msra.mxu0 0
    %912 = vmatprep.subr.bf16.mxu0 0
    %913 = vmatpush2.bf16.msra.mxu0 0
    %914 = vmatprep.subr.bf16.mxu0 0
    %915 = vmatpush2.bf16.msra.mxu0 0
    %916 = vmatprep.subr.bf16.mxu0 0
    %917 = vmatpush2.bf16.msra.mxu0 0
    %918 = vmatprep.subr.bf16.mxu0 0
    %919 = vmatpush2.bf16.msra.mxu0 0
    %920 = vmatprep.subr.bf16.mxu0 0
    %921 = vmatpush2.bf16.msra.mxu0 0
    %922 = vmatprep.subr.bf16.mxu0 0
    %923 = vmatpush2.bf16.msra.mxu0 0
    %924 = vmatprep.mubr.bf16.mxu0 0
    %925 = vmatmul.mubr.bf16.gmra.mxu0 %v890
    %v926 = vpop.f32.mrf.mxu0
    %v927 = vadd.f32 %v868, %v926
    %v928 = vpop.f32.mrf.mxu0
    %v929 = vpop.f32.mrf.mxu0
    %v930 = vpop.f32.mrf.mxu0
    %931 = vdwg.mxu0
    %v932 = vtanh.pop %v927
    %v933 = vld [vmem:[%s20] sm:$0x1]
    %v935 = vlaneseq
    %v936 = vshrl.u32 %v935, 7
    %v937 = vsub.s32 0, %v936
    %v938 = vrot.slane %v933, %v937
    %v940 = vmul.f32 %v932, %v938
    %v941 = vsel %vm584, %v940, 0.0
    %942 = vadd.xlane.f32.xlu0 %v941
    %v943 = vpop.xlane.xlu0 %942
    %v944 = vld [vmem:[%s21] sm:$0x1]
    %v946 = vlaneseq
    %v947 = vshrl.u32 %v946, 7
    %v948 = vsub.s32 0, %v947
    %v949 = vrot.slane %v944, %v948
    %v951 = vadd.f32 %v943, %v949
    %s952 = scalar_lea.vmem [#allocation2], 8
    %v953 = vld [vmem:[%s952] sm:$0xf]
    %v954 = vld [vmem:[%s952 + $0x4] sm:$0xf]
    %v955 = vunpack.c.l.bf16 %v953
    %v956 = vunpack.c.l.bf16 %v954
    %s957 = scalar_lea.vmem [#allocation5], 4
    %v958 = vld [vmem:[%s957] sm:$0xf]
    %v959 = vunpack.c.l.bf16 %v958
    %v960 = vadd.f32 %v955, %v959
    %v961 = vadd.f32 %v956, %v959
    %v962 = vpack.c.bf16 %v961, %v960
    %s963 = scalar_lea.vmem %s4, 16
    %v964 = vld [vmem:[%s963] sm:$0xf]
    %v965 = vld [vmem:[%s963 + $0x4] sm:$0xf]
    %v966 = vld [vmem:[%s963 + $0x8] sm:$0xf]
    %v967 = vld [vmem:[%s963 + $0xc] sm:$0xf]
    %s968 = scalar_lea.vmem %s5, 1
    %v969 = vld [vmem:[%s968] sm:$0x1]
    %v971 = vlaneseq
    %v972 = vshrl.u32 %v971, 7
    %v973 = vsub.s32 0, %v972
    %v974 = vrot.slane %v969, %v973
    %v980 = vunpack.c.l.b16 %v964
    %v981 = vunpack.c.l.b16 %v965
    %v982 = vunpack.c.l.b16 %v966
    %v983 = vunpack.c.l.b16 %v967
    %v984 = vpack.c.b16 %v981, %v980
    %v985 = vpack.c.b16 %v983, %v982
    %v989 = vsel %vm173, %v962, 0
    %991 = vmatprep.subr.bf16.mxu0 0
    %992 = vmatpush1.bf16.msra.mxu0 0
    %993 = vmatprep.subr.bf16.mxu0 0
    %994 = vmatpush1.bf16.msra.mxu0 0
    %995 = vmatprep.subr.bf16.mxu0 0
    %996 = vmatpush1.bf16.msra.mxu0 0
    %997 = vmatprep.subr.bf16.mxu0 0
    %998 = vmatpush1.bf16.msra.mxu0 0
    %999 = vmatprep.subr.bf16.mxu0 0
    %1000 = vmatpush1.bf16.msra.mxu0 0
    %1001 = vmatprep.subr.bf16.mxu0 0
    %1002 = vmatpush1.bf16.msra.mxu0 0
    %1003 = vmatprep.subr.bf16.mxu0 0
    %1004 = vmatpush1.bf16.msra.mxu0 %v985
    %1005 = vmatprep.subr.bf16.mxu0 0
    %1006 = vmatpush1.bf16.msra.mxu0 %v984
    %1007 = vmatprep.subr.bf16.mxu0 0
    %1008 = vmatpush2.bf16.msra.mxu0 0
    %1009 = vmatprep.subr.bf16.mxu0 0
    %1010 = vmatpush2.bf16.msra.mxu0 0
    %1011 = vmatprep.subr.bf16.mxu0 0
    %1012 = vmatpush2.bf16.msra.mxu0 0
    %1013 = vmatprep.subr.bf16.mxu0 0
    %1014 = vmatpush2.bf16.msra.mxu0 0
    %1015 = vmatprep.subr.bf16.mxu0 0
    %1016 = vmatpush2.bf16.msra.mxu0 0
    %1017 = vmatprep.subr.bf16.mxu0 0
    %1018 = vmatpush2.bf16.msra.mxu0 0
    %1019 = vmatprep.subr.bf16.mxu0 0
    %1020 = vmatpush2.bf16.msra.mxu0 0
    %1021 = vmatprep.subr.bf16.mxu0 0
    %1022 = vmatpush2.bf16.msra.mxu0 0
    %1023 = vmatprep.mubr.bf16.mxu0 0
    %1024 = vmatmul.mubr.bf16.gmra.mxu0 %v989
    %v1025 = vpop.f32.mrf.mxu0
    %v1026 = vadd.f32 %v974, %v1025
    %v1027 = vpop.f32.mrf.mxu0
    %v1028 = vpop.f32.mrf.mxu0
    %v1029 = vadd.f32 %v974, %v1028
    %v1030 = vpop.f32.mrf.mxu0
    %1031 = vdwg.mxu0
    %s1032 = scalar_lea.vmem %s6, 16
    %v1033 = vld [vmem:[%s1032] sm:$0xf]
    %v1034 = vld [vmem:[%s1032 + $0x4] sm:$0xf]
    %v1035 = vld [vmem:[%s1032 + $0x8] sm:$0xf]
    %v1036 = vld [vmem:[%s1032 + $0xc] sm:$0xf]
    %s1037 = scalar_lea.vmem %s7, 1
    %v1038 = vld [vmem:[%s1037] sm:$0x1]
    %v1040 = vlaneseq
    %v1041 = vshrl.u32 %v1040, 7
    %v1042 = vsub.s32 0, %v1041
    %v1043 = vrot.slane %v1038, %v1042
    %v1049 = vunpack.c.l.b16 %v1033
    %v1050 = vunpack.c.l.b16 %v1034
    %v1051 = vunpack.c.l.b16 %v1035
    %v1052 = vunpack.c.l.b16 %v1036
    %v1053 = vpack.c.b16 %v1050, %v1049
    %v1054 = vpack.c.b16 %v1052, %v1051
    %1057 = vmatprep.subr.bf16.mxu0 0
    %1058 = vmatpush1.bf16.msra.mxu0 0
    %1059 = vmatprep.subr.bf16.mxu0 0
    %1060 = vmatpush1.bf16.msra.mxu0 0
    %1061 = vmatprep.subr.bf16.mxu0 0
    %1062 = vmatpush1.bf16.msra.mxu0 0
    %1063 = vmatprep.subr.bf16.mxu0 0
    %1064 = vmatpush1.bf16.msra.mxu0 0
    %1065 = vmatprep.subr.bf16.mxu0 0
    %1066 = vmatpush1.bf16.msra.mxu0 0
    %1067 = vmatprep.subr.bf16.mxu0 0
    %1068 = vmatpush1.bf16.msra.mxu0 0
    %1069 = vmatprep.subr.bf16.mxu0 0
    %1070 = vmatpush1.bf16.msra.mxu0 %v1054
    %1071 = vmatprep.subr.bf16.mxu0 0
    %1072 = vmatpush1.bf16.msra.mxu0 %v1053
    %1073 = vmatprep.subr.bf16.mxu0 0
    %1074 = vmatpush2.bf16.msra.mxu0 0
    %1075 = vmatprep.subr.bf16.mxu0 0
    %1076 = vmatpush2.bf16.msra.mxu0 0
    %1077 = vmatprep.subr.bf16.mxu0 0
    %1078 = vmatpush2.bf16.msra.mxu0 0
    %1079 = vmatprep.subr.bf16.mxu0 0
    %1080 = vmatpush2.bf16.msra.mxu0 0
    %1081 = vmatprep.subr.bf16.mxu0 0
    %1082 = vmatpush2.bf16.msra.mxu0 0
    %1083 = vmatprep.subr.bf16.mxu0 0
    %1084 = vmatpush2.bf16.msra.mxu0 0
    %1085 = vmatprep.subr.bf16.mxu0 0
    %1086 = vmatpush2.bf16.msra.mxu0 0
    %1087 = vmatprep.subr.bf16.mxu0 0
    %1088 = vmatpush2.bf16.msra.mxu0 0
    %1089 = vmatprep.mubr.bf16.mxu0 0
    %1090 = vmatmul.mubr.bf16.gmra.mxu0 %v989
    %v1091 = vpop.f32.mrf.mxu0
    %v1092 = vadd.f32 %v1043, %v1091
    %v1093 = vpop.f32.mrf.mxu0
    %v1094 = vpop.f32.mrf.mxu0
    %v1095 = vadd.f32 %v1043, %v1094
    %v1096 = vpop.f32.mrf.mxu0
    %1097 = vdwg.mxu0
    %v1098 = vpack.c.bf16 %v960, %v960
    %v1099 = vpack.c.bf16 %v961, %v961
    %s1100 = scalar_lea.vmem %s2, 16
    %v1101 = vld [vmem:[%s1100] sm:$0xf]
    %v1102 = vld [vmem:[%s1100 + $0x4] sm:$0xf]
    %v1103 = vld [vmem:[%s1100 + $0x8] sm:$0xf]
    %v1104 = vld [vmem:[%s1100 + $0xc] sm:$0xf]
    %s1105 = scalar_lea.vmem %s3, 1
    %v1106 = vld [vmem:[%s1105] sm:$0x1]
    %v1108 = vlaneseq
    %v1109 = vshrl.u32 %v1108, 7
    %v1110 = vsub.s32 0, %v1109
    %v1111 = vrot.slane %v1106, %v1110
    %v1115 = vunpack.c.l.b16 %v1098
    %v1116 = vunpack.c.l.b16 %v1099
    %v1117 = vrot.slane %v1116, 7
    %v1118 = vsel %vm300, %v1117, %v1115
    %v1119 = vpack.c.b16 %v1118, %v1118
    %v1124 = vunpack.c.l.b16 %v1101
    %v1125 = vunpack.c.l.b16 %v1102
    %v1126 = vunpack.c.l.b16 %v1103
    %v1127 = vunpack.c.l.b16 %v1104
    %v1128 = vpack.c.b16 %v1125, %v1124
    %v1129 = vpack.c.b16 %v1127, %v1126
    %v1133 = vsel %vm173, %v1119, 0
    %1135 = vmatprep.subr.bf16.mxu0 0
    %1136 = vmatpush1.bf16.msra.mxu0 0
    %1137 = vmatprep.subr.bf16.mxu0 0
    %1138 = vmatpush1.bf16.msra.mxu0 0
    %1139 = vmatprep.subr.bf16.mxu0 0
    %1140 = vmatpush1.bf16.msra.mxu0 0
    %1141 = vmatprep.subr.bf16.mxu0 0
    %1142 = vmatpush1.bf16.msra.mxu0 0
    %1143 = vmatprep.subr.bf16.mxu0 0
    %1144 = vmatpush1.bf16.msra.mxu0 0
    %1145 = vmatprep.subr.bf16.mxu0 0
    %1146 = vmatpush1.bf16.msra.mxu0 0
    %1147 = vmatprep.subr.bf16.mxu0 0
    %1148 = vmatpush1.bf16.msra.mxu0 %v1129
    %1149 = vmatprep.subr.bf16.mxu0 0
    %1150 = vmatpush1.bf16.msra.mxu0 %v1128
    %1151 = vmatprep.subr.bf16.mxu0 0
    %1152 = vmatpush2.bf16.msra.mxu0 0
    %1153 = vmatprep.subr.bf16.mxu0 0
    %1154 = vmatpush2.bf16.msra.mxu0 0
    %1155 = vmatprep.subr.bf16.mxu0 0
    %1156 = vmatpush2.bf16.msra.mxu0 0
    %1157 = vmatprep.subr.bf16.mxu0 0
    %1158 = vmatpush2.bf16.msra.mxu0 0
    %1159 = vmatprep.subr.bf16.mxu0 0
    %1160 = vmatpush2.bf16.msra.mxu0 0
    %1161 = vmatprep.subr.bf16.mxu0 0
    %1162 = vmatpush2.bf16.msra.mxu0 0
    %1163 = vmatprep.subr.bf16.mxu0 0
    %1164 = vmatpush2.bf16.msra.mxu0 0
    %1165 = vmatprep.subr.bf16.mxu0 0
    %1166 = vmatpush2.bf16.msra.mxu0 0
    %1167 = vmatprep.mubr.bf16.mxu0 0
    %1168 = vmatmul.mubr.bf16.gmra.mxu0 %v1133
    %v1169 = vpop.f32.mrf.mxu0
    %v1170 = vadd.f32 %v1111, %v1169
    %v1171 = vpop.f32.mrf.mxu0
    %v1172 = vpop.f32.mrf.mxu0
    %v1173 = vpop.f32.mrf.mxu0
    %1174 = vdwg.mxu0
    %v1177 = vunpack.c.l.s4 1966171168
    %v1178 = vunpack.c.0.s8 %v1177
    %v1179 = vlaneseq
    %v1180 = vshrl.u32 %v1179, 7
    %v1181 = vsub.s32 %v1178, %v1180
    %v1182 = vrot.slane %v1170, %v1181
    %v1183 = vcombine.high %v1182, %v1182
    %v1185 = vunpack.c.l.s4 1966171168
    %v1186 = vunpack.c.0.s8 %v1185
    %v1187 = vlaneseq
    %v1188 = vshrl.u32 %v1187, 7
    %v1189 = vsub.s32 %v1186, %v1188
    %v1190 = vrot.slane %v1182, %v1189
    %v1192 = vunpack.c.l.s4 1966171168
    %v1193 = vunpack.c.0.s8 %v1192
    %v1194 = vlaneseq
    %v1195 = vshrl.u32 %v1194, 7
    %v1196 = vsub.s32 %v1193, %v1195
    %v1197 = vrot.slane %v1183, %v1196
    %v1198 = vlaneseq
    %v1199 = vshrl.u32 %v1198, 7
    %v1200 = vsub.s32 0, %v1199
    %v1201 = vrot.slane %v1190, %v1200
    %v1202 = vlaneseq
    %v1203 = vshrl.u32 %v1202, 7
    %v1204 = vsub.s32 0, %v1203
    %v1205 = vrot.slane %v1197, %v1204
    %v1208 = vmul.f32 %v1201, %v1026
    %v1209 = vmul.f32 %v1205, %v1029
    %v1210 = vsel %vm173, %v1208, 0.0
    %1211 = vadd.xlane.f32.xlu0 %v1210
    %v1212 = vpop.xlane.xlu0 %1211
    %v1213 = vsel %vm173, %v1209, 0.0
    %1214 = vadd.xlane.f32.xlu0 %v1213
    %v1215 = vpop.xlane.xlu0 %1214
    %v1216 = vmul.f32 %v1212, 0.17677669
    %v1217 = vmul.f32 %v1215, 0.17677669
    %v1220 = vlaneseq
    %v1221 = vshrl.u32 %v1220, 7
    %v1222 = vsub.s32 %v404, %v1221
    %v1223 = vrot.slane %v1216, %v1222
    %v1224 = vlaneseq
    %v1225 = vshrl.u32 %v1224, 7
    %v1226 = vsub.s32 %v404, %v1225
    %v1227 = vrot.slane %v1217, %v1226
    %v1228 = vsel %vm300, %v1227, %v1223
    %v1230 = vsel %vm415, %v1228, -inf
    %1231 = vmax.xlane.f32.xlu0 %v1230
    %v1232 = vpop.xlane.xlu0 %1231
    %v1234 = vlaneseq
    %v1235 = vshrl.u32 %v1234, 7
    %v1236 = vsub.s32 0, %v1235
    %v1237 = vrot.slane %v1232, %v1236
    %v1238 = vlaneseq
    %v1239 = vshrl.u32 %v1238, 7
    %v1240 = vsub.s32 1, %v1239
    %v1241 = vrot.slane %v1232, %v1240
    %v1244 = vsub.f32 %v1216, %v1237
    %v1245 = vsub.f32 %v1217, %v1241
    %v1246 = vmul.f32 %v1244, 1.442695
    %v1247 = vpow.pop %v1246
    %v1248 = vmul.f32 %v1245, 1.442695
    %v1249 = vpow.pop %v1248
    %1252 = vset.pattern.permute.xlu0 0
    %1253 = vperm.xlu0 %1252, %v1247
    %v1254 = vpop.permute.xlu0 %1253
    %1255 = vset.pattern.permute.xlu0 0
    %1256 = vperm.xlu0 %1255, %v1249
    %v1257 = vpop.permute.xlu0 %1256
    %v1258 = vlaneseq
    %v1259 = vshrl.u32 %v1258, 7
    %v1260 = vsub.s32 %v404, %v1259
    %v1261 = vrot.slane %v1254, %v1260
    %v1262 = vlaneseq
    %v1263 = vshrl.u32 %v1262, 7
    %v1264 = vsub.s32 %v404, %v1263
    %v1265 = vrot.slane %v1257, %v1264
    %v1266 = vsel %vm300, %v1265, %v1261
    %v1268 = vsel %vm415, %v1266, 0.0
    %1269 = vadd.xlane.f32.xlu0 %v1268
    %v1270 = vpop.xlane.xlu0 %1269
    %v1271 = vrcp.pop %v1270
    %v1273 = vlaneseq
    %v1274 = vshrl.u32 %v1273, 7
    %v1275 = vsub.s32 0, %v1274
    %v1276 = vrot.slane %v1271, %v1275
    %v1277 = vlaneseq
    %v1278 = vshrl.u32 %v1277, 7
    %v1279 = vsub.s32 1, %v1278
    %v1280 = vrot.slane %v1271, %v1279
    %v1283 = vmul.f32 %v1247, %v1276
    %v1284 = vmul.f32 %v1249, %v1280
    %1286 = vset.pattern.permute.xlu0 0
    %1287 = vperm.xlu0 %1286, %v1283
    %v1288 = vpop.permute.xlu0 %1287
    %1291 = vset.pattern.permute.xlu0 0
    %1292 = vperm.xlu0 %1291, %v1284
    %v1293 = vpop.permute.xlu0 %1292
    %v1295 = vmul.f32 %v1288, %v1092
    %v1296 = vmul.f32 %v1293, %v1095
    %v1297 = vsel %vm173, %v1295, 0.0
    %v1298 = vrot.slane %v1297, 4
    %v1299 = vadd.f32 %v1297, %v1298
    %v1300 = vrot.slane %v1299, 2
    %v1301 = vadd.f32 %v1299, %v1300
    %v1302 = vrot.slane %v1301, 1
    %v1303 = vadd.f32 %v1301, %v1302
    %v1304 = vsel %vm173, %v1296, 0.0
    %v1305 = vrot.slane %v1304, 4
    %v1306 = vadd.f32 %v1304, %v1305
    %v1307 = vrot.slane %v1306, 2
    %v1308 = vadd.f32 %v1306, %v1307
    %v1309 = vrot.slane %v1308, 1
    %v1310 = vadd.f32 %v1308, %v1309
    %v1311 = vpack.c.bf16 %v1303, %v1303
    %v1312 = vpack.c.bf16 %v1310, %v1310
    %s1313 = scalar_lea.vmem [#allocation7], 16
    %v1314 = vld [vmem:[%s1313] sm:$0xf]
    %v1315 = vld [vmem:[%s1313 + $0x4] sm:$0xf]
    %v1316 = vld [vmem:[%s1313 + $0x8] sm:$0xf]
    %v1317 = vld [vmem:[%s1313 + $0xc] sm:$0xf]
    %s1318 = scalar_lea.vmem %s9, 1
    %v1319 = vld [vmem:[%s1318] sm:$0x1]
    %v1321 = vlaneseq
    %v1322 = vshrl.u32 %v1321, 7
    %v1323 = vsub.s32 0, %v1322
    %v1324 = vrot.slane %v1319, %v1323
    %v1328 = vunpack.c.l.b16 %v1311
    %v1329 = vunpack.c.l.b16 %v1312
    %v1330 = vsel %vm300, %v1329, %v1328
    %v1331 = vpack.c.b16 %v1330, %v1330
    %v1336 = vunpack.c.l.b16 %v1314
    %v1337 = vunpack.c.l.b16 %v1315
    %v1338 = vunpack.c.l.b16 %v1316
    %v1339 = vunpack.c.l.b16 %v1317
    %v1340 = vpack.c.b16 %v1337, %v1336
    %v1341 = vpack.c.b16 %v1339, %v1338
    %v1345 = vsel %vm173, %v1331, 0
    %1347 = vmatprep.subr.bf16.mxu0 0
    %1348 = vmatpush1.bf16.msra.mxu0 0
    %1349 = vmatprep.subr.bf16.mxu0 0
    %1350 = vmatpush1.bf16.msra.mxu0 0
    %1351 = vmatprep.subr.bf16.mxu0 0
    %1352 = vmatpush1.bf16.msra.mxu0 0
    %1353 = vmatprep.subr.bf16.mxu0 0
    %1354 = vmatpush1.bf16.msra.mxu0 0
    %1355 = vmatprep.subr.bf16.mxu0 0
    %1356 = vmatpush1.bf16.msra.mxu0 0
    %1357 = vmatprep.subr.bf16.mxu0 0
    %1358 = vmatpush1.bf16.msra.mxu0 0
    %1359 = vmatprep.subr.bf16.mxu0 0
    %1360 = vmatpush1.bf16.msra.mxu0 %v1341
    %1361 = vmatprep.subr.bf16.mxu0 0
    %1362 = vmatpush1.bf16.msra.mxu0 %v1340
    %1363 = vmatprep.subr.bf16.mxu0 0
    %1364 = vmatpush2.bf16.msra.mxu0 0
    %1365 = vmatprep.subr.bf16.mxu0 0
    %1366 = vmatpush2.bf16.msra.mxu0 0
    %1367 = vmatprep.subr.bf16.mxu0 0
    %1368 = vmatpush2.bf16.msra.mxu0 0
    %1369 = vmatprep.subr.bf16.mxu0 0
    %1370 = vmatpush2.bf16.msra.mxu0 0
    %1371 = vmatprep.subr.bf16.mxu0 0
    %1372 = vmatpush2.bf16.msra.mxu0 0
    %1373 = vmatprep.subr.bf16.mxu0 0
    %1374 = vmatpush2.bf16.msra.mxu0 0
    %1375 = vmatprep.subr.bf16.mxu0 0
    %1376 = vmatpush2.bf16.msra.mxu0 0
    %1377 = vmatprep.subr.bf16.mxu0 0
    %1378 = vmatpush2.bf16.msra.mxu0 0
    %1379 = vmatprep.mubr.bf16.mxu0 0
    %1380 = vmatmul.mubr.bf16.gmra.mxu0 %v1345
    %v1381 = vpop.f32.mrf.mxu0
    %v1382 = vadd.f32 %v1324, %v1381
    %v1383 = vpop.f32.mrf.mxu0
    %v1384 = vpop.f32.mrf.mxu0
    %v1385 = vpop.f32.mrf.mxu0
    %1386 = vdwg.mxu0
    %v1388 = vrot.slane %v1382, 1
    %v1391 = vadd.f32 %v960, %v1382
    %v1392 = vadd.f32 %v961, %v1388
    %s1393 = scalar_lea.vmem %s10, 1
    %v1394 = vld [vmem:[%s1393] sm:$0x1]
    %s1395 = scalar_lea.vmem %s11, 1
    %v1396 = vld [vmem:[%s1395] sm:$0x1]
    %v1399 = vrot.slane %v1392, 7
    %v1400 = vsel %vm300, %v1399, %v1391
    %v1402 = vsel %vm584, %v1400, 0.0
    %1403 = vadd.xlane.f32.xlu0 %v1402
    %v1404 = vpop.xlane.xlu0 %1403
    %v1405 = vmul.f32 %v1404, %v588
    %v1407 = vrot.slane %v1405, 1
    %v1410 = vsub.f32 %v1391, %v1405
    %v1411 = vsub.f32 %v1392, %v1407
    %v1412 = vmul.f32 %v1410, %v1410
    %v1413 = vmul.f32 %v1411, %v1411
    %v1416 = vrot.slane %v1413, 7
    %v1417 = vsel %vm300, %v1416, %v1412
    %v1419 = vsel %vm584, %v1417, 0.0
    %1420 = vadd.xlane.f32.xlu0 %v1419
    %v1421 = vpop.xlane.xlu0 %1420
    %v1422 = vmul.f32 %v1421, %v588
    %v1423 = vadd.f32 %v1422, 1e-12
    %v1424 = vrsqrt.pop %v1423
    %v1426 = vrot.slane %v1424, 1
    %v1429 = vmul.f32 %v1410, %v1424
    %v1430 = vmul.f32 %v1411, %v1426
    %v1432 = vlaneseq
    %v1433 = vshrl.u32 %v1432, 7
    %v1434 = vsub.s32 0, %v1433
    %v1435 = vrot.slane %v1394, %v1434
    %v1437 = vmul.f32 %v1429, %v1435
    %v1438 = vmul.f32 %v1430, %v1435
    %v1440 = vlaneseq
    %v1441 = vshrl.u32 %v1440, 7
    %v1442 = vsub.s32 0, %v1441
    %v1443 = vrot.slane %v1396, %v1442
    %v1445 = vadd.f32 %v1437, %v1443
    %v1446 = vadd.f32 %v1438, %v1443
    %v1447 = vpack.c.bf16 %v1445, %v1445
    %v1448 = vpack.c.bf16 %v1446, %v1446
    %s1449 = scalar_lea.vmem [#allocation8], 16
    %v1450 = vld [vmem:[%s1449] sm:$0xf]
    %v1451 = vld [vmem:[%s1449 + $0x4] sm:$0xf]
    %v1452 = vld [vmem:[%s1449 + $0x8] sm:$0xf]
    %v1453 = vld [vmem:[%s1449 + $0xc] sm:$0xf]
    %s1454 = scalar_lea.vmem %s13, 1
    %v1455 = vld [vmem:[%s1454] sm:$0x1]
    %v1457 = vlaneseq
    %v1458 = vshrl.u32 %v1457, 7
    %v1459 = vsub.s32 0, %v1458
    %v1460 = vrot.slane %v1455, %v1459
    %v1464 = vunpack.c.l.b16 %v1447
    %v1465 = vunpack.c.l.b16 %v1448
    %v1466 = vrot.slane %v1465, 7
    %v1467 = vsel %vm300, %v1466, %v1464
    %v1468 = vpack.c.b16 %v1467, %v1467
    %v1473 = vunpack.c.l.b16 %v1450
    %v1474 = vunpack.c.l.b16 %v1451
    %v1475 = vunpack.c.l.b16 %v1452
    %v1476 = vunpack.c.l.b16 %v1453
    %v1477 = vpack.c.b16 %v1474, %v1473
    %v1478 = vpack.c.b16 %v1476, %v1475
    %v1482 = vsel %vm173, %v1468, 0
    %1484 = vmatprep.subr.bf16.mxu0 0
    %1485 = vmatpush1.bf16.msra.mxu0 0
    %1486 = vmatprep.subr.bf16.mxu0 0
    %1487 = vmatpush1.bf16.msra.mxu0 0
    %1488 = vmatprep.subr.bf16.mxu0 0
    %1489 = vmatpush1.bf16.msra.mxu0 0
    %1490 = vmatprep.subr.bf16.mxu0 0
    %1491 = vmatpush1.bf16.msra.mxu0 0
    %1492 = vmatprep.subr.bf16.mxu0 0
    %1493 = vmatpush1.bf16.msra.mxu0 0
    %1494 = vmatprep.subr.bf16.mxu0 0
    %1495 = vmatpush1.bf16.msra.mxu0 0
    %1496 = vmatprep.subr.bf16.mxu0 0
    %1497 = vmatpush1.bf16.msra.mxu0 %v1478
    %1498 = vmatprep.subr.bf16.mxu0 0
    %1499 = vmatpush1.bf16.msra.mxu0 %v1477
    %1500 = vmatprep.subr.bf16.mxu0 0
    %1501 = vmatpush2.bf16.msra.mxu0 0
    %1502 = vmatprep.subr.bf16.mxu0 0
    %1503 = vmatpush2.bf16.msra.mxu0 0
    %1504 = vmatprep.subr.bf16.mxu0 0
    %1505 = vmatpush2.bf16.msra.mxu0 0
    %1506 = vmatprep.subr.bf16.mxu0 0
    %1507 = vmatpush2.bf16.msra.mxu0 0
    %1508 = vmatprep.subr.bf16.mxu0 0
    %1509 = vmatpush2.bf16.msra.mxu0 0
    %1510 = vmatprep.subr.bf16.mxu0 0
    %1511 = vmatpush2.bf16.msra.mxu0 0
    %1512 = vmatprep.subr.bf16.mxu0 0
    %1513 = vmatpush2.bf16.msra.mxu0 0
    %1514 = vmatprep.subr.bf16.mxu0 0
    %1515 = vmatpush2.bf16.msra.mxu0 0
    %1516 = vmatprep.mubr.bf16.mxu0 0
    %1517 = vmatmul.mubr.bf16.gmra.mxu0 %v1482
    %v1518 = vpop.f32.mrf.mxu0
    %v1519 = vadd.f32 %v1460, %v1518
    %v1520 = vpop.f32.mrf.mxu0
    %v1521 = vpop.f32.mrf.mxu0
    %v1522 = vpop.f32.mrf.mxu0
    %1523 = vdwg.mxu0
    %v1524 = vmul.f32 %v1519, %v1519
    %v1525 = vmul.f32 %v1519, %v1524
    %v1526 = vmul.f32 %v1525, 0.044715
    %v1527 = vadd.f32 %v1519, %v1526
    %v1528 = vmul.f32 %v1527, 0.7978846
    %v1529 = vtanh.pop %v1528
    %v1530 = vadd.f32 %v1529, 1.0
    %v1531 = vmul.f32 %v1530, 0.5
    %v1532 = vmul.f32 %v1519, %v1531
    %v1533 = vpack.c.bf16 %v1532, %v1532
    %s1534 = scalar_lea.vmem %s14, 32
    %v1535 = vld [vmem:[%s1534] sm:$0xf]
    %v1536 = vld [vmem:[%s1534 + $0x4] sm:$0xf]
    %v1537 = vld [vmem:[%s1534 + $0x8] sm:$0xf]
    %v1538 = vld [vmem:[%s1534 + $0xc] sm:$0xf]
    %v1539 = vld [vmem:[%s1534 + $0x10] sm:$0xf]
    %v1540 = vld [vmem:[%s1534 + $0x14] sm:$0xf]
    %v1541 = vld [vmem:[%s1534 + $0x18] sm:$0xf]
    %v1542 = vld [vmem:[%s1534 + $0x1c] sm:$0xf]
    %s1543 = scalar_lea.vmem %s15, 1
    %v1544 = vld [vmem:[%s1543] sm:$0x1]
    %v1546 = vlaneseq
    %v1547 = vshrl.u32 %v1546, 7
    %v1548 = vsub.s32 0, %v1547
    %v1549 = vrot.slane %v1544, %v1548
    %v1559 = vunpack.c.l.b16 %v1535
    %v1560 = vunpack.c.l.b16 %v1536
    %v1561 = vunpack.c.l.b16 %v1537
    %v1562 = vunpack.c.l.b16 %v1538
    %v1563 = vunpack.c.l.b16 %v1539
    %v1564 = vunpack.c.l.b16 %v1540
    %v1565 = vunpack.c.l.b16 %v1541
    %v1566 = vunpack.c.l.b16 %v1542
    %v1567 = vpack.c.b16 %v1560, %v1559
    %v1568 = vpack.c.b16 %v1562, %v1561
    %v1569 = vpack.c.b16 %v1564, %v1563
    %v1570 = vpack.c.b16 %v1566, %v1565
    %v1576 = vsel %vm755, %v1533, 0
    %1578 = vmatprep.subr.bf16.mxu0 0
    %1579 = vmatpush1.bf16.msra.mxu0 0
    %1580 = vmatprep.subr.bf16.mxu0 0
    %1581 = vmatpush1.bf16.msra.mxu0 0
    %1582 = vmatprep.subr.bf16.mxu0 0
    %1583 = vmatpush1.bf16.msra.mxu0 0
    %1584 = vmatprep.subr.bf16.mxu0 0
    %1585 = vmatpush1.bf16.msra.mxu0 0
    %1586 = vmatprep.subr.bf16.mxu0 0
    %1587 = vmatpush1.bf16.msra.mxu0 %v1570
    %1588 = vmatprep.subr.bf16.mxu0 0
    %1589 = vmatpush1.bf16.msra.mxu0 %v1569
    %1590 = vmatprep.subr.bf16.mxu0 0
    %1591 = vmatpush1.bf16.msra.mxu0 %v1568
    %1592 = vmatprep.subr.bf16.mxu0 0
    %1593 = vmatpush1.bf16.msra.mxu0 %v1567
    %1594 = vmatprep.subr.bf16.mxu0 0
    %1595 = vmatpush2.bf16.msra.mxu0 0
    %1596 = vmatprep.subr.bf16.mxu0 0
    %1597 = vmatpush2.bf16.msra.mxu0 0
    %1598 = vmatprep.subr.bf16.mxu0 0
    %1599 = vmatpush2.bf16.msra.mxu0 0
    %1600 = vmatprep.subr.bf16.mxu0 0
    %1601 = vmatpush2.bf16.msra.mxu0 0
    %1602 = vmatprep.subr.bf16.mxu0 0
    %1603 = vmatpush2.bf16.msra.mxu0 0
    %1604 = vmatprep.subr.bf16.mxu0 0
    %1605 = vmatpush2.bf16.msra.mxu0 0
    %1606 = vmatprep.subr.bf16.mxu0 0
    %1607 = vmatpush2.bf16.msra.mxu0 0
    %1608 = vmatprep.subr.bf16.mxu0 0
    %1609 = vmatpush2.bf16.msra.mxu0 0
    %1610 = vmatprep.mubr.bf16.mxu0 0
    %1611 = vmatmul.mubr.bf16.gmra.mxu0 %v1576
    %v1612 = vpop.f32.mrf.mxu0
    %v1613 = vadd.f32 %v1549, %v1612
    %v1614 = vpop.f32.mrf.mxu0
    %v1615 = vpop.f32.mrf.mxu0
    %v1616 = vpop.f32.mrf.mxu0
    %1617 = vdwg.mxu0
    %v1619 = vrot.slane %v1613, 1
    %v1622 = vadd.f32 %v1445, %v1613
    %v1623 = vadd.f32 %v1446, %v1619
    %s1624 = scalar_lea.vmem %s16, 1
    %v1625 = vld [vmem:[%s1624] sm:$0x1]
    %s1626 = scalar_lea.vmem %s17, 1
    %v1627 = vld [vmem:[%s1626] sm:$0x1]
    %v1630 = vrot.slane %v1623, 7
    %v1631 = vsel %vm300, %v1630, %v1622
    %v1633 = vsel %vm584, %v1631, 0.0
    %1634 = vadd.xlane.f32.xlu0 %v1633
    %v1635 = vpop.xlane.xlu0 %1634
    %v1636 = vmul.f32 %v1635, %v588
    %v1638 = vrot.slane %v1636, 1
    %v1641 = vsub.f32 %v1622, %v1636
    %v1642 = vsub.f32 %v1623, %v1638
    %v1643 = vmul.f32 %v1641, %v1641
    %v1644 = vmul.f32 %v1642, %v1642
    %v1647 = vrot.slane %v1644, 7
    %v1648 = vsel %vm300, %v1647, %v1643
    %v1650 = vsel %vm584, %v1648, 0.0
    %1651 = vadd.xlane.f32.xlu0 %v1650
    %v1652 = vpop.xlane.xlu0 %1651
    %v1653 = vmul.f32 %v1652, %v588
    %v1654 = vadd.f32 %v1653, 1e-12
    %v1655 = vrsqrt.pop %v1654
    %v1657 = vrot.slane %v1655, 1
    %v1660 = vmul.f32 %v1641, %v1655
    %v1661 = vmul.f32 %v1642, %v1657
    %v1663 = vlaneseq
    %v1664 = vshrl.u32 %v1663, 7
    %v1665 = vsub.s32 0, %v1664
    %v1666 = vrot.slane %v1625, %v1665
    %v1668 = vmul.f32 %v1660, %v1666
    %v1669 = vmul.f32 %v1661, %v1666
    %v1671 = vlaneseq
    %v1672 = vshrl.u32 %v1671, 7
    %v1673 = vsub.s32 0, %v1672
    %v1674 = vrot.slane %v1627, %v1673
    %v1676 = vadd.f32 %v1668, %v1674
    %v1677 = vadd.f32 %v1669, %v1674
    %v1678 = vpack.c.bf16 %v1676, %v1676
    %v1679 = vpack.c.bf16 %v1677, %v1677
    %s1680 = scalar_lea.vmem [#allocation10], 16
    %v1681 = vld [vmem:[%s1680] sm:$0xf]
    %v1682 = vld [vmem:[%s1680 + $0x4] sm:$0xf]
    %v1683 = vld [vmem:[%s1680 + $0x8] sm:$0xf]
    %v1684 = vld [vmem:[%s1680 + $0xc] sm:$0xf]
    %s1685 = scalar_lea.vmem %s19, 1
    %v1686 = vld [vmem:[%s1685] sm:$0x1]
    %v1688 = vlaneseq
    %v1689 = vshrl.u32 %v1688, 7
    %v1690 = vsub.s32 0, %v1689
    %v1691 = vrot.slane %v1686, %v1690
    %v1695 = vunpack.c.l.b16 %v1678
    %v1696 = vunpack.c.l.b16 %v1679
    %v1697 = vrot.slane %v1696, 7
    %v1698 = vsel %vm300, %v1697, %v1695
    %v1699 = vpack.c.b16 %v1698, %v1698
    %v1704 = vunpack.c.l.b16 %v1681
    %v1705 = vunpack.c.l.b16 %v1682
    %v1706 = vunpack.c.l.b16 %v1683
    %v1707 = vunpack.c.l.b16 %v1684
    %v1708 = vpack.c.b16 %v1705, %v1704
    %v1709 = vpack.c.b16 %v1707, %v1706
    %v1713 = vsel %vm173, %v1699, 0
    %1715 = vmatprep.subr.bf16.mxu0 0
    %1716 = vmatpush1.bf16.msra.mxu0 0
    %1717 = vmatprep.subr.bf16.mxu0 0
    %1718 = vmatpush1.bf16.msra.mxu0 0
    %1719 = vmatprep.subr.bf16.mxu0 0
    %1720 = vmatpush1.bf16.msra.mxu0 0
    %1721 = vmatprep.subr.bf16.mxu0 0
    %1722 = vmatpush1.bf16.msra.mxu0 0
    %1723 = vmatprep.subr.bf16.mxu0 0
    %1724 = vmatpush1.bf16.msra.mxu0 0
    %1725 = vmatprep.subr.bf16.mxu0 0
    %1726 = vmatpush1.bf16.msra.mxu0 0
    %1727 = vmatprep.subr.bf16.mxu0 0
    %1728 = vmatpush1.bf16.msra.mxu0 %v1709
    %1729 = vmatprep.subr.bf16.mxu0 0
    %1730 = vmatpush1.bf16.msra.mxu0 %v1708
    %1731 = vmatprep.subr.bf16.mxu0 0
    %1732 = vmatpush2.bf16.msra.mxu0 0
    %1733 = vmatprep.subr.bf16.mxu0 0
    %1734 = vmatpush2.bf16.msra.mxu0 0
    %1735 = vmatprep.subr.bf16.mxu0 0
    %1736 = vmatpush2.bf16.msra.mxu0 0
    %1737 = vmatprep.subr.bf16.mxu0 0
    %1738 = vmatpush2.bf16.msra.mxu0 0
    %1739 = vmatprep.subr.bf16.mxu0 0
    %1740 = vmatpush2.bf16.msra.mxu0 0
    %1741 = vmatprep.subr.bf16.mxu0 0
    %1742 = vmatpush2.bf16.msra.mxu0 0
    %1743 = vmatprep.subr.bf16.mxu0 0
    %1744 = vmatpush2.bf16.msra.mxu0 0
    %1745 = vmatprep.subr.bf16.mxu0 0
    %1746 = vmatpush2.bf16.msra.mxu0 0
    %1747 = vmatprep.mubr.bf16.mxu0 0
    %1748 = vmatmul.mubr.bf16.gmra.mxu0 %v1713
    %v1749 = vpop.f32.mrf.mxu0
    %v1750 = vadd.f32 %v1691, %v1749
    %v1751 = vpop.f32.mrf.mxu0
    %v1752 = vpop.f32.mrf.mxu0
    %v1753 = vpop.f32.mrf.mxu0
    %1754 = vdwg.mxu0
    %v1755 = vtanh.pop %v1750
    %s1756 = scalar_lea.vmem %s20, 1
    %v1757 = vld [vmem:[%s1756] sm:$0x1]
    %v1759 = vlaneseq
    %v1760 = vshrl.u32 %v1759, 7
    %v1761 = vsub.s32 0, %v1760
    %v1762 = vrot.slane %v1757, %v1761
    %v1764 = vmul.f32 %v1755, %v1762
    %v1765 = vsel %vm584, %v1764, 0.0
    %1766 = vadd.xlane.f32.xlu0 %v1765
    %v1767 = vpop.xlane.xlu0 %1766
    %s1768 = scalar_lea.vmem %s21, 1
    %v1769 = vld [vmem:[%s1768] sm:$0x1]
    %v1771 = vlaneseq
    %v1772 = vshrl.u32 %v1771, 7
    %v1773 = vsub.s32 0, %v1772
    %v1774 = vrot.slane %v1769, %v1773
    %v1776 = vadd.f32 %v1767, %v1774
    %s1777 = scalar_lea.vmem [#allocation2], 16
    %v1778 = vld [vmem:[%s1777] sm:$0xf]
    %v1779 = vld [vmem:[%s1777 + $0x4] sm:$0xf]
    %v1780 = vunpack.c.l.bf16 %v1778
    %v1781 = vunpack.c.l.bf16 %v1779
    %s1782 = scalar_lea.vmem [#allocation5], 8
    %v1783 = vld [vmem:[%s1782] sm:$0xf]
    %v1784 = vunpack.c.l.bf16 %v1783
    %v1785 = vadd.f32 %v1780, %v1784
    %v1786 = vadd.f32 %v1781, %v1784
    %v1787 = vpack.c.bf16 %v1786, %v1785
    %s1788 = scalar_lea.vmem %s4, 32
    %v1789 = vld [vmem:[%s1788] sm:$0xf]
    %v1790 = vld [vmem:[%s1788 + $0x4] sm:$0xf]
    %v1791 = vld [vmem:[%s1788 + $0x8] sm:$0xf]
    %v1792 = vld [vmem:[%s1788 + $0xc] sm:$0xf]
    %s1793 = scalar_lea.vmem %s5, 2
    %v1794 = vld [vmem:[%s1793] sm:$0x1]
    %v1796 = vlaneseq
    %v1797 = vshrl.u32 %v1796, 7
    %v1798 = vsub.s32 0, %v1797
    %v1799 = vrot.slane %v1794, %v1798
    %v1805 = vunpack.c.l.b16 %v1789
    %v1806 = vunpack.c.l.b16 %v1790
    %v1807 = vunpack.c.l.b16 %v1791
    %v1808 = vunpack.c.l.b16 %v1792
    %v1809 = vpack.c.b16 %v1806, %v1805
    %v1810 = vpack.c.b16 %v1808, %v1807
    %v1814 = vsel %vm173, %v1787, 0
    %1816 = vmatprep.subr.bf16.mxu0 0
    %1817 = vmatpush1.bf16.msra.mxu0 0
    %1818 = vmatprep.subr.bf16.mxu0 0
    %1819 = vmatpush1.bf16.msra.mxu0 0
    %1820 = vmatprep.subr.bf16.mxu0 0
    %1821 = vmatpush1.bf16.msra.mxu0 0
    %1822 = vmatprep.subr.bf16.mxu0 0
    %1823 = vmatpush1.bf16.msra.mxu0 0
    %1824 = vmatprep.subr.bf16.mxu0 0
    %1825 = vmatpush1.bf16.msra.mxu0 0
    %1826 = vmatprep.subr.bf16.mxu0 0
    %1827 = vmatpush1.bf16.msra.mxu0 0
    %1828 = vmatprep.subr.bf16.mxu0 0
    %1829 = vmatpush1.bf16.msra.mxu0 %v1810
    %1830 = vmatprep.subr.bf16.mxu0 0
    %1831 = vmatpush1.bf16.msra.mxu0 %v1809
    %1832 = vmatprep.subr.bf16.mxu0 0
    %1833 = vmatpush2.bf16.msra.mxu0 0
    %1834 = vmatprep.subr.bf16.mxu0 0
    %1835 = vmatpush2.bf16.msra.mxu0 0
    %1836 = vmatprep.subr.bf16.mxu0 0
    %1837 = vmatpush2.bf16.msra.mxu0 0
    %1838 = vmatprep.subr.bf16.mxu0 0
    %1839 = vmatpush2.bf16.msra.mxu0 0
    %1840 = vmatprep.subr.bf16.mxu0 0
    %1841 = vmatpush2.bf16.msra.mxu0 0
    %1842 = vmatprep.subr.bf16.mxu0 0
    %1843 = vmatpush2.bf16.msra.mxu0 0
    %1844 = vmatprep.subr.bf16.mxu0 0
    %1845 = vmatpush2.bf16.msra.mxu0 0
    %1846 = vmatprep.subr.bf16.mxu0 0
    %1847 = vmatpush2.bf16.msra.mxu0 0
    %1848 = vmatprep.mubr.bf16.mxu0 0
    %1849 = vmatmul.mubr.bf16.gmra.mxu0 %v1814
    %v1850 = vpop.f32.mrf.mxu0
    %v1851 = vadd.f32 %v1799, %v1850
    %v1852 = vpop.f32.mrf.mxu0
    %v1853 = vpop.f32.mrf.mxu0
    %v1854 = vadd.f32 %v1799, %v1853
    %v1855 = vpop.f32.mrf.mxu0
    %1856 = vdwg.mxu0
    %s1857 = scalar_lea.vmem %s6, 32
    %v1858 = vld [vmem:[%s1857] sm:$0xf]
    %v1859 = vld [vmem:[%s1857 + $0x4] sm:$0xf]
    %v1860 = vld [vmem:[%s1857 + $0x8] sm:$0xf]
    %v1861 = vld [vmem:[%s1857 + $0xc] sm:$0xf]
    %s1862 = scalar_lea.vmem %s7, 2
    %v1863 = vld [vmem:[%s1862] sm:$0x1]
    %v1865 = vlaneseq
    %v1866 = vshrl.u32 %v1865, 7
    %v1867 = vsub.s32 0, %v1866
    %v1868 = vrot.slane %v1863, %v1867
    %v1874 = vunpack.c.l.b16 %v1858
    %v1875 = vunpack.c.l.b16 %v1859
    %v1876 = vunpack.c.l.b16 %v1860
    %v1877 = vunpack.c.l.b16 %v1861
    %v1878 = vpack.c.b16 %v1875, %v1874
    %v1879 = vpack.c.b16 %v1877, %v1876
    %1882 = vmatprep.subr.bf16.mxu0 0
    %1883 = vmatpush1.bf16.msra.mxu0 0
    %1884 = vmatprep.subr.bf16.mxu0 0
    %1885 = vmatpush1.bf16.msra.mxu0 0
    %1886 = vmatprep.subr.bf16.mxu0 0
    %1887 = vmatpush1.bf16.msra.mxu0 0
    %1888 = vmatprep.subr.bf16.mxu0 0
    %1889 = vmatpush1.bf16.msra.mxu0 0
    %1890 = vmatprep.subr.bf16.mxu0 0
    %1891 = vmatpush1.bf16.msra.mxu0 0
    %1892 = vmatprep.subr.bf16.mxu0 0
    %1893 = vmatpush1.bf16.msra.mxu0 0
    %1894 = vmatprep.subr.bf16.mxu0 0
    %1895 = vmatpush1.bf16.msra.mxu0 %v1879
    %1896 = vmatprep.subr.bf16.mxu0 0
    %1897 = vmatpush1.bf16.msra.mxu0 %v1878
    %1898 = vmatprep.subr.bf16.mxu0 0
    %1899 = vmatpush2.bf16.msra.mxu0 0
    %1900 = vmatprep.subr.bf16.mxu0 0
    %1901 = vmatpush2.bf16.msra.mxu0 0
    %1902 = vmatprep.subr.bf16.mxu0 0
    %1903 = vmatpush2.bf16.msra.mxu0 0
    %1904 = vmatprep.subr.bf16.mxu0 0
    %1905 = vmatpush2.bf16.msra.mxu0 0
    %1906 = vmatprep.subr.bf16.mxu0 0
    %1907 = vmatpush2.bf16.msra.mxu0 0
    %1908 = vmatprep.subr.bf16.mxu0 0
    %1909 = vmatpush2.bf16.msra.mxu0 0
    %1910 = vmatprep.subr.bf16.mxu0 0
    %1911 = vmatpush2.bf16.msra.mxu0 0
    %1912 = vmatprep.subr.bf16.mxu0 0
    %1913 = vmatpush2.bf16.msra.mxu0 0
    %1914 = vmatprep.mubr.bf16.mxu0 0
    %1915 = vmatmul.mubr.bf16.gmra.mxu0 %v1814
    %v1916 = vpop.f32.mrf.mxu0
    %v1917 = vadd.f32 %v1868, %v1916
    %v1918 = vpop.f32.mrf.mxu0
    %v1919 = vpop.f32.mrf.mxu0
    %v1920 = vadd.f32 %v1868, %v1919
    %v1921 = vpop.f32.mrf.mxu0
    %1922 = vdwg.mxu0
    %v1923 = vpack.c.bf16 %v1785, %v1785
    %v1924 = vpack.c.bf16 %v1786, %v1786
    %s1925 = scalar_lea.vmem %s2, 32
    %v1926 = vld [vmem:[%s1925] sm:$0xf]
    %v1927 = vld [vmem:[%s1925 + $0x4] sm:$0xf]
    %v1928 = vld [vmem:[%s1925 + $0x8] sm:$0xf]
    %v1929 = vld [vmem:[%s1925 + $0xc] sm:$0xf]
    %s1930 = scalar_lea.vmem %s3, 2
    %v1931 = vld [vmem:[%s1930] sm:$0x1]
    %v1933 = vlaneseq
    %v1934 = vshrl.u32 %v1933, 7
    %v1935 = vsub.s32 0, %v1934
    %v1936 = vrot.slane %v1931, %v1935
    %v1940 = vunpack.c.l.b16 %v1923
    %v1941 = vunpack.c.l.b16 %v1924
    %v1942 = vrot.slane %v1941, 7
    %v1943 = vsel %vm300, %v1942, %v1940
    %v1944 = vpack.c.b16 %v1943, %v1943
    %v1949 = vunpack.c.l.b16 %v1926
    %v1950 = vunpack.c.l.b16 %v1927
    %v1951 = vunpack.c.l.b16 %v1928
    %v1952 = vunpack.c.l.b16 %v1929
    %v1953 = vpack.c.b16 %v1950, %v1949
    %v1954 = vpack.c.b16 %v1952, %v1951
    %v1958 = vsel %vm173, %v1944, 0
    %1960 = vmatprep.subr.bf16.mxu0 0
    %1961 = vmatpush1.bf16.msra.mxu0 0
    %1962 = vmatprep.subr.bf16.mxu0 0
    %1963 = vmatpush1.bf16.msra.mxu0 0
    %1964 = vmatprep.subr.bf16.mxu0 0
    %1965 = vmatpush1.bf16.msra.mxu0 0
    %1966 = vmatprep.subr.bf16.mxu0 0
    %1967 = vmatpush1.bf16.msra.mxu0 0
    %1968 = vmatprep.subr.bf16.mxu0 0
    %1969 = vmatpush1.bf16.msra.mxu0 0
    %1970 = vmatprep.subr.bf16.mxu0 0
    %1971 = vmatpush1.bf16.msra.mxu0 0
    %1972 = vmatprep.subr.bf16.mxu0 0
    %1973 = vmatpush1.bf16.msra.mxu0 %v1954
    %1974 = vmatprep.subr.bf16.mxu0 0
    %1975 = vmatpush1.bf16.msra.mxu0 %v1953
    %1976 = vmatprep.subr.bf16.mxu0 0
    %1977 = vmatpush2.bf16.msra.mxu0 0
    %1978 = vmatprep.subr.bf16.mxu0 0
    %1979 = vmatpush2.bf16.msra.mxu0 0
    %1980 = vmatprep.subr.bf16.mxu0 0
    %1981 = vmatpush2.bf16.msra.mxu0 0
    %1982 = vmatprep.subr.bf16.mxu0 0
    %1983 = vmatpush2.bf16.msra.mxu0 0
    %1984 = vmatprep.subr.bf16.mxu0 0
    %1985 = vmatpush2.bf16.msra.mxu0 0
    %1986 = vmatprep.subr.bf16.mxu0 0
    %1987 = vmatpush2.bf16.msra.mxu0 0
    %1988 = vmatprep.subr.bf16.mxu0 0
    %1989 = vmatpush2.bf16.msra.mxu0 0
    %1990 = vmatprep.subr.bf16.mxu0 0
    %1991 = vmatpush2.bf16.msra.mxu0 0
    %1992 = vmatprep.mubr.bf16.mxu0 0
    %1993 = vmatmul.mubr.bf16.gmra.mxu0 %v1958
    %v1994 = vpop.f32.mrf.mxu0
    %v1995 = vadd.f32 %v1936, %v1994
    %v1996 = vpop.f32.mrf.mxu0
    %v1997 = vpop.f32.mrf.mxu0
    %v1998 = vpop.f32.mrf.mxu0
    %1999 = vdwg.mxu0
    %v2002 = vunpack.c.l.s4 1966171168
    %v2003 = vunpack.c.0.s8 %v2002
    %v2004 = vlaneseq
    %v2005 = vshrl.u32 %v2004, 7
    %v2006 = vsub.s32 %v2003, %v2005
    %v2007 = vrot.slane %v1995, %v2006
    %v2008 = vcombine.high %v2007, %v2007
    %v2010 = vunpack.c.l.s4 1966171168
    %v2011 = vunpack.c.0.s8 %v2010
    %v2012 = vlaneseq
    %v2013 = vshrl.u32 %v2012, 7
    %v2014 = vsub.s32 %v2011, %v2013
    %v2015 = vrot.slane %v2007, %v2014
    %v2017 = vunpack.c.l.s4 1966171168
    %v2018 = vunpack.c.0.s8 %v2017
    %v2019 = vlaneseq
    %v2020 = vshrl.u32 %v2019, 7
    %v2021 = vsub.s32 %v2018, %v2020
    %v2022 = vrot.slane %v2008, %v2021
    %v2023 = vlaneseq
    %v2024 = vshrl.u32 %v2023, 7
    %v2025 = vsub.s32 0, %v2024
    %v2026 = vrot.slane %v2015, %v2025
    %v2027 = vlaneseq
    %v2028 = vshrl.u32 %v2027, 7
    %v2029 = vsub.s32 0, %v2028
    %v2030 = vrot.slane %v2022, %v2029
    %v2033 = vmul.f32 %v2026, %v1851
    %v2034 = vmul.f32 %v2030, %v1854
    %v2035 = vsel %vm173, %v2033, 0.0
    %2036 = vadd.xlane.f32.xlu0 %v2035
    %v2037 = vpop.xlane.xlu0 %2036
    %v2038 = vsel %vm173, %v2034, 0.0
    %2039 = vadd.xlane.f32.xlu0 %v2038
    %v2040 = vpop.xlane.xlu0 %2039
    %v2041 = vmul.f32 %v2037, 0.17677669
    %v2042 = vmul.f32 %v2040, 0.17677669
    %v2045 = vlaneseq
    %v2046 = vshrl.u32 %v2045, 7
    %v2047 = vsub.s32 %v404, %v2046
    %v2048 = vrot.slane %v2041, %v2047
    %v2049 = vlaneseq
    %v2050 = vshrl.u32 %v2049, 7
    %v2051 = vsub.s32 %v404, %v2050
    %v2052 = vrot.slane %v2042, %v2051
    %v2053 = vsel %vm300, %v2052, %v2048
    %v2055 = vsel %vm415, %v2053, -inf
    %2056 = vmax.xlane.f32.xlu0 %v2055
    %v2057 = vpop.xlane.xlu0 %2056
    %v2059 = vlaneseq
    %v2060 = vshrl.u32 %v2059, 7
    %v2061 = vsub.s32 0, %v2060
    %v2062 = vrot.slane %v2057, %v2061
    %v2063 = vlaneseq
    %v2064 = vshrl.u32 %v2063, 7
    %v2065 = vsub.s32 1, %v2064
    %v2066 = vrot.slane %v2057, %v2065
    %v2069 = vsub.f32 %v2041, %v2062
    %v2070 = vsub.f32 %v2042, %v2066
    %v2071 = vmul.f32 %v2069, 1.442695
    %v2072 = vpow.pop %v2071
    %v2073 = vmul.f32 %v2070, 1.442695
    %v2074 = vpow.pop %v2073
    %2077 = vset.pattern.permute.xlu0 0
    %2078 = vperm.xlu0 %2077, %v2072
    %v2079 = vpop.permute.xlu0 %2078
    %2080 = vset.pattern.permute.xlu0 0
    %2081 = vperm.xlu0 %2080, %v2074
    %v2082 = vpop.permute.xlu0 %2081
    %v2083 = vlaneseq
    %v2084 = vshrl.u32 %v2083, 7
    %v2085 = vsub.s32 %v404, %v2084
    %v2086 = vrot.slane %v2079, %v2085
    %v2087 = vlaneseq
    %v2088 = vshrl.u32 %v2087, 7
    %v2089 = vsub.s32 %v404, %v2088
    %v2090 = vrot.slane %v2082, %v2089
    %v2091 = vsel %vm300, %v2090, %v2086
    %v2093 = vsel %vm415, %v2091, 0.0
    %2094 = vadd.xlane.f32.xlu0 %v2093
    %v2095 = vpop.xlane.xlu0 %2094
    %v2096 = vrcp.pop %v2095
    %v2098 = vlaneseq
    %v2099 = vshrl.u32 %v2098, 7
    %v2100 = vsub.s32 0, %v2099
    %v2101 = vrot.slane %v2096, %v2100
    %v2102 = vlaneseq
    %v2103 = vshrl.u32 %v2102, 7
    %v2104 = vsub.s32 1, %v2103
    %v2105 = vrot.slane %v2096, %v2104
    %v2108 = vmul.f32 %v2072, %v2101
    %v2109 = vmul.f32 %v2074, %v2105
    %2111 = vset.pattern.permute.xlu0 0
    %2112 = vperm.xlu0 %2111, %v2108
    %v2113 = vpop.permute.xlu0 %2112
    %2116 = vset.pattern.permute.xlu0 0
    %2117 = vperm.xlu0 %2116, %v2109
    %v2118 = vpop.permute.xlu0 %2117
    %v2120 = vmul.f32 %v2113, %v1917
    %v2121 = vmul.f32 %v2118, %v1920
    %v2122 = vsel %vm173, %v2120, 0.0
    %v2123 = vrot.slane %v2122, 4
    %v2124 = vadd.f32 %v2122, %v2123
    %v2125 = vrot.slane %v2124, 2
    %v2126 = vadd.f32 %v2124, %v2125
    %v2127 = vrot.slane %v2126, 1
    %v2128 = vadd.f32 %v2126, %v2127
    %v2129 = vsel %vm173, %v2121, 0.0
    %v2130 = vrot.slane %v2129, 4
    %v2131 = vadd.f32 %v2129, %v2130
    %v2132 = vrot.slane %v2131, 2
    %v2133 = vadd.f32 %v2131, %v2132
    %v2134 = vrot.slane %v2133, 1
    %v2135 = vadd.f32 %v2133, %v2134
    %v2136 = vpack.c.bf16 %v2128, %v2128
    %v2137 = vpack.c.bf16 %v2135, %v2135
    %s2138 = scalar_lea.vmem [#allocation7], 32
    %v2139 = vld [vmem:[%s2138] sm:$0xf]
    %v2140 = vld [vmem:[%s2138 + $0x4] sm:$0xf]
    %v2141 = vld [vmem:[%s2138 + $0x8] sm:$0xf]
    %v2142 = vld [vmem:[%s2138 + $0xc] sm:$0xf]
    %s2143 = scalar_lea.vmem %s9, 2
    %v2144 = vld [vmem:[%s2143] sm:$0x1]
    %v2146 = vlaneseq
    %v2147 = vshrl.u32 %v2146, 7
    %v2148 = vsub.s32 0, %v2147
    %v2149 = vrot.slane %v2144, %v2148
    %v2153 = vunpack.c.l.b16 %v2136
    %v2154 = vunpack.c.l.b16 %v2137
    %v2155 = vsel %vm300, %v2154, %v2153
    %v2156 = vpack.c.b16 %v2155, %v2155
    %v2161 = vunpack.c.l.b16 %v2139
    %v2162 = vunpack.c.l.b16 %v2140
    %v2163 = vunpack.c.l.b16 %v2141
    %v2164 = vunpack.c.l.b16 %v2142
    %v2165 = vpack.c.b16 %v2162, %v2161
    %v2166 = vpack.c.b16 %v2164, %v2163
    %v2170 = vsel %vm173, %v2156, 0
    %2172 = vmatprep.subr.bf16.mxu0 0
    %2173 = vmatpush1.bf16.msra.mxu0 0
    %2174 = vmatprep.subr.bf16.mxu0 0
    %2175 = vmatpush1.bf16.msra.mxu0 0
    %2176 = vmatprep.subr.bf16.mxu0 0
    %2177 = vmatpush1.bf16.msra.mxu0 0
    %2178 = vmatprep.subr.bf16.mxu0 0
    %2179 = vmatpush1.bf16.msra.mxu0 0
    %2180 = vmatprep.subr.bf16.mxu0 0
    %2181 = vmatpush1.bf16.msra.mxu0 0
    %2182 = vmatprep.subr.bf16.mxu0 0
    %2183 = vmatpush1.bf16.msra.mxu0 0
    %2184 = vmatprep.subr.bf16.mxu0 0
    %2185 = vmatpush1.bf16.msra.mxu0 %v2166
    %2186 = vmatprep.subr.bf16.mxu0 0
    %2187 = vmatpush1.bf16.msra.mxu0 %v2165
    %2188 = vmatprep.subr.bf16.mxu0 0
    %2189 = vmatpush2.bf16.msra.mxu0 0
    %2190 = vmatprep.subr.bf16.mxu0 0
    %2191 = vmatpush2.bf16.msra.mxu0 0
    %2192 = vmatprep.subr.bf16.mxu0 0
    %2193 = vmatpush2.bf16.msra.mxu0 0
    %2194 = vmatprep.subr.bf16.mxu0 0
    %2195 = vmatpush2.bf16.msra.mxu0 0
    %2196 = vmatprep.subr.bf16.mxu0 0
    %2197 = vmatpush2.bf16.msra.mxu0 0
    %2198 = vmatprep.subr.bf16.mxu0 0
    %2199 = vmatpush2.bf16.msra.mxu0 0
    %2200 = vmatprep.subr.bf16.mxu0 0
    %2201 = vmatpush2.bf16.msra.mxu0 0
    %2202 = vmatprep.subr.bf16.mxu0 0
    %2203 = vmatpush2.bf16.msra.mxu0 0
    %2204 = vmatprep.mubr.bf16.mxu0 0
    %2205 = vmatmul.mubr.bf16.gmra.mxu0 %v2170
    %v2206 = vpop.f32.mrf.mxu0
    %v2207 = vadd.f32 %v2149, %v2206
    %v2208 = vpop.f32.mrf.mxu0
    %v2209 = vpop.f32.mrf.mxu0
    %v2210 = vpop.f32.mrf.mxu0
    %2211 = vdwg.mxu0
    %v2213 = vrot.slane %v2207, 1
    %v2216 = vadd.f32 %v1785, %v2207
    %v2217 = vadd.f32 %v1786, %v2213
    %s2218 = scalar_lea.vmem %s10, 2
    %v2219 = vld [vmem:[%s2218] sm:$0x1]
    %s2220 = scalar_lea.vmem %s11, 2
    %v2221 = vld [vmem:[%s2220] sm:$0x1]
    %v2224 = vrot.slane %v2217, 7
    %v2225 = vsel %vm300, %v2224, %v2216
    %v2227 = vsel %vm584, %v2225, 0.0
    %2228 = vadd.xlane.f32.xlu0 %v2227
    %v2229 = vpop.xlane.xlu0 %2228
    %v2230 = vmul.f32 %v2229, %v588
    %v2232 = vrot.slane %v2230, 1
    %v2235 = vsub.f32 %v2216, %v2230
    %v2236 = vsub.f32 %v2217, %v2232
    %v2237 = vmul.f32 %v2235, %v2235
    %v2238 = vmul.f32 %v2236, %v2236
    %v2241 = vrot.slane %v2238, 7
    %v2242 = vsel %vm300, %v2241, %v2237
    %v2244 = vsel %vm584, %v2242, 0.0
    %2245 = vadd.xlane.f32.xlu0 %v2244
    %v2246 = vpop.xlane.xlu0 %2245
    %v2247 = vmul.f32 %v2246, %v588
    %v2248 = vadd.f32 %v2247, 1e-12
    %v2249 = vrsqrt.pop %v2248
    %v2251 = vrot.slane %v2249, 1
    %v2254 = vmul.f32 %v2235, %v2249
    %v2255 = vmul.f32 %v2236, %v2251
    %v2257 = vlaneseq
    %v2258 = vshrl.u32 %v2257, 7
    %v2259 = vsub.s32 0, %v2258
    %v2260 = vrot.slane %v2219, %v2259
    %v2262 = vmul.f32 %v2254, %v2260
    %v2263 = vmul.f32 %v2255, %v2260
    %v2265 = vlaneseq
    %v2266 = vshrl.u32 %v2265, 7
    %v2267 = vsub.s32 0, %v2266
    %v2268 = vrot.slane %v2221, %v2267
    %v2270 = vadd.f32 %v2262, %v2268
    %v2271 = vadd.f32 %v2263, %v2268
    %v2272 = vpack.c.bf16 %v2270, %v2270
    %v2273 = vpack.c.bf16 %v2271, %v2271
    %s2274 = scalar_lea.vmem [#allocation8], 32
    %v2275 = vld [vmem:[%s2274] sm:$0xf]
    %v2276 = vld [vmem:[%s2274 + $0x4] sm:$0xf]
    %v2277 = vld [vmem:[%s2274 + $0x8] sm:$0xf]
    %v2278 = vld [vmem:[%s2274 + $0xc] sm:$0xf]
    %s2279 = scalar_lea.vmem %s13, 2
    %v2280 = vld [vmem:[%s2279] sm:$0x1]
    %v2282 = vlaneseq
    %v2283 = vshrl.u32 %v2282, 7
    %v2284 = vsub.s32 0, %v2283
    %v2285 = vrot.slane %v2280, %v2284
    %v2289 = vunpack.c.l.b16 %v2272
    %v2290 = vunpack.c.l.b16 %v2273
    %v2291 = vrot.slane %v2290, 7
    %v2292 = vsel %vm300, %v2291, %v2289
    %v2293 = vpack.c.b16 %v2292, %v2292
    %v2298 = vunpack.c.l.b16 %v2275
    %v2299 = vunpack.c.l.b16 %v2276
    %v2300 = vunpack.c.l.b16 %v2277
    %v2301 = vunpack.c.l.b16 %v2278
    %v2302 = vpack.c.b16 %v2299, %v2298
    %v2303 = vpack.c.b16 %v2301, %v2300
    %v2307 = vsel %vm173, %v2293, 0
    %2309 = vmatprep.subr.bf16.mxu0 0
    %2310 = vmatpush1.bf16.msra.mxu0 0
    %2311 = vmatprep.subr.bf16.mxu0 0
    %2312 = vmatpush1.bf16.msra.mxu0 0
    %2313 = vmatprep.subr.bf16.mxu0 0
    %2314 = vmatpush1.bf16.msra.mxu0 0
    %2315 = vmatprep.subr.bf16.mxu0 0
    %2316 = vmatpush1.bf16.msra.mxu0 0
    %2317 = vmatprep.subr.bf16.mxu0 0
    %2318 = vmatpush1.bf16.msra.mxu0 0
    %2319 = vmatprep.subr.bf16.mxu0 0
    %2320 = vmatpush1.bf16.msra.mxu0 0
    %2321 = vmatprep.subr.bf16.mxu0 0
    %2322 = vmatpush1.bf16.msra.mxu0 %v2303
    %2323 = vmatprep.subr.bf16.mxu0 0
    %2324 = vmatpush1.bf16.msra.mxu0 %v2302
    %2325 = vmatprep.subr.bf16.mxu0 0
    %2326 = vmatpush2.bf16.msra.mxu0 0
    %2327 = vmatprep.subr.bf16.mxu0 0
    %2328 = vmatpush2.bf16.msra.mxu0 0
    %2329 = vmatprep.subr.bf16.mxu0 0
    %2330 = vmatpush2.bf16.msra.mxu0 0
    %2331 = vmatprep.subr.bf16.mxu0 0
    %2332 = vmatpush2.bf16.msra.mxu0 0
    %2333 = vmatprep.subr.bf16.mxu0 0
    %2334 = vmatpush2.bf16.msra.mxu0 0
    %2335 = vmatprep.subr.bf16.mxu0 0
    %2336 = vmatpush2.bf16.msra.mxu0 0
    %2337 = vmatprep.subr.bf16.mxu0 0
    %2338 = vmatpush2.bf16.msra.mxu0 0
    %2339 = vmatprep.subr.bf16.mxu0 0
    %2340 = vmatpush2.bf16.msra.mxu0 0
    %2341 = vmatprep.mubr.bf16.mxu0 0
    %2342 = vmatmul.mubr.bf16.gmra.mxu0 %v2307
    %v2343 = vpop.f32.mrf.mxu0
    %v2344 = vadd.f32 %v2285, %v2343
    %v2345 = vpop.f32.mrf.mxu0
    %v2346 = vpop.f32.mrf.mxu0
    %v2347 = vpop.f32.mrf.mxu0
    %2348 = vdwg.mxu0
    %v2349 = vmul.f32 %v2344, %v2344
    %v2350 = vmul.f32 %v2344, %v2349
    %v2351 = vmul.f32 %v2350, 0.044715
    %v2352 = vadd.f32 %v2344, %v2351
    %v2353 = vmul.f32 %v2352, 0.7978846
    %v2354 = vtanh.pop %v2353
    %v2355 = vadd.f32 %v2354, 1.0
    %v2356 = vmul.f32 %v2355, 0.5
    %v2357 = vmul.f32 %v2344, %v2356
    %v2358 = vpack.c.bf16 %v2357, %v2357
    %s2359 = scalar_lea.vmem %s14, 64
    %v2360 = vld [vmem:[%s2359] sm:$0xf]
    %v2361 = vld [vmem:[%s2359 + $0x4] sm:$0xf]
    %v2362 = vld [vmem:[%s2359 + $0x8] sm:$0xf]
    %v2363 = vld [vmem:[%s2359 + $0xc] sm:$0xf]
    %v2364 = vld [vmem:[%s2359 + $0x10] sm:$0xf]
    %v2365 = vld [vmem:[%s2359 + $0x14] sm:$0xf]
    %v2366 = vld [vmem:[%s2359 + $0x18] sm:$0xf]
    %v2367 = vld [vmem:[%s2359 + $0x1c] sm:$0xf]
    %s2368 = scalar_lea.vmem %s15, 2
    %v2369 = vld [vmem:[%s2368] sm:$0x1]
    %v2371 = vlaneseq
    %v2372 = vshrl.u32 %v2371, 7
    %v2373 = vsub.s32 0, %v2372
    %v2374 = vrot.slane %v2369, %v2373
    %v2384 = vunpack.c.l.b16 %v2360
    %v2385 = vunpack.c.l.b16 %v2361
    %v2386 = vunpack.c.l.b16 %v2362
    %v2387 = vunpack.c.l.b16 %v2363
    %v2388 = vunpack.c.l.b16 %v2364
    %v2389 = vunpack.c.l.b16 %v2365
    %v2390 = vunpack.c.l.b16 %v2366
    %v2391 = vunpack.c.l.b16 %v2367
    %v2392 = vpack.c.b16 %v2385, %v2384
    %v2393 = vpack.c.b16 %v2387, %v2386
    %v2394 = vpack.c.b16 %v2389, %v2388
    %v2395 = vpack.c.b16 %v2391, %v2390
    %v2401 = vsel %vm755, %v2358, 0
    %2403 = vmatprep.subr.bf16.mxu0 0
    %2404 = vmatpush1.bf16.msra.mxu0 0
    %2405 = vmatprep.subr.bf16.mxu0 0
    %2406 = vmatpush1.bf16.msra.mxu0 0
    %2407 = vmatprep.subr.bf16.mxu0 0
    %2408 = vmatpush1.bf16.msra.mxu0 0
    %2409 = vmatprep.subr.bf16.mxu0 0
    %2410 = vmatpush1.bf16.msra.mxu0 0
    %2411 = vmatprep.subr.bf16.mxu0 0
    %2412 = vmatpush1.bf16.msra.mxu0 %v2395
    %2413 = vmatprep.subr.bf16.mxu0 0
    %2414 = vmatpush1.bf16.msra.mxu0 %v2394
    %2415 = vmatprep.subr.bf16.mxu0 0
    %2416 = vmatpush1.bf16.msra.mxu0 %v2393
    %2417 = vmatprep.subr.bf16.mxu0 0
    %2418 = vmatpush1.bf16.msra.mxu0 %v2392
    %2419 = vmatprep.subr.bf16.mxu0 0
    %2420 = vmatpush2.bf16.msra.mxu0 0
    %2421 = vmatprep.subr.bf16.mxu0 0
    %2422 = vmatpush2.bf16.msra.mxu0 0
    %2423 = vmatprep.subr.bf16.mxu0 0
    %2424 = vmatpush2.bf16.msra.mxu0 0
    %2425 = vmatprep.subr.bf16.mxu0 0
    %2426 = vmatpush2.bf16.msra.mxu0 0
    %2427 = vmatprep.subr.bf16.mxu0 0
    %2428 = vmatpush2.bf16.msra.mxu0 0
    %2429 = vmatprep.subr.bf16.mxu0 0
    %2430 = vmatpush2.bf16.msra.mxu0 0
    %2431 = vmatprep.subr.bf16.mxu0 0
    %2432 = vmatpush2.bf16.msra.mxu0 0
    %2433 = vmatprep.subr.bf16.mxu0 0
    %2434 = vmatpush2.bf16.msra.mxu0 0
    %2435 = vmatprep.mubr.bf16.mxu0 0
    %2436 = vmatmul.mubr.bf16.gmra.mxu0 %v2401
    %v2437 = vpop.f32.mrf.mxu0
    %v2438 = vadd.f32 %v2374, %v2437
    %v2439 = vpop.f32.mrf.mxu0
    %v2440 = vpop.f32.mrf.mxu0
    %v2441 = vpop.f32.mrf.mxu0
    %2442 = vdwg.mxu0
    %v2444 = vrot.slane %v2438, 1
    %v2447 = vadd.f32 %v2270, %v2438
    %v2448 = vadd.f32 %v2271, %v2444
    %s2449 = scalar_lea.vmem %s16, 2
    %v2450 = vld [vmem:[%s2449] sm:$0x1]
    %s2451 = scalar_lea.vmem %s17, 2
    %v2452 = vld [vmem:[%s2451] sm:$0x1]
    %v2455 = vrot.slane %v2448, 7
    %v2456 = vsel %vm300, %v2455, %v2447
    %v2458 = vsel %vm584, %v2456, 0.0
    %2459 = vadd.xlane.f32.xlu0 %v2458
    %v2460 = vpop.xlane.xlu0 %2459
    %v2461 = vmul.f32 %v2460, %v588
    %v2463 = vrot.slane %v2461, 1
    %v2466 = vsub.f32 %v2447, %v2461
    %v2467 = vsub.f32 %v2448, %v2463
    %v2468 = vmul.f32 %v2466, %v2466
    %v2469 = vmul.f32 %v2467, %v2467
    %v2472 = vrot.slane %v2469, 7
    %v2473 = vsel %vm300, %v2472, %v2468
    %v2475 = vsel %vm584, %v2473, 0.0
    %2476 = vadd.xlane.f32.xlu0 %v2475
    %v2477 = vpop.xlane.xlu0 %2476
    %v2478 = vmul.f32 %v2477, %v588
    %v2479 = vadd.f32 %v2478, 1e-12
    %v2480 = vrsqrt.pop %v2479
    %v2482 = vrot.slane %v2480, 1
    %v2485 = vmul.f32 %v2466, %v2480
    %v2486 = vmul.f32 %v2467, %v2482
    %v2488 = vlaneseq
    %v2489 = vshrl.u32 %v2488, 7
    %v2490 = vsub.s32 0, %v2489
    %v2491 = vrot.slane %v2450, %v2490
    %v2493 = vmul.f32 %v2485, %v2491
    %v2494 = vmul.f32 %v2486, %v2491
    %v2496 = vlaneseq
    %v2497 = vshrl.u32 %v2496, 7
    %v2498 = vsub.s32 0, %v2497
    %v2499 = vrot.slane %v2452, %v2498
    %v2501 = vadd.f32 %v2493, %v2499
    %v2502 = vadd.f32 %v2494, %v2499
    %v2503 = vpack.c.bf16 %v2501, %v2501
    %v2504 = vpack.c.bf16 %v2502, %v2502
    %s2505 = scalar_lea.vmem [#allocation10], 32
    %v2506 = vld [vmem:[%s2505] sm:$0xf]
    %v2507 = vld [vmem:[%s2505 + $0x4] sm:$0xf]
    %v2508 = vld [vmem:[%s2505 + $0x8] sm:$0xf]
    %v2509 = vld [vmem:[%s2505 + $0xc] sm:$0xf]
    %s2510 = scalar_lea.vmem %s19, 2
    %v2511 = vld [vmem:[%s2510] sm:$0x1]
    %v2513 = vlaneseq
    %v2514 = vshrl.u32 %v2513, 7
    %v2515 = vsub.s32 0, %v2514
    %v2516 = vrot.slane %v2511, %v2515
    %v2520 = vunpack.c.l.b16 %v2503
    %v2521 = vunpack.c.l.b16 %v2504
    %v2522 = vrot.slane %v2521, 7
    %v2523 = vsel %vm300, %v2522, %v2520
    %v2524 = vpack.c.b16 %v2523, %v2523
    %v2529 = vunpack.c.l.b16 %v2506
    %v2530 = vunpack.c.l.b16 %v2507
    %v2531 = vunpack.c.l.b16 %v2508
    %v2532 = vunpack.c.l.b16 %v2509
    %v2533 = vpack.c.b16 %v2530, %v2529
    %v2534 = vpack.c.b16 %v2532, %v2531
    %v2538 = vsel %vm173, %v2524, 0
    %2540 = vmatprep.subr.bf16.mxu0 0
    %2541 = vmatpush1.bf16.msra.mxu0 0
    %2542 = vmatprep.subr.bf16.mxu0 0
    %2543 = vmatpush1.bf16.msra.mxu0 0
    %2544 = vmatprep.subr.bf16.mxu0 0
    %2545 = vmatpush1.bf16.msra.mxu0 0
    %2546 = vmatprep.subr.bf16.mxu0 0
    %2547 = vmatpush1.bf16.msra.mxu0 0
    %2548 = vmatprep.subr.bf16.mxu0 0
    %2549 = vmatpush1.bf16.msra.mxu0 0
    %2550 = vmatprep.subr.bf16.mxu0 0
    %2551 = vmatpush1.bf16.msra.mxu0 0
    %2552 = vmatprep.subr.bf16.mxu0 0
    %2553 = vmatpush1.bf16.msra.mxu0 %v2534
    %2554 = vmatprep.subr.bf16.mxu0 0
    %2555 = vmatpush1.bf16.msra.mxu0 %v2533
    %2556 = vmatprep.subr.bf16.mxu0 0
    %2557 = vmatpush2.bf16.msra.mxu0 0
    %2558 = vmatprep.subr.bf16.mxu0 0
    %2559 = vmatpush2.bf16.msra.mxu0 0
    %2560 = vmatprep.subr.bf16.mxu0 0
    %2561 = vmatpush2.bf16.msra.mxu0 0
    %2562 = vmatprep.subr.bf16.mxu0 0
    %2563 = vmatpush2.bf16.msra.mxu0 0
    %2564 = vmatprep.subr.bf16.mxu0 0
    %2565 = vmatpush2.bf16.msra.mxu0 0
    %2566 = vmatprep.subr.bf16.mxu0 0
    %2567 = vmatpush2.bf16.msra.mxu0 0
    %2568 = vmatprep.subr.bf16.mxu0 0
    %2569 = vmatpush2.bf16.msra.mxu0 0
    %2570 = vmatprep.subr.bf16.mxu0 0
    %2571 = vmatpush2.bf16.msra.mxu0 0
    %2572 = vmatprep.mubr.bf16.mxu0 0
    %2573 = vmatmul.mubr.bf16.gmra.mxu0 %v2538
    %v2574 = vpop.f32.mrf.mxu0
    %v2575 = vadd.f32 %v2516, %v2574
    %v2576 = vpop.f32.mrf.mxu0
    %v2577 = vpop.f32.mrf.mxu0
    %v2578 = vpop.f32.mrf.mxu0
    %2579 = vdwg.mxu0
    %v2580 = vtanh.pop %v2575
    %s2581 = scalar_lea.vmem %s20, 2
    %v2582 = vld [vmem:[%s2581] sm:$0x1]
    %v2584 = vlaneseq
    %v2585 = vshrl.u32 %v2584, 7
    %v2586 = vsub.s32 0, %v2585
    %v2587 = vrot.slane %v2582, %v2586
    %v2589 = vmul.f32 %v2580, %v2587
    %v2590 = vsel %vm584, %v2589, 0.0
    %2591 = vadd.xlane.f32.xlu0 %v2590
    %v2592 = vpop.xlane.xlu0 %2591
    %s2593 = scalar_lea.vmem %s21, 2
    %v2594 = vld [vmem:[%s2593] sm:$0x1]
    %v2596 = vlaneseq
    %v2597 = vshrl.u32 %v2596, 7
    %v2598 = vsub.s32 0, %v2597
    %v2599 = vrot.slane %v2594, %v2598
    %v2601 = vadd.f32 %v2592, %v2599
    %2603 = vrot.lane.b32.xlu0 %v1776, 1
    %v2604 = vpop.permute.xlu0 %2603
    %2607 = vrot.lane.b32.xlu0 %v2601, 2
    %v2608 = vpop.permute.xlu0 %2607
    %vm2610 = vcmask 7168
    %v2611 = vsel %vm2610, %v951, %v2604
    %vm2612 = vcmask 15360
    %v2613 = vsel %vm2612, %v2611, %v2608
    %vm2614 = vcmask 17408
    %2615 = vst.msk [vmem:[#allocation11] sm:$0x3] %vm2614, %v2613
    // Predicated region
    $region110: #{tpu_custom_call.1} parent=1 // pred_check
      _
    $region111: #{tpu_custom_call.1} parent=1 // pred_check_branch
      %2617 = sbr.rel (0) target = $region113
    $region112: #{tpu_custom_call.1} parent=1 // pred_region
      %s2619 = ssub.s32 32, 32
      %2620 = vsyncadd [#allocation4], %s2619
      %s2622 = sshll.u32 [#allocation11], 4
      %s2623 = int_to_ptr.vmem [resolvable:$true] %s2622
      %2625 = dma.vmem_to_hbm [thread:$0]  %s2623, 32, %s22, [#allocation4]
    $region113: #{tpu_custom_call.1} parent=1 // pred_fallthru
      _
    // Predicated region
    $region114: #{tpu_custom_call.1} parent=1 // pred_check
      _
    $region115: #{tpu_custom_call.1} parent=1 // pred_check_branch
      %2627 = sbr.rel (0) target = $region117
    $region116: #{tpu_custom_call.1} parent=1 // pred_region
      %2628 = dma.done [#allocation4], 32
    $region117: #{tpu_custom_call.1} parent=1 // pred_fallthru
      _
    %2629 = vsyncpa [#allocation3], 1
    %2630 = vsyncpa [#allocation6], 1
    %2631 = vsyncpa [#allocation9], 1
    %2632 = vsyncpa [#allocation4], 1

</llo_original>
